<compile_context>
chip_gen: v5e
topology: v5e:2x2
jax: 0.10.0
libtpu: 0.0.40
codegen_flags: <defaults>
</compile_context>

<pallas_src>
import math

import numpy as np

import jax
import jax.numpy as jnp
from jax.experimental import pallas as pl
from jax.experimental.pallas import tpu as pltpu


B = 8          # samples per grid step (batch tile)
RB = 7 * B     # rows per activation slab (7 window rows per sample)
PAD_ROWS = 64  # scratch slab rows (RB rounded up, shifted reads stay in bounds)


# ----------------------------------------------------------------------------
# Fused whole-network kernel (B samples per grid step)
# ----------------------------------------------------------------------------

def _mynet_kernel(x_ref, w1_ref, w2_ref, wf1_ref, wf2_ref, wf3_ref, b_ref,
                  o_ref, p1_scr, p2_scr):
    f32 = jnp.float32

    def dotf(a, b):
        return jnp.dot(a, b, preferred_element_type=f32)

    zeros_tail = jnp.zeros((PAD_ROWS - RB, 128), f32)

    # ---- conv1 (5x5, 3->6) + ReLU + 2x2 max-pool ----------------------------
    # x_ref[0, q] is (RB, 96): sample b at rows 7b..7b+6, window row r holds
    # original image row 4r+q (lane = w*3 + ci).  Pooled output row parity p
    # lives at local row r (pooled row 2r+p); q = 2p + dr + kh.
    b1 = b_ref[0:1, :]
    for p_par in (0, 1):
        pooled = None
        for dr in (0, 1):
            acc = None
            for kh in range(5):
                q = 2 * p_par + dr + kh                        # 0..7
                t = dotf(x_ref[0, q, :, :], w1_ref[kh])        # (RB,96)x(96,256)
                acc = t if acc is None else acc + t
            m = jnp.maximum(acc[:, :128], acc[:, 128:])        # max over dc halves
            pooled = m if pooled is None else jnp.maximum(pooled, m)
        p1_scr[p_par, 0:RB, :] = jnp.maximum(pooled + b1, 0.0)  # (RB,128)
        p1_scr[p_par, RB:PAD_ROWS, :] = zeros_tail

    # ---- conv2 (5x5, 6->16) + ReLU + 2x2 max-pool ----------------------------
    # Needed conv1-pooled row for output row i2 is 2*i2 + q2 (q2 = dr + kh),
    # i.e. parity q2%2, local row i2 + q2//2  ->  read the p1 slab shifted by
    # s = q2//2 rows.  Valid outputs live at local rows 0..4 of each sample.
    b2 = b_ref[1:2, :]
    pooled2 = None
    for dr in (0, 1):
        acc = None
        for kh in range(5):
            q2 = dr + kh                                       # 0..5
            par, s = q2 % 2, q2 // 2                           # parity, shift 0..2
            lhs = p1_scr[par, s:s + RB, :]                     # (RB,128)
            t = dotf(lhs, w2_ref[kh])                          # (RB,128)x(128,256)
            acc = t if acc is None else acc + t
        m = jnp.maximum(acc[:, :128], acc[:, 128:])
        pooled2 = m if pooled2 is None else jnp.maximum(pooled2, m)
    p2_scr[0:RB, :] = jnp.maximum(pooled2 + b2, 0.0)           # (RB,128)
    p2_scr[RB:PAD_ROWS, :] = zeros_tail

    # ---- fc1 (400->120) + ReLU -----------------------------------------------
    # Contract the 5 spatial rows via shifted slab reads; per-sample result
    # lands at local row 0 (slab row 7b), other rows are discarded garbage.
    acc = None
    for h in range(5):
        t = dotf(p2_scr[h:h + RB, :], wf1_ref[h])              # (RB,128)x(128,128)
        acc = t if acc is None else acc + t
    h1 = jnp.maximum(acc + b_ref[2:3, :], 0.0)                 # (RB,128)

    # ---- fc2 (120->84) + ReLU, fc3 (84->10) + ReLU ---------------------------
    h2 = jnp.maximum(dotf(h1, wf2_ref[...]) + b_ref[3:4, :], 0.0)   # (RB,128)
    h3 = jnp.maximum(dotf(h2, wf3_ref[...]) + b_ref[4:5, :], 0.0)   # (RB,128)

    o_ref[0] = h3                                              # lane-dense store


# ----------------------------------------------------------------------------
# Host-side one-time weight repacking (Toeplitz matrices, fc permutation,
# lane padding, dc-phase packing, bias tiling)
# ----------------------------------------------------------------------------

def prepare_params(p):
    w1 = np.asarray(p["w1"], np.float32)      # (6, 3, 5, 5)   (c, ci, kh, kw)
    w2 = np.asarray(p["w2"], np.float32)      # (16, 6, 5, 5)  (c2, ci, kh, kw)
    wf1 = np.asarray(p["wf1"], np.float32)    # (120, 400)
    wf2 = np.asarray(p["wf2"], np.float32)    # (84, 120)
    wf3 = np.asarray(p["wf3"], np.float32)    # (10, 84)

    def conv1_mat(dc):
        # [kh, w_in*3+ci, j*6+c]
        t = np.zeros((5, 32, 3, 14, 6), np.float32)
        for kw in range(5):
            for j in range(14):
                w_in = 2 * j + dc + kw
                t[:, w_in, :, j, :] = np.transpose(w1[:, :, :, kw], (2, 1, 0))
        return t.reshape(5, 96, 84)

    def conv2_mat(dc):
        # [kh, j*6+ci, j2*16+c2]
        t = np.zeros((5, 14, 6, 5, 16), np.float32)
        for kw in range(5):
            for j2 in range(5):
                j = 2 * j2 + dc + kw
                t[:, j, :, j2, :] = np.transpose(w2[:, :, :, kw], (2, 1, 0))
        return t.reshape(5, 84, 80)

    W1 = np.zeros((5, 96, 256), np.float32)          # dc=0 at lanes 0.., dc=1 at 128..
    W1[:, :, 0:84] = conv1_mat(0)
    W1[:, :, 128:212] = conv1_mat(1)

    W2 = np.zeros((5, 128, 256), np.float32)
    W2[:, :84, 0:80] = conv2_mat(0)
    W2[:, :84, 128:208] = conv2_mat(1)

    # fc1 rows reordered from PyTorch flat index c2*25 + h*5 + w to (h, w, c2).
    wf1_m = wf1.reshape(120, 16, 5, 5).transpose(2, 3, 1, 0).reshape(400, 120)
    WF1 = np.zeros((5, 128, 128), np.float32)
    for h in range(5):
        WF1[h, :80, :120] = wf1_m[h * 80:(h + 1) * 80, :]

    WF2 = np.zeros((128, 128), np.float32)
    WF2[:120, :84] = wf2.T
    WF3 = np.zeros((128, 128), np.float32)
    WF3[:84, :10] = wf3.T

    BIAS = np.zeros((5, 128), np.float32)
    BIAS[0, :84] = np.tile(np.asarray(p["b1"], np.float32), 14)   # col = j*6 + c
    BIAS[1, :80] = np.tile(np.asarray(p["b2"], np.float32), 5)    # col = j2*16 + c2
    BIAS[2, :120] = np.asarray(p["bf1"], np.float32)
    BIAS[3, :84] = np.asarray(p["bf2"], np.float32)
    BIAS[4, :10] = np.asarray(p["bf3"], np.float32)

    return {"w1": jnp.asarray(W1), "w2": jnp.asarray(W2),
            "wf1": jnp.asarray(WF1), "wf2": jnp.asarray(WF2),
            "wf3": jnp.asarray(WF3), "bias": jnp.asarray(BIAS)}


# ----------------------------------------------------------------------------
# Forward pass wrapper (single pallas_call, batch-tiled grid)
# ----------------------------------------------------------------------------

def mynet_forward(x_nchw, pp):
    assert x_nchw.shape[1:] == (3, 32, 32), x_nchw.shape
    N = x_nchw.shape[0]
    G = -(-N // B)                 # number of grid steps (blocks of B samples)
    Np = G * B

    # NCHW -> lane-dense (N, H, W*C), pad batch to a multiple of B.
    x = jnp.transpose(x_nchw, (0, 2, 3, 1)).reshape(N, 32, 96).astype(jnp.float32)
    if Np != N:
        x = jnp.concatenate([x, jnp.zeros((Np - N, 32, 96), x.dtype)], axis=0)

    # Host-side window extraction: xw[n, q, r, :] = x[n, 4r + q, :]  (q=0..7).
    xw = jnp.stack([x[:, q:q + 25:4, :] for q in range(8)], axis=1)   # (Np,8,7,96)
    # Stack B samples along the sublane/M axis: sample b at rows 7b..7b+6.
    xw = xw.reshape(G, B, 8, 7, 96).transpose(0, 2, 1, 3, 4).reshape(G, 8, RB, 96)

    weights = [pp["w1"], pp["w2"], pp["wf1"], pp["wf2"], pp["wf3"], pp["bias"]]
    in_specs = ([pl.BlockSpec((1, 8, RB, 96), lambda g: (g, 0, 0, 0))]
                + [pl.BlockSpec(tuple(w.shape), lambda g, nd=w.ndim: (0,) * nd)
                   for w in weights])

    out = pl.pallas_call(
        _mynet_kernel,
        out_shape=jax.ShapeDtypeStruct((G, RB, 128), jnp.float32),
        grid=(G,),
        in_specs=in_specs,
        out_specs=pl.BlockSpec((1, RB, 128), lambda g: (g, 0, 0)),
        scratch_shapes=[pltpu.VMEM((2, PAD_ROWS, 128), jnp.float32),
                        pltpu.VMEM((PAD_ROWS, 128), jnp.float32)],
        compiler_params=pltpu.CompilerParams(
            dimension_semantics=("parallel",)),
    )(xw, *weights)

    # Sample b of block g lives at slab row 7b; logits in lanes 0..9.
    out = out.reshape(G, B, 7, 128)[:, :, 0, :10].reshape(Np, 10)
    return out[:N]


# ----------------------------------------------------------------------------
# Deterministic parameter initialization (matches __init__ shapes)
# ----------------------------------------------------------------------------

def init_params(key):
    ks = jax.random.split(key, 10)

    def kaiming(k, shape, fan_in):
        return (jax.random.normal(k, shape) * math.sqrt(2.0 / fan_in)).astype(jnp.float32)

    def xavier(k, shape):
        fan_out, fan_in = shape
        return (jax.random.normal(k, shape) * math.sqrt(2.0 / (fan_in + fan_out))).astype(jnp.float32)

    def bias(k, n, fan_in):
        lim = 1.0 / math.sqrt(fan_in)
        return jax.random.uniform(k, (n,), minval=-lim, maxval=lim).astype(jnp.float32)

    return {
        "w1": kaiming(ks[0], (6, 3, 5, 5), 3 * 5 * 5),
        "b1": bias(ks[1], 6, 3 * 5 * 5),
        "w2": kaiming(ks[2], (16, 6, 5, 5), 6 * 5 * 5),
        "b2": bias(ks[3], 16, 6 * 5 * 5),
        "wf1": xavier(ks[4], (120, 400)),
        "bf1": bias(ks[5], 120, 400),
        "wf2": xavier(ks[6], (84, 120)),
        "bf2": bias(ks[7], 84, 120),
        "wf3": xavier(ks[8], (10, 84)),
        "bf3": bias(ks[9], 10, 84),
    }


# ----------------------------------------------------------------------------
# Pure-JAX reference (for correctness check of the Pallas path)
# ----------------------------------------------------------------------------

def mynet_reference(x_nchw, p):
    def conv(x, w, b):  # NCHW, OIHW
        y = jax.lax.conv_general_dilated(
            x, w, window_strides=(1, 1), padding="VALID",
            dimension_numbers=("NCHW", "OIHW", "NCHW"))
        return jax.nn.relu(y + b[None, :, None, None])

    def pool(x):
        return jax.lax.reduce_window(
            x, -jnp.inf, jax.lax.max,
            window_dimensions=(1, 1, 2, 2), window_strides=(1, 1, 2, 2),
            padding="VALID")

    x = pool(conv(x_nchw, p["w1"], p["b1"]))
    x = pool(conv(x, p["w2"], p["b2"]))
    x = x.reshape(x.shape[0], 400)
    x = jax.nn.relu(x @ p["wf1"].T + p["bf1"])
    x = jax.nn.relu(x @ p["wf2"].T + p["bf2"])
    x = jax.nn.relu(x @ p["wf3"].T + p["bf3"])
    return x


if __name__ == "__main__":
    key = jax.random.PRNGKey(0)
    k_in, k_par = jax.random.split(key)
    params = init_params(k_par)
    prepped = prepare_params(params)

    # Batch of 10 exercises both the multi-block grid and the batch-pad path.
    x = jax.random.normal(k_in, (10, 3, 32, 32), dtype=jnp.float32)

    out = jax.jit(mynet_forward)(x, prepped)
    out = jax.block_until_ready(out)

    ref = mynet_reference(x, params)
    assert out.shape == (10, 10), out.shape
    max_err = float(jnp.max(jnp.abs(out - ref)))
    assert jnp.allclose(out, ref, atol=1e-3, rtol=1e-3), max_err

    print("KERNEL_OK")
</pallas_src>

<mosaic_0001>
module attributes {stable_mosaic.version = 11 : i64} {
  func.func @_mynet_kernel(%arg0: i32, %arg1: memref<1x8x56x96xf32, #tpu.memory_space<vmem>>, %arg2: memref<5x96x256xf32, #tpu.memory_space<vmem>>, %arg3: memref<5x128x256xf32, #tpu.memory_space<vmem>>, %arg4: memref<5x128x128xf32, #tpu.memory_space<vmem>>, %arg5: memref<128x128xf32, #tpu.memory_space<vmem>>, %arg6: memref<128x128xf32, #tpu.memory_space<vmem>>, %arg7: memref<5x128xf32, #tpu.memory_space<vmem>>, %arg8: memref<1x56x128xf32, #tpu.memory_space<vmem>>, %arg9: memref<2x64x128xf32, #tpu.memory_space<vmem>>, %arg10: memref<64x128xf32, #tpu.memory_space<vmem>>) attributes {dimension_semantics = [#tpu.dimension_semantics<parallel>], iteration_bounds = array<i64: 2>, scalar_prefetch = 0 : i64, scratch_operands = 2 : i64, tpu.core_type = #tpu.core_type<tc>, window_params = [{transform_indices = @transform_0, window_bounds = array<i64: 1, 8, 56, 96>}, {pipeline_mode = #tpu.pipeline_mode<synchronous>, transform_indices = @transform_1, window_bounds = array<i64: 5, 96, 256>}, {pipeline_mode = #tpu.pipeline_mode<synchronous>, transform_indices = @transform_2, window_bounds = array<i64: 5, 128, 256>}, {pipeline_mode = #tpu.pipeline_mode<synchronous>, transform_indices = @transform_3, window_bounds = array<i64: 5, 128, 128>}, {pipeline_mode = #tpu.pipeline_mode<synchronous>, transform_indices = @transform_4, window_bounds = array<i64: 128, 128>}, {pipeline_mode = #tpu.pipeline_mode<synchronous>, transform_indices = @transform_5, window_bounds = array<i64: 128, 128>}, {pipeline_mode = #tpu.pipeline_mode<synchronous>, transform_indices = @transform_6, window_bounds = array<i64: 5, 128>}, {transform_indices = @transform_7, window_bounds = array<i64: 1, 56, 128>}]} {
    %cst = arith.constant 0.000000e+00 : f32
    %0 = vector.broadcast %cst : f32 to vector<8x128xf32>
    %c0 = arith.constant 0 : index
    %c0_0 = arith.constant 0 : index
    %1 = vector.load %arg7[%c0, %c0_0] : memref<5x128xf32, #tpu.memory_space<vmem>>, vector<1x128xf32>
    %c0_1 = arith.constant 0 : index
    %c0_2 = arith.constant 0 : index
    %c0_3 = arith.constant 0 : index
    %c0_4 = arith.constant 0 : index
    %2 = vector.load %arg1[%c0_1, %c0_2, %c0_3, %c0_4] : memref<1x8x56x96xf32, #tpu.memory_space<vmem>>, vector<1x1x56x96xf32>
    %3 = vector.shape_cast %2 : vector<1x1x56x96xf32> to vector<56x96xf32>
    %c0_5 = arith.constant 0 : index
    %c0_6 = arith.constant 0 : index
    %c0_7 = arith.constant 0 : index
    %4 = vector.load %arg2[%c0_5, %c0_6, %c0_7] : memref<5x96x256xf32, #tpu.memory_space<vmem>>, vector<1x96x256xf32>
    %5 = vector.shape_cast %4 : vector<1x96x256xf32> to vector<96x256xf32>
    %cst_8 = arith.constant dense<0.000000e+00> : vector<56x256xf32>
    %6 = tpu.matmul %3, %5, %cst_8 {dimension_numbers = #tpu.dot_dimension_numbers<[1], [0], [0], [1], [0, 0, 1, 1], [], []>} : vector<56x96xf32>, vector<96x256xf32>, vector<56x256xf32> -> vector<56x256xf32>
    %c0_9 = arith.constant 0 : index
    %c1 = arith.constant 1 : index
    %c0_10 = arith.constant 0 : index
    %c0_11 = arith.constant 0 : index
    %7 = vector.load %arg1[%c0_9, %c1, %c0_10, %c0_11] : memref<1x8x56x96xf32, #tpu.memory_space<vmem>>, vector<1x1x56x96xf32>
    %8 = vector.shape_cast %7 : vector<1x1x56x96xf32> to vector<56x96xf32>
    %c1_12 = arith.constant 1 : index
    %c0_13 = arith.constant 0 : index
    %c0_14 = arith.constant 0 : index
    %9 = vector.load %arg2[%c1_12, %c0_13, %c0_14] : memref<5x96x256xf32, #tpu.memory_space<vmem>>, vector<1x96x256xf32>
    %10 = vector.shape_cast %9 : vector<1x96x256xf32> to vector<96x256xf32>
    %cst_15 = arith.constant dense<0.000000e+00> : vector<56x256xf32>
    %11 = tpu.matmul %8, %10, %cst_15 {dimension_numbers = #tpu.dot_dimension_numbers<[1], [0], [0], [1], [0, 0, 1, 1], [], []>} : vector<56x96xf32>, vector<96x256xf32>, vector<56x256xf32> -> vector<56x256xf32>
    %12 = arith.addf %6, %11 : vector<56x256xf32>
    %c0_16 = arith.constant 0 : index
    %c2 = arith.constant 2 : index
    %c0_17 = arith.constant 0 : index
    %c0_18 = arith.constant 0 : index
    %13 = vector.load %arg1[%c0_16, %c2, %c0_17, %c0_18] : memref<1x8x56x96xf32, #tpu.memory_space<vmem>>, vector<1x1x56x96xf32>
    %14 = vector.shape_cast %13 : vector<1x1x56x96xf32> to vector<56x96xf32>
    %c2_19 = arith.constant 2 : index
    %c0_20 = arith.constant 0 : index
    %c0_21 = arith.constant 0 : index
    %15 = vector.load %arg2[%c2_19, %c0_20, %c0_21] : memref<5x96x256xf32, #tpu.memory_space<vmem>>, vector<1x96x256xf32>
    %16 = vector.shape_cast %15 : vector<1x96x256xf32> to vector<96x256xf32>
    %cst_22 = arith.constant dense<0.000000e+00> : vector<56x256xf32>
    %17 = tpu.matmul %14, %16, %cst_22 {dimension_numbers = #tpu.dot_dimension_numbers<[1], [0], [0], [1], [0, 0, 1, 1], [], []>} : vector<56x96xf32>, vector<96x256xf32>, vector<56x256xf32> -> vector<56x256xf32>
    %18 = arith.addf %12, %17 : vector<56x256xf32>
    %c0_23 = arith.constant 0 : index
    %c3 = arith.constant 3 : index
    %c0_24 = arith.constant 0 : index
    %c0_25 = arith.constant 0 : index
    %19 = vector.load %arg1[%c0_23, %c3, %c0_24, %c0_25] : memref<1x8x56x96xf32, #tpu.memory_space<vmem>>, vector<1x1x56x96xf32>
    %20 = vector.shape_cast %19 : vector<1x1x56x96xf32> to vector<56x96xf32>
    %c3_26 = arith.constant 3 : index
    %c0_27 = arith.constant 0 : index
    %c0_28 = arith.constant 0 : index
    %21 = vector.load %arg2[%c3_26, %c0_27, %c0_28] : memref<5x96x256xf32, #tpu.memory_space<vmem>>, vector<1x96x256xf32>
    %22 = vector.shape_cast %21 : vector<1x96x256xf32> to vector<96x256xf32>
    %cst_29 = arith.constant dense<0.000000e+00> : vector<56x256xf32>
    %23 = tpu.matmul %20, %22, %cst_29 {dimension_numbers = #tpu.dot_dimension_numbers<[1], [0], [0], [1], [0, 0, 1, 1], [], []>} : vector<56x96xf32>, vector<96x256xf32>, vector<56x256xf32> -> vector<56x256xf32>
    %24 = arith.addf %18, %23 : vector<56x256xf32>
    %c0_30 = arith.constant 0 : index
    %c4 = arith.constant 4 : index
    %c0_31 = arith.constant 0 : index
    %c0_32 = arith.constant 0 : index
    %25 = vector.load %arg1[%c0_30, %c4, %c0_31, %c0_32] : memref<1x8x56x96xf32, #tpu.memory_space<vmem>>, vector<1x1x56x96xf32>
    %26 = vector.shape_cast %25 : vector<1x1x56x96xf32> to vector<56x96xf32>
    %c4_33 = arith.constant 4 : index
    %c0_34 = arith.constant 0 : index
    %c0_35 = arith.constant 0 : index
    %27 = vector.load %arg2[%c4_33, %c0_34, %c0_35] : memref<5x96x256xf32, #tpu.memory_space<vmem>>, vector<1x96x256xf32>
    %28 = vector.shape_cast %27 : vector<1x96x256xf32> to vector<96x256xf32>
    %cst_36 = arith.constant dense<0.000000e+00> : vector<56x256xf32>
    %29 = tpu.matmul %26, %28, %cst_36 {dimension_numbers = #tpu.dot_dimension_numbers<[1], [0], [0], [1], [0, 0, 1, 1], [], []>} : vector<56x96xf32>, vector<96x256xf32>, vector<56x256xf32> -> vector<56x256xf32>
    %30 = arith.addf %24, %29 : vector<56x256xf32>
    %31 = vector.extract_strided_slice %30 {offsets = [0, 0], sizes = [56, 128], strides = [1, 1]} : vector<56x256xf32> to vector<56x128xf32>
    %32 = vector.extract_strided_slice %30 {offsets = [0, 128], sizes = [56, 128], strides = [1, 1]} : vector<56x256xf32> to vector<56x128xf32>
    %33 = arith.maximumf %31, %32 : vector<56x128xf32>
    %c0_37 = arith.constant 0 : index
    %c1_38 = arith.constant 1 : index
    %c0_39 = arith.constant 0 : index
    %c0_40 = arith.constant 0 : index
    %34 = vector.load %arg1[%c0_37, %c1_38, %c0_39, %c0_40] : memref<1x8x56x96xf32, #tpu.memory_space<vmem>>, vector<1x1x56x96xf32>
    %35 = vector.shape_cast %34 : vector<1x1x56x96xf32> to vector<56x96xf32>
    %c0_41 = arith.constant 0 : index
    %c0_42 = arith.constant 0 : index
    %c0_43 = arith.constant 0 : index
    %36 = vector.load %arg2[%c0_41, %c0_42, %c0_43] : memref<5x96x256xf32, #tpu.memory_space<vmem>>, vector<1x96x256xf32>
    %37 = vector.shape_cast %36 : vector<1x96x256xf32> to vector<96x256xf32>
    %cst_44 = arith.constant dense<0.000000e+00> : vector<56x256xf32>
    %38 = tpu.matmul %35, %37, %cst_44 {dimension_numbers = #tpu.dot_dimension_numbers<[1], [0], [0], [1], [0, 0, 1, 1], [], []>} : vector<56x96xf32>, vector<96x256xf32>, vector<56x256xf32> -> vector<56x256xf32>
    %c0_45 = arith.constant 0 : index
    %c2_46 = arith.constant 2 : index
    %c0_47 = arith.constant 0 : index
    %c0_48 = arith.constant 0 : index
    %39 = vector.load %arg1[%c0_45, %c2_46, %c0_47, %c0_48] : memref<1x8x56x96xf32, #tpu.memory_space<vmem>>, vector<1x1x56x96xf32>
    %40 = vector.shape_cast %39 : vector<1x1x56x96xf32> to vector<56x96xf32>
    %c1_49 = arith.constant 1 : index
    %c0_50 = arith.constant 0 : index
    %c0_51 = arith.constant 0 : index
    %41 = vector.load %arg2[%c1_49, %c0_50, %c0_51] : memref<5x96x256xf32, #tpu.memory_space<vmem>>, vector<1x96x256xf32>
    %42 = vector.shape_cast %41 : vector<1x96x256xf32> to vector<96x256xf32>
    %cst_52 = arith.constant dense<0.000000e+00> : vector<56x256xf32>
    %43 = tpu.matmul %40, %42, %cst_52 {dimension_numbers = #tpu.dot_dimension_numbers<[1], [0], [0], [1], [0, 0, 1, 1], [], []>} : vector<56x96xf32>, vector<96x256xf32>, vector<56x256xf32> -> vector<56x256xf32>
    %44 = arith.addf %38, %43 : vector<56x256xf32>
    %c0_53 = arith.constant 0 : index
    %c3_54 = arith.constant 3 : index
    %c0_55 = arith.constant 0 : index
    %c0_56 = arith.constant 0 : index
    %45 = vector.load %arg1[%c0_53, %c3_54, %c0_55, %c0_56] : memref<1x8x56x96xf32, #tpu.memory_space<vmem>>, vector<1x1x56x96xf32>
    %46 = vector.shape_cast %45 : vector<1x1x56x96xf32> to vector<56x96xf32>
    %c2_57 = arith.constant 2 : index
    %c0_58 = arith.constant 0 : index
    %c0_59 = arith.constant 0 : index
    %47 = vector.load %arg2[%c2_57, %c0_58, %c0_59] : memref<5x96x256xf32, #tpu.memory_space<vmem>>, vector<1x96x256xf32>
    %48 = vector.shape_cast %47 : vector<1x96x256xf32> to vector<96x256xf32>
    %cst_60 = arith.constant dense<0.000000e+00> : vector<56x256xf32>
    %49 = tpu.matmul %46, %48, %cst_60 {dimension_numbers = #tpu.dot_dimension_numbers<[1], [0], [0], [1], [0, 0, 1, 1], [], []>} : vector<56x96xf32>, vector<96x256xf32>, vector<56x256xf32> -> vector<56x256xf32>
    %50 = arith.addf %44, %49 : vector<56x256xf32>
    %c0_61 = arith.constant 0 : index
    %c4_62 = arith.constant 4 : index
    %c0_63 = arith.constant 0 : index
    %c0_64 = arith.constant 0 : index
    %51 = vector.load %arg1[%c0_61, %c4_62, %c0_63, %c0_64] : memref<1x8x56x96xf32, #tpu.memory_space<vmem>>, vector<1x1x56x96xf32>
    %52 = vector.shape_cast %51 : vector<1x1x56x96xf32> to vector<56x96xf32>
    %c3_65 = arith.constant 3 : index
    %c0_66 = arith.constant 0 : index
    %c0_67 = arith.constant 0 : index
    %53 = vector.load %arg2[%c3_65, %c0_66, %c0_67] : memref<5x96x256xf32, #tpu.memory_space<vmem>>, vector<1x96x256xf32>
    %54 = vector.shape_cast %53 : vector<1x96x256xf32> to vector<96x256xf32>
    %cst_68 = arith.constant dense<0.000000e+00> : vector<56x256xf32>
    %55 = tpu.matmul %52, %54, %cst_68 {dimension_numbers = #tpu.dot_dimension_numbers<[1], [0], [0], [1], [0, 0, 1, 1], [], []>} : vector<56x96xf32>, vector<96x256xf32>, vector<56x256xf32> -> vector<56x256xf32>
    %56 = arith.addf %50, %55 : vector<56x256xf32>
    %c0_69 = arith.constant 0 : index
    %c5 = arith.constant 5 : index
    %c0_70 = arith.constant 0 : index
    %c0_71 = arith.constant 0 : index
    %57 = vector.load %arg1[%c0_69, %c5, %c0_70, %c0_71] : memref<1x8x56x96xf32, #tpu.memory_space<vmem>>, vector<1x1x56x96xf32>
    %58 = vector.shape_cast %57 : vector<1x1x56x96xf32> to vector<56x96xf32>
    %c4_72 = arith.constant 4 : index
    %c0_73 = arith.constant 0 : index
    %c0_74 = arith.constant 0 : index
    %59 = vector.load %arg2[%c4_72, %c0_73, %c0_74] : memref<5x96x256xf32, #tpu.memory_space<vmem>>, vector<1x96x256xf32>
    %60 = vector.shape_cast %59 : vector<1x96x256xf32> to vector<96x256xf32>
    %cst_75 = arith.constant dense<0.000000e+00> : vector<56x256xf32>
    %61 = tpu.matmul %58, %60, %cst_75 {dimension_numbers = #tpu.dot_dimension_numbers<[1], [0], [0], [1], [0, 0, 1, 1], [], []>} : vector<56x96xf32>, vector<96x256xf32>, vector<56x256xf32> -> vector<56x256xf32>
    %62 = arith.addf %56, %61 : vector<56x256xf32>
    %63 = vector.extract_strided_slice %62 {offsets = [0, 0], sizes = [56, 128], strides = [1, 1]} : vector<56x256xf32> to vector<56x128xf32>
    %64 = vector.extract_strided_slice %62 {offsets = [0, 128], sizes = [56, 128], strides = [1, 1]} : vector<56x256xf32> to vector<56x128xf32>
    %65 = arith.maximumf %63, %64 : vector<56x128xf32>
    %66 = arith.maximumf %33, %65 : vector<56x128xf32>
    %67 = vector.broadcast %1 : vector<1x128xf32> to vector<56x128xf32>
    %68 = arith.addf %66, %67 : vector<56x128xf32>
    %cst_76 = arith.constant 0.000000e+00 : f32
    %69 = vector.broadcast %cst_76 : f32 to vector<56x128xf32>
    %70 = arith.maximumf %68, %69 : vector<56x128xf32>
    %c0_77 = arith.constant 0 : index
    %c0_78 = arith.constant 0 : index
    %c0_79 = arith.constant 0 : index
    %71 = vector.load %arg9[%c0_77, %c0_78, %c0_79] : memref<2x64x128xf32, #tpu.memory_space<vmem>>, vector<1x56x128xf32>
    %72 = vector.shape_cast %71 : vector<1x56x128xf32> to vector<56x128xf32>
    %73 = vector.shape_cast %70 : vector<56x128xf32> to vector<1x56x128xf32>
    tpu.vector_store %arg9[%c0_77, %c0_78, %c0_79], %73 {strides = array<i32>} : memref<2x64x128xf32, #tpu.memory_space<vmem>>, vector<1x56x128xf32>,
    %c0_80 = arith.constant 0 : index
    %c56 = arith.constant 56 : index
    %c0_81 = arith.constant 0 : index
    %74 = vector.load %arg9[%c0_80, %c56, %c0_81] : memref<2x64x128xf32, #tpu.memory_space<vmem>>, vector<1x8x128xf32>
    %75 = vector.shape_cast %74 : vector<1x8x128xf32> to vector<8x128xf32>
    %76 = vector.shape_cast %0 : vector<8x128xf32> to vector<1x8x128xf32>
    tpu.vector_store %arg9[%c0_80, %c56, %c0_81], %76 {strides = array<i32>} : memref<2x64x128xf32, #tpu.memory_space<vmem>>, vector<1x8x128xf32>,
    %c0_82 = arith.constant 0 : index
    %c2_83 = arith.constant 2 : index
    %c0_84 = arith.constant 0 : index
    %c0_85 = arith.constant 0 : index
    %77 = vector.load %arg1[%c0_82, %c2_83, %c0_84, %c0_85] : memref<1x8x56x96xf32, #tpu.memory_space<vmem>>, vector<1x1x56x96xf32>
    %78 = vector.shape_cast %77 : vector<1x1x56x96xf32> to vector<56x96xf32>
    %c0_86 = arith.constant 0 : index
    %c0_87 = arith.constant 0 : index
    %c0_88 = arith.constant 0 : index
    %79 = vector.load %arg2[%c0_86, %c0_87, %c0_88] : memref<5x96x256xf32, #tpu.memory_space<vmem>>, vector<1x96x256xf32>
    %80 = vector.shape_cast %79 : vector<1x96x256xf32> to vector<96x256xf32>
    %cst_89 = arith.constant dense<0.000000e+00> : vector<56x256xf32>
    %81 = tpu.matmul %78, %80, %cst_89 {dimension_numbers = #tpu.dot_dimension_numbers<[1], [0], [0], [1], [0, 0, 1, 1], [], []>} : vector<56x96xf32>, vector<96x256xf32>, vector<56x256xf32> -> vector<56x256xf32>
    %c0_90 = arith.constant 0 : index
    %c3_91 = arith.constant 3 : index
    %c0_92 = arith.constant 0 : index
    %c0_93 = arith.constant 0 : index
    %82 = vector.load %arg1[%c0_90, %c3_91, %c0_92, %c0_93] : memref<1x8x56x96xf32, #tpu.memory_space<vmem>>, vector<1x1x56x96xf32>
    %83 = vector.shape_cast %82 : vector<1x1x56x96xf32> to vector<56x96xf32>
    %c1_94 = arith.constant 1 : index
    %c0_95 = arith.constant 0 : index
    %c0_96 = arith.constant 0 : index
    %84 = vector.load %arg2[%c1_94, %c0_95, %c0_96] : memref<5x96x256xf32, #tpu.memory_space<vmem>>, vector<1x96x256xf32>
    %85 = vector.shape_cast %84 : vector<1x96x256xf32> to vector<96x256xf32>
    %cst_97 = arith.constant dense<0.000000e+00> : vector<56x256xf32>
    %86 = tpu.matmul %83, %85, %cst_97 {dimension_numbers = #tpu.dot_dimension_numbers<[1], [0], [0], [1], [0, 0, 1, 1], [], []>} : vector<56x96xf32>, vector<96x256xf32>, vector<56x256xf32> -> vector<56x256xf32>
    %87 = arith.addf %81, %86 : vector<56x256xf32>
    %c0_98 = arith.constant 0 : index
    %c4_99 = arith.constant 4 : index
    %c0_100 = arith.constant 0 : index
    %c0_101 = arith.constant 0 : index
    %88 = vector.load %arg1[%c0_98, %c4_99, %c0_100, %c0_101] : memref<1x8x56x96xf32, #tpu.memory_space<vmem>>, vector<1x1x56x96xf32>
    %89 = vector.shape_cast %88 : vector<1x1x56x96xf32> to vector<56x96xf32>
    %c2_102 = arith.constant 2 : index
    %c0_103 = arith.constant 0 : index
    %c0_104 = arith.constant 0 : index
    %90 = vector.load %arg2[%c2_102, %c0_103, %c0_104] : memref<5x96x256xf32, #tpu.memory_space<vmem>>, vector<1x96x256xf32>
    %91 = vector.shape_cast %90 : vector<1x96x256xf32> to vector<96x256xf32>
    %cst_105 = arith.constant dense<0.000000e+00> : vector<56x256xf32>
    %92 = tpu.matmul %89, %91, %cst_105 {dimension_numbers = #tpu.dot_dimension_numbers<[1], [0], [0], [1], [0, 0, 1, 1], [], []>} : vector<56x96xf32>, vector<96x256xf32>, vector<56x256xf32> -> vector<56x256xf32>
    %93 = arith.addf %87, %92 : vector<56x256xf32>
    %c0_106 = arith.constant 0 : index
    %c5_107 = arith.constant 5 : index
    %c0_108 = arith.constant 0 : index
    %c0_109 = arith.constant 0 : index
    %94 = vector.load %arg1[%c0_106, %c5_107, %c0_108, %c0_109] : memref<1x8x56x96xf32, #tpu.memory_space<vmem>>, vector<1x1x56x96xf32>
    %95 = vector.shape_cast %94 : vector<1x1x56x96xf32> to vector<56x96xf32>
    %c3_110 = arith.constant 3 : index
    %c0_111 = arith.constant 0 : index
    %c0_112 = arith.constant 0 : index
    %96 = vector.load %arg2[%c3_110, %c0_111, %c0_112] : memref<5x96x256xf32, #tpu.memory_space<vmem>>, vector<1x96x256xf32>
    %97 = vector.shape_cast %96 : vector<1x96x256xf32> to vector<96x256xf32>
    %cst_113 = arith.constant dense<0.000000e+00> : vector<56x256xf32>
    %98 = tpu.matmul %95, %97, %cst_113 {dimension_numbers = #tpu.dot_dimension_numbers<[1], [0], [0], [1], [0, 0, 1, 1], [], []>} : vector<56x96xf32>, vector<96x256xf32>, vector<56x256xf32> -> vector<56x256xf32>
    %99 = arith.addf %93, %98 : vector<56x256xf32>
    %c0_114 = arith.constant 0 : index
    %c6 = arith.constant 6 : index
    %c0_115 = arith.constant 0 : index
    %c0_116 = arith.constant 0 : index
    %100 = vector.load %arg1[%c0_114, %c6, %c0_115, %c0_116] : memref<1x8x56x96xf32, #tpu.memory_space<vmem>>, vector<1x1x56x96xf32>
    %101 = vector.shape_cast %100 : vector<1x1x56x96xf32> to vector<56x96xf32>
    %c4_117 = arith.constant 4 : index
    %c0_118 = arith.constant 0 : index
    %c0_119 = arith.constant 0 : index
    %102 = vector.load %arg2[%c4_117, %c0_118, %c0_119] : memref<5x96x256xf32, #tpu.memory_space<vmem>>, vector<1x96x256xf32>
    %103 = vector.shape_cast %102 : vector<1x96x256xf32> to vector<96x256xf32>
    %cst_120 = arith.constant dense<0.000000e+00> : vector<56x256xf32>
    %104 = tpu.matmul %101, %103, %cst_120 {dimension_numbers = #tpu.dot_dimension_numbers<[1], [0], [0], [1], [0, 0, 1, 1], [], []>} : vector<56x96xf32>, vector<96x256xf32>, vector<56x256xf32> -> vector<56x256xf32>
    %105 = arith.addf %99, %104 : vector<56x256xf32>
    %106 = vector.extract_strided_slice %105 {offsets = [0, 0], sizes = [56, 128], strides = [1, 1]} : vector<56x256xf32> to vector<56x128xf32>
    %107 = vector.extract_strided_slice %105 {offsets = [0, 128], sizes = [56, 128], strides = [1, 1]} : vector<56x256xf32> to vector<56x128xf32>
    %108 = arith.maximumf %106, %107 : vector<56x128xf32>
    %c0_121 = arith.constant 0 : index
    %c3_122 = arith.constant 3 : index
    %c0_123 = arith.constant 0 : index
    %c0_124 = arith.constant 0 : index
    %109 = vector.load %arg1[%c0_121, %c3_122, %c0_123, %c0_124] : memref<1x8x56x96xf32, #tpu.memory_space<vmem>>, vector<1x1x56x96xf32>
    %110 = vector.shape_cast %109 : vector<1x1x56x96xf32> to vector<56x96xf32>
    %c0_125 = arith.constant 0 : index
    %c0_126 = arith.constant 0 : index
    %c0_127 = arith.constant 0 : index
    %111 = vector.load %arg2[%c0_125, %c0_126, %c0_127] : memref<5x96x256xf32, #tpu.memory_space<vmem>>, vector<1x96x256xf32>
    %112 = vector.shape_cast %111 : vector<1x96x256xf32> to vector<96x256xf32>
    %cst_128 = arith.constant dense<0.000000e+00> : vector<56x256xf32>
    %113 = tpu.matmul %110, %112, %cst_128 {dimension_numbers = #tpu.dot_dimension_numbers<[1], [0], [0], [1], [0, 0, 1, 1], [], []>} : vector<56x96xf32>, vector<96x256xf32>, vector<56x256xf32> -> vector<56x256xf32>
    %c0_129 = arith.constant 0 : index
    %c4_130 = arith.constant 4 : index
    %c0_131 = arith.constant 0 : index
    %c0_132 = arith.constant 0 : index
    %114 = vector.load %arg1[%c0_129, %c4_130, %c0_131, %c0_132] : memref<1x8x56x96xf32, #tpu.memory_space<vmem>>, vector<1x1x56x96xf32>
    %115 = vector.shape_cast %114 : vector<1x1x56x96xf32> to vector<56x96xf32>
    %c1_133 = arith.constant 1 : index
    %c0_134 = arith.constant 0 : index
    %c0_135 = arith.constant 0 : index
    %116 = vector.load %arg2[%c1_133, %c0_134, %c0_135] : memref<5x96x256xf32, #tpu.memory_space<vmem>>, vector<1x96x256xf32>
    %117 = vector.shape_cast %116 : vector<1x96x256xf32> to vector<96x256xf32>
    %cst_136 = arith.constant dense<0.000000e+00> : vector<56x256xf32>
    %118 = tpu.matmul %115, %117, %cst_136 {dimension_numbers = #tpu.dot_dimension_numbers<[1], [0], [0], [1], [0, 0, 1, 1], [], []>} : vector<56x96xf32>, vector<96x256xf32>, vector<56x256xf32> -> vector<56x256xf32>
    %119 = arith.addf %113, %118 : vector<56x256xf32>
    %c0_137 = arith.constant 0 : index
    %c5_138 = arith.constant 5 : index
    %c0_139 = arith.constant 0 : index
    %c0_140 = arith.constant 0 : index
    %120 = vector.load %arg1[%c0_137, %c5_138, %c0_139, %c0_140] : memref<1x8x56x96xf32, #tpu.memory_space<vmem>>, vector<1x1x56x96xf32>
    %121 = vector.shape_cast %120 : vector<1x1x56x96xf32> to vector<56x96xf32>
    %c2_141 = arith.constant 2 : index
    %c0_142 = arith.constant 0 : index
    %c0_143 = arith.constant 0 : index
    %122 = vector.load %arg2[%c2_141, %c0_142, %c0_143] : memref<5x96x256xf32, #tpu.memory_space<vmem>>, vector<1x96x256xf32>
    %123 = vector.shape_cast %122 : vector<1x96x256xf32> to vector<96x256xf32>
    %cst_144 = arith.constant dense<0.000000e+00> : vector<56x256xf32>
    %124 = tpu.matmul %121, %123, %cst_144 {dimension_numbers = #tpu.dot_dimension_numbers<[1], [0], [0], [1], [0, 0, 1, 1], [], []>} : vector<56x96xf32>, vector<96x256xf32>, vector<56x256xf32> -> vector<56x256xf32>
    %125 = arith.addf %119, %124 : vector<56x256xf32>
    %c0_145 = arith.constant 0 : index
    %c6_146 = arith.constant 6 : index
    %c0_147 = arith.constant 0 : index
    %c0_148 = arith.constant 0 : index
    %126 = vector.load %arg1[%c0_145, %c6_146, %c0_147, %c0_148] : memref<1x8x56x96xf32, #tpu.memory_space<vmem>>, vector<1x1x56x96xf32>
    %127 = vector.shape_cast %126 : vector<1x1x56x96xf32> to vector<56x96xf32>
    %c3_149 = arith.constant 3 : index
    %c0_150 = arith.constant 0 : index
    %c0_151 = arith.constant 0 : index
    %128 = vector.load %arg2[%c3_149, %c0_150, %c0_151] : memref<5x96x256xf32, #tpu.memory_space<vmem>>, vector<1x96x256xf32>
    %129 = vector.shape_cast %128 : vector<1x96x256xf32> to vector<96x256xf32>
    %cst_152 = arith.constant dense<0.000000e+00> : vector<56x256xf32>
    %130 = tpu.matmul %127, %129, %cst_152 {dimension_numbers = #tpu.dot_dimension_numbers<[1], [0], [0], [1], [0, 0, 1, 1], [], []>} : vector<56x96xf32>, vector<96x256xf32>, vector<56x256xf32> -> vector<56x256xf32>
    %131 = arith.addf %125, %130 : vector<56x256xf32>
    %c0_153 = arith.constant 0 : index
    %c7 = arith.constant 7 : index
    %c0_154 = arith.constant 0 : index
    %c0_155 = arith.constant 0 : index
    %132 = vector.load %arg1[%c0_153, %c7, %c0_154, %c0_155] : memref<1x8x56x96xf32, #tpu.memory_space<vmem>>, vector<1x1x56x96xf32>
    %133 = vector.shape_cast %132 : vector<1x1x56x96xf32> to vector<56x96xf32>
    %c4_156 = arith.constant 4 : index
    %c0_157 = arith.constant 0 : index
    %c0_158 = arith.constant 0 : index
    %134 = vector.load %arg2[%c4_156, %c0_157, %c0_158] : memref<5x96x256xf32, #tpu.memory_space<vmem>>, vector<1x96x256xf32>
    %135 = vector.shape_cast %134 : vector<1x96x256xf32> to vector<96x256xf32>
    %cst_159 = arith.constant dense<0.000000e+00> : vector<56x256xf32>
    %136 = tpu.matmul %133, %135, %cst_159 {dimension_numbers = #tpu.dot_dimension_numbers<[1], [0], [0], [1], [0, 0, 1, 1], [], []>} : vector<56x96xf32>, vector<96x256xf32>, vector<56x256xf32> -> vector<56x256xf32>
    %137 = arith.addf %131, %136 : vector<56x256xf32>
    %138 = vector.extract_strided_slice %137 {offsets = [0, 0], sizes = [56, 128], strides = [1, 1]} : vector<56x256xf32> to vector<56x128xf32>
    %139 = vector.extract_strided_slice %137 {offsets = [0, 128], sizes = [56, 128], strides = [1, 1]} : vector<56x256xf32> to vector<56x128xf32>
    %140 = arith.maximumf %138, %139 : vector<56x128xf32>
    %141 = arith.maximumf %108, %140 : vector<56x128xf32>
    %142 = vector.broadcast %1 : vector<1x128xf32> to vector<56x128xf32>
    %143 = arith.addf %141, %142 : vector<56x128xf32>
    %cst_160 = arith.constant 0.000000e+00 : f32
    %144 = vector.broadcast %cst_160 : f32 to vector<56x128xf32>
    %145 = arith.maximumf %143, %144 : vector<56x128xf32>
    %c1_161 = arith.constant 1 : index
    %c0_162 = arith.constant 0 : index
    %c0_163 = arith.constant 0 : index
    %146 = vector.load %arg9[%c1_161, %c0_162, %c0_163] : memref<2x64x128xf32, #tpu.memory_space<vmem>>, vector<1x56x128xf32>
    %147 = vector.shape_cast %146 : vector<1x56x128xf32> to vector<56x128xf32>
    %148 = vector.shape_cast %145 : vector<56x128xf32> to vector<1x56x128xf32>
    tpu.vector_store %arg9[%c1_161, %c0_162, %c0_163], %148 {strides = array<i32>} : memref<2x64x128xf32, #tpu.memory_space<vmem>>, vector<1x56x128xf32>,
    %c1_164 = arith.constant 1 : index
    %c56_165 = arith.constant 56 : index
    %c0_166 = arith.constant 0 : index
    %149 = vector.load %arg9[%c1_164, %c56_165, %c0_166] : memref<2x64x128xf32, #tpu.memory_space<vmem>>, vector<1x8x128xf32>
    %150 = vector.shape_cast %149 : vector<1x8x128xf32> to vector<8x128xf32>
    %151 = vector.shape_cast %0 : vector<8x128xf32> to vector<1x8x128xf32>
    tpu.vector_store %arg9[%c1_164, %c56_165, %c0_166], %151 {strides = array<i32>} : memref<2x64x128xf32, #tpu.memory_space<vmem>>, vector<1x8x128xf32>,
    %c1_167 = arith.constant 1 : index
    %c0_168 = arith.constant 0 : index
    %152 = vector.load %arg7[%c1_167, %c0_168] : memref<5x128xf32, #tpu.memory_space<vmem>>, vector<1x128xf32>
    %c0_169 = arith.constant 0 : index
    %c0_170 = arith.constant 0 : index
    %c0_171 = arith.constant 0 : index
    %153 = vector.load %arg9[%c0_169, %c0_170, %c0_171] : memref<2x64x128xf32, #tpu.memory_space<vmem>>, vector<1x56x128xf32>
    %154 = vector.shape_cast %153 : vector<1x56x128xf32> to vector<56x128xf32>
    %c0_172 = arith.constant 0 : index
    %c0_173 = arith.constant 0 : index
    %c0_174 = arith.constant 0 : index
    %155 = vector.load %arg3[%c0_172, %c0_173, %c0_174] : memref<5x128x256xf32, #tpu.memory_space<vmem>>, vector<1x128x256xf32>
    %156 = vector.shape_cast %155 : vector<1x128x256xf32> to vector<128x256xf32>
    %cst_175 = arith.constant dense<0.000000e+00> : vector<56x256xf32>
    %157 = tpu.matmul %154, %156, %cst_175 {dimension_numbers = #tpu.dot_dimension_numbers<[1], [0], [0], [1], [0, 0, 1, 1], [], []>} : vector<56x128xf32>, vector<128x256xf32>, vector<56x256xf32> -> vector<56x256xf32>
    %c1_176 = arith.constant 1 : index
    %c0_177 = arith.constant 0 : index
    %c0_178 = arith.constant 0 : index
    %158 = vector.load %arg9[%c1_176, %c0_177, %c0_178] : memref<2x64x128xf32, #tpu.memory_space<vmem>>, vector<1x56x128xf32>
    %159 = vector.shape_cast %158 : vector<1x56x128xf32> to vector<56x128xf32>
    %c1_179 = arith.constant 1 : index
    %c0_180 = arith.constant 0 : index
    %c0_181 = arith.constant 0 : index
    %160 = vector.load %arg3[%c1_179, %c0_180, %c0_181] : memref<5x128x256xf32, #tpu.memory_space<vmem>>, vector<1x128x256xf32>
    %161 = vector.shape_cast %160 : vector<1x128x256xf32> to vector<128x256xf32>
    %cst_182 = arith.constant dense<0.000000e+00> : vector<56x256xf32>
    %162 = tpu.matmul %159, %161, %cst_182 {dimension_numbers = #tpu.dot_dimension_numbers<[1], [0], [0], [1], [0, 0, 1, 1], [], []>} : vector<56x128xf32>, vector<128x256xf32>, vector<56x256xf32> -> vector<56x256xf32>
    %163 = arith.addf %157, %162 : vector<56x256xf32>
    %c0_183 = arith.constant 0 : index
    %c1_184 = arith.constant 1 : index
    %c0_185 = arith.constant 0 : index
    %164 = vector.load %arg9[%c0_183, %c1_184, %c0_185] : memref<2x64x128xf32, #tpu.memory_space<vmem>>, vector<1x56x128xf32>
    %165 = vector.shape_cast %164 : vector<1x56x128xf32> to vector<56x128xf32>
    %c2_186 = arith.constant 2 : index
    %c0_187 = arith.constant 0 : index
    %c0_188 = arith.constant 0 : index
    %166 = vector.load %arg3[%c2_186, %c0_187, %c0_188] : memref<5x128x256xf32, #tpu.memory_space<vmem>>, vector<1x128x256xf32>
    %167 = vector.shape_cast %166 : vector<1x128x256xf32> to vector<128x256xf32>
    %cst_189 = arith.constant dense<0.000000e+00> : vector<56x256xf32>
    %168 = tpu.matmul %165, %167, %cst_189 {dimension_numbers = #tpu.dot_dimension_numbers<[1], [0], [0], [1], [0, 0, 1, 1], [], []>} : vector<56x128xf32>, vector<128x256xf32>, vector<56x256xf32> -> vector<56x256xf32>
    %169 = arith.addf %163, %168 : vector<56x256xf32>
    %c1_190 = arith.constant 1 : index
    %c1_191 = arith.constant 1 : index
    %c0_192 = arith.constant 0 : index
    %170 = vector.load %arg9[%c1_190, %c1_191, %c0_192] : memref<2x64x128xf32, #tpu.memory_space<vmem>>, vector<1x56x128xf32>
    %171 = vector.shape_cast %170 : vector<1x56x128xf32> to vector<56x128xf32>
    %c3_193 = arith.constant 3 : index
    %c0_194 = arith.constant 0 : index
    %c0_195 = arith.constant 0 : index
    %172 = vector.load %arg3[%c3_193, %c0_194, %c0_195] : memref<5x128x256xf32, #tpu.memory_space<vmem>>, vector<1x128x256xf32>
    %173 = vector.shape_cast %172 : vector<1x128x256xf32> to vector<128x256xf32>
    %cst_196 = arith.constant dense<0.000000e+00> : vector<56x256xf32>
    %174 = tpu.matmul %171, %173, %cst_196 {dimension_numbers = #tpu.dot_dimension_numbers<[1], [0], [0], [1], [0, 0, 1, 1], [], []>} : vector<56x128xf32>, vector<128x256xf32>, vector<56x256xf32> -> vector<56x256xf32>
    %175 = arith.addf %169, %174 : vector<56x256xf32>
    %c0_197 = arith.constant 0 : index
    %c2_198 = arith.constant 2 : index
    %c0_199 = arith.constant 0 : index
    %176 = vector.load %arg9[%c0_197, %c2_198, %c0_199] : memref<2x64x128xf32, #tpu.memory_space<vmem>>, vector<1x56x128xf32>
    %177 = vector.shape_cast %176 : vector<1x56x128xf32> to vector<56x128xf32>
    %c4_200 = arith.constant 4 : index
    %c0_201 = arith.constant 0 : index
    %c0_202 = arith.constant 0 : index
    %178 = vector.load %arg3[%c4_200, %c0_201, %c0_202] : memref<5x128x256xf32, #tpu.memory_space<vmem>>, vector<1x128x256xf32>
    %179 = vector.shape_cast %178 : vector<1x128x256xf32> to vector<128x256xf32>
    %cst_203 = arith.constant dense<0.000000e+00> : vector<56x256xf32>
    %180 = tpu.matmul %177, %179, %cst_203 {dimension_numbers = #tpu.dot_dimension_numbers<[1], [0], [0], [1], [0, 0, 1, 1], [], []>} : vector<56x128xf32>, vector<128x256xf32>, vector<56x256xf32> -> vector<56x256xf32>
    %181 = arith.addf %175, %180 : vector<56x256xf32>
    %182 = vector.extract_strided_slice %181 {offsets = [0, 0], sizes = [56, 128], strides = [1, 1]} : vector<56x256xf32> to vector<56x128xf32>
    %183 = vector.extract_strided_slice %181 {offsets = [0, 128], sizes = [56, 128], strides = [1, 1]} : vector<56x256xf32> to vector<56x128xf32>
    %184 = arith.maximumf %182, %183 : vector<56x128xf32>
    %c1_204 = arith.constant 1 : index
    %c0_205 = arith.constant 0 : index
    %c0_206 = arith.constant 0 : index
    %185 = vector.load %arg9[%c1_204, %c0_205, %c0_206] : memref<2x64x128xf32, #tpu.memory_space<vmem>>, vector<1x56x128xf32>
    %186 = vector.shape_cast %185 : vector<1x56x128xf32> to vector<56x128xf32>
    %c0_207 = arith.constant 0 : index
    %c0_208 = arith.constant 0 : index
    %c0_209 = arith.constant 0 : index
    %187 = vector.load %arg3[%c0_207, %c0_208, %c0_209] : memref<5x128x256xf32, #tpu.memory_space<vmem>>, vector<1x128x256xf32>
    %188 = vector.shape_cast %187 : vector<1x128x256xf32> to vector<128x256xf32>
    %cst_210 = arith.constant dense<0.000000e+00> : vector<56x256xf32>
    %189 = tpu.matmul %186, %188, %cst_210 {dimension_numbers = #tpu.dot_dimension_numbers<[1], [0], [0], [1], [0, 0, 1, 1], [], []>} : vector<56x128xf32>, vector<128x256xf32>, vector<56x256xf32> -> vector<56x256xf32>
    %c0_211 = arith.constant 0 : index
    %c1_212 = arith.constant 1 : index
    %c0_213 = arith.constant 0 : index
    %190 = vector.load %arg9[%c0_211, %c1_212, %c0_213] : memref<2x64x128xf32, #tpu.memory_space<vmem>>, vector<1x56x128xf32>
    %191 = vector.shape_cast %190 : vector<1x56x128xf32> to vector<56x128xf32>
    %c1_214 = arith.constant 1 : index
    %c0_215 = arith.constant 0 : index
    %c0_216 = arith.constant 0 : index
    %192 = vector.load %arg3[%c1_214, %c0_215, %c0_216] : memref<5x128x256xf32, #tpu.memory_space<vmem>>, vector<1x128x256xf32>
    %193 = vector.shape_cast %192 : vector<1x128x256xf32> to vector<128x256xf32>
    %cst_217 = arith.constant dense<0.000000e+00> : vector<56x256xf32>
    %194 = tpu.matmul %191, %193, %cst_217 {dimension_numbers = #tpu.dot_dimension_numbers<[1], [0], [0], [1], [0, 0, 1, 1], [], []>} : vector<56x128xf32>, vector<128x256xf32>, vector<56x256xf32> -> vector<56x256xf32>
    %195 = arith.addf %189, %194 : vector<56x256xf32>
    %c1_218 = arith.constant 1 : index
    %c1_219 = arith.constant 1 : index
    %c0_220 = arith.constant 0 : index
    %196 = vector.load %arg9[%c1_218, %c1_219, %c0_220] : memref<2x64x128xf32, #tpu.memory_space<vmem>>, vector<1x56x128xf32>
    %197 = vector.shape_cast %196 : vector<1x56x128xf32> to vector<56x128xf32>
    %c2_221 = arith.constant 2 : index
    %c0_222 = arith.constant 0 : index
    %c0_223 = arith.constant 0 : index
    %198 = vector.load %arg3[%c2_221, %c0_222, %c0_223] : memref<5x128x256xf32, #tpu.memory_space<vmem>>, vector<1x128x256xf32>
    %199 = vector.shape_cast %198 : vector<1x128x256xf32> to vector<128x256xf32>
    %cst_224 = arith.constant dense<0.000000e+00> : vector<56x256xf32>
    %200 = tpu.matmul %197, %199, %cst_224 {dimension_numbers = #tpu.dot_dimension_numbers<[1], [0], [0], [1], [0, 0, 1, 1], [], []>} : vector<56x128xf32>, vector<128x256xf32>, vector<56x256xf32> -> vector<56x256xf32>
    %201 = arith.addf %195, %200 : vector<56x256xf32>
    %c0_225 = arith.constant 0 : index
    %c2_226 = arith.constant 2 : index
    %c0_227 = arith.constant 0 : index
    %202 = vector.load %arg9[%c0_225, %c2_226, %c0_227] : memref<2x64x128xf32, #tpu.memory_space<vmem>>, vector<1x56x128xf32>
    %203 = vector.shape_cast %202 : vector<1x56x128xf32> to vector<56x128xf32>
    %c3_228 = arith.constant 3 : index
    %c0_229 = arith.constant 0 : index
    %c0_230 = arith.constant 0 : index
    %204 = vector.load %arg3[%c3_228, %c0_229, %c0_230] : memref<5x128x256xf32, #tpu.memory_space<vmem>>, vector<1x128x256xf32>
    %205 = vector.shape_cast %204 : vector<1x128x256xf32> to vector<128x256xf32>
    %cst_231 = arith.constant dense<0.000000e+00> : vector<56x256xf32>
    %206 = tpu.matmul %203, %205, %cst_231 {dimension_numbers = #tpu.dot_dimension_numbers<[1], [0], [0], [1], [0, 0, 1, 1], [], []>} : vector<56x128xf32>, vector<128x256xf32>, vector<56x256xf32> -> vector<56x256xf32>
    %207 = arith.addf %201, %206 : vector<56x256xf32>
    %c1_232 = arith.constant 1 : index
    %c2_233 = arith.constant 2 : index
    %c0_234 = arith.constant 0 : index
    %208 = vector.load %arg9[%c1_232, %c2_233, %c0_234] : memref<2x64x128xf32, #tpu.memory_space<vmem>>, vector<1x56x128xf32>
    %209 = vector.shape_cast %208 : vector<1x56x128xf32> to vector<56x128xf32>
    %c4_235 = arith.constant 4 : index
    %c0_236 = arith.constant 0 : index
    %c0_237 = arith.constant 0 : index
    %210 = vector.load %arg3[%c4_235, %c0_236, %c0_237] : memref<5x128x256xf32, #tpu.memory_space<vmem>>, vector<1x128x256xf32>
    %211 = vector.shape_cast %210 : vector<1x128x256xf32> to vector<128x256xf32>
    %cst_238 = arith.constant dense<0.000000e+00> : vector<56x256xf32>
    %212 = tpu.matmul %209, %211, %cst_238 {dimension_numbers = #tpu.dot_dimension_numbers<[1], [0], [0], [1], [0, 0, 1, 1], [], []>} : vector<56x128xf32>, vector<128x256xf32>, vector<56x256xf32> -> vector<56x256xf32>
    %213 = arith.addf %207, %212 : vector<56x256xf32>
    %214 = vector.extract_strided_slice %213 {offsets = [0, 0], sizes = [56, 128], strides = [1, 1]} : vector<56x256xf32> to vector<56x128xf32>
    %215 = vector.extract_strided_slice %213 {offsets = [0, 128], sizes = [56, 128], strides = [1, 1]} : vector<56x256xf32> to vector<56x128xf32>
    %216 = arith.maximumf %214, %215 : vector<56x128xf32>
    %217 = arith.maximumf %184, %216 : vector<56x128xf32>
    %218 = vector.broadcast %152 : vector<1x128xf32> to vector<56x128xf32>
    %219 = arith.addf %217, %218 : vector<56x128xf32>
    %cst_239 = arith.constant 0.000000e+00 : f32
    %220 = vector.broadcast %cst_239 : f32 to vector<56x128xf32>
    %221 = arith.maximumf %219, %220 : vector<56x128xf32>
    %c0_240 = arith.constant 0 : index
    %c0_241 = arith.constant 0 : index
    %222 = vector.load %arg10[%c0_240, %c0_241] : memref<64x128xf32, #tpu.memory_space<vmem>>, vector<56x128xf32>
    tpu.vector_store %arg10[%c0_240, %c0_241], %221 {strides = array<i32>} : memref<64x128xf32, #tpu.memory_space<vmem>>, vector<56x128xf32>,
    %c56_242 = arith.constant 56 : index
    %c0_243 = arith.constant 0 : index
    %223 = vector.load %arg10[%c56_242, %c0_243] : memref<64x128xf32, #tpu.memory_space<vmem>>, vector<8x128xf32>
    tpu.vector_store %arg10[%c56_242, %c0_243], %0 {strides = array<i32>} : memref<64x128xf32, #tpu.memory_space<vmem>>, vector<8x128xf32>,
    %c0_244 = arith.constant 0 : index
    %c0_245 = arith.constant 0 : index
    %224 = vector.load %arg10[%c0_244, %c0_245] : memref<64x128xf32, #tpu.memory_space<vmem>>, vector<56x128xf32>
    %c0_246 = arith.constant 0 : index
    %c0_247 = arith.constant 0 : index
    %c0_248 = arith.constant 0 : index
    %225 = vector.load %arg4[%c0_246, %c0_247, %c0_248] : memref<5x128x128xf32, #tpu.memory_space<vmem>>, vector<1x128x128xf32>
    %226 = vector.shape_cast %225 : vector<1x128x128xf32> to vector<128x128xf32>
    %cst_249 = arith.constant dense<0.000000e+00> : vector<56x128xf32>
    %227 = tpu.matmul %224, %226, %cst_249 {dimension_numbers = #tpu.dot_dimension_numbers<[1], [0], [0], [1], [0, 0, 1, 1], [], []>} : vector<56x128xf32>, vector<128x128xf32>, vector<56x128xf32> -> vector<56x128xf32>
    %c1_250 = arith.constant 1 : index
    %c0_251 = arith.constant 0 : index
    %228 = vector.load %arg10[%c1_250, %c0_251] : memref<64x128xf32, #tpu.memory_space<vmem>>, vector<56x128xf32>
    %c1_252 = arith.constant 1 : index
    %c0_253 = arith.constant 0 : index
    %c0_254 = arith.constant 0 : index
    %229 = vector.load %arg4[%c1_252, %c0_253, %c0_254] : memref<5x128x128xf32, #tpu.memory_space<vmem>>, vector<1x128x128xf32>
    %230 = vector.shape_cast %229 : vector<1x128x128xf32> to vector<128x128xf32>
    %cst_255 = arith.constant dense<0.000000e+00> : vector<56x128xf32>
    %231 = tpu.matmul %228, %230, %cst_255 {dimension_numbers = #tpu.dot_dimension_numbers<[1], [0], [0], [1], [0, 0, 1, 1], [], []>} : vector<56x128xf32>, vector<128x128xf32>, vector<56x128xf32> -> vector<56x128xf32>
    %232 = arith.addf %227, %231 : vector<56x128xf32>
    %c2_256 = arith.constant 2 : index
    %c0_257 = arith.constant 0 : index
    %233 = vector.load %arg10[%c2_256, %c0_257] : memref<64x128xf32, #tpu.memory_space<vmem>>, vector<56x128xf32>
    %c2_258 = arith.constant 2 : index
    %c0_259 = arith.constant 0 : index
    %c0_260 = arith.constant 0 : index
    %234 = vector.load %arg4[%c2_258, %c0_259, %c0_260] : memref<5x128x128xf32, #tpu.memory_space<vmem>>, vector<1x128x128xf32>
    %235 = vector.shape_cast %234 : vector<1x128x128xf32> to vector<128x128xf32>
    %cst_261 = arith.constant dense<0.000000e+00> : vector<56x128xf32>
    %236 = tpu.matmul %233, %235, %cst_261 {dimension_numbers = #tpu.dot_dimension_numbers<[1], [0], [0], [1], [0, 0, 1, 1], [], []>} : vector<56x128xf32>, vector<128x128xf32>, vector<56x128xf32> -> vector<56x128xf32>
    %237 = arith.addf %232, %236 : vector<56x128xf32>
    %c3_262 = arith.constant 3 : index
    %c0_263 = arith.constant 0 : index
    %238 = vector.load %arg10[%c3_262, %c0_263] : memref<64x128xf32, #tpu.memory_space<vmem>>, vector<56x128xf32>
    %c3_264 = arith.constant 3 : index
    %c0_265 = arith.constant 0 : index
    %c0_266 = arith.constant 0 : index
    %239 = vector.load %arg4[%c3_264, %c0_265, %c0_266] : memref<5x128x128xf32, #tpu.memory_space<vmem>>, vector<1x128x128xf32>
    %240 = vector.shape_cast %239 : vector<1x128x128xf32> to vector<128x128xf32>
    %cst_267 = arith.constant dense<0.000000e+00> : vector<56x128xf32>
    %241 = tpu.matmul %238, %240, %cst_267 {dimension_numbers = #tpu.dot_dimension_numbers<[1], [0], [0], [1], [0, 0, 1, 1], [], []>} : vector<56x128xf32>, vector<128x128xf32>, vector<56x128xf32> -> vector<56x128xf32>
    %242 = arith.addf %237, %241 : vector<56x128xf32>
    %c4_268 = arith.constant 4 : index
    %c0_269 = arith.constant 0 : index
    %243 = vector.load %arg10[%c4_268, %c0_269] : memref<64x128xf32, #tpu.memory_space<vmem>>, vector<56x128xf32>
    %c4_270 = arith.constant 4 : index
    %c0_271 = arith.constant 0 : index
    %c0_272 = arith.constant 0 : index
    %244 = vector.load %arg4[%c4_270, %c0_271, %c0_272] : memref<5x128x128xf32, #tpu.memory_space<vmem>>, vector<1x128x128xf32>
    %245 = vector.shape_cast %244 : vector<1x128x128xf32> to vector<128x128xf32>
    %cst_273 = arith.constant dense<0.000000e+00> : vector<56x128xf32>
    %246 = tpu.matmul %243, %245, %cst_273 {dimension_numbers = #tpu.dot_dimension_numbers<[1], [0], [0], [1], [0, 0, 1, 1], [], []>} : vector<56x128xf32>, vector<128x128xf32>, vector<56x128xf32> -> vector<56x128xf32>
    %247 = arith.addf %242, %246 : vector<56x128xf32>
    %c2_274 = arith.constant 2 : index
    %c0_275 = arith.constant 0 : index
    %248 = vector.load %arg7[%c2_274, %c0_275] : memref<5x128xf32, #tpu.memory_space<vmem>>, vector<1x128xf32>
    %249 = vector.broadcast %248 : vector<1x128xf32> to vector<56x128xf32>
    %250 = arith.addf %247, %249 : vector<56x128xf32>
    %cst_276 = arith.constant 0.000000e+00 : f32
    %251 = vector.broadcast %cst_276 : f32 to vector<56x128xf32>
    %252 = arith.maximumf %250, %251 : vector<56x128xf32>
    %c0_277 = arith.constant 0 : index
    %c0_278 = arith.constant 0 : index
    %253 = vector.load %arg5[%c0_277, %c0_278] : memref<128x128xf32, #tpu.memory_space<vmem>>, vector<128x128xf32>
    %cst_279 = arith.constant dense<0.000000e+00> : vector<56x128xf32>
    %254 = tpu.matmul %252, %253, %cst_279 {dimension_numbers = #tpu.dot_dimension_numbers<[1], [0], [0], [1], [0, 0, 1, 1], [], []>} : vector<56x128xf32>, vector<128x128xf32>, vector<56x128xf32> -> vector<56x128xf32>
    %c3_280 = arith.constant 3 : index
    %c0_281 = arith.constant 0 : index
    %255 = vector.load %arg7[%c3_280, %c0_281] : memref<5x128xf32, #tpu.memory_space<vmem>>, vector<1x128xf32>
    %256 = vector.broadcast %255 : vector<1x128xf32> to vector<56x128xf32>
    %257 = arith.addf %254, %256 : vector<56x128xf32>
    %cst_282 = arith.constant 0.000000e+00 : f32
    %258 = vector.broadcast %cst_282 : f32 to vector<56x128xf32>
    %259 = arith.maximumf %257, %258 : vector<56x128xf32>
    %c0_283 = arith.constant 0 : index
    %c0_284 = arith.constant 0 : index
    %260 = vector.load %arg6[%c0_283, %c0_284] : memref<128x128xf32, #tpu.memory_space<vmem>>, vector<128x128xf32>
    %cst_285 = arith.constant dense<0.000000e+00> : vector<56x128xf32>
    %261 = tpu.matmul %259, %260, %cst_285 {dimension_numbers = #tpu.dot_dimension_numbers<[1], [0], [0], [1], [0, 0, 1, 1], [], []>} : vector<56x128xf32>, vector<128x128xf32>, vector<56x128xf32> -> vector<56x128xf32>
    %c4_286 = arith.constant 4 : index
    %c0_287 = arith.constant 0 : index
    %262 = vector.load %arg7[%c4_286, %c0_287] : memref<5x128xf32, #tpu.memory_space<vmem>>, vector<1x128xf32>
    %263 = vector.broadcast %262 : vector<1x128xf32> to vector<56x128xf32>
    %264 = arith.addf %261, %263 : vector<56x128xf32>
    %cst_288 = arith.constant 0.000000e+00 : f32
    %265 = vector.broadcast %cst_288 : f32 to vector<56x128xf32>
    %266 = arith.maximumf %264, %265 : vector<56x128xf32>
    %c0_289 = arith.constant 0 : index
    %c0_290 = arith.constant 0 : index
    %c0_291 = arith.constant 0 : index
    %267 = vector.load %arg8[%c0_289, %c0_290, %c0_291] : memref<1x56x128xf32, #tpu.memory_space<vmem>>, vector<1x56x128xf32>
    %268 = vector.shape_cast %267 : vector<1x56x128xf32> to vector<56x128xf32>
    %269 = vector.shape_cast %266 : vector<56x128xf32> to vector<1x56x128xf32>
    tpu.vector_store %arg8[%c0_289, %c0_290, %c0_291], %269 {strides = array<i32>} : memref<1x56x128xf32, #tpu.memory_space<vmem>>, vector<1x56x128xf32>,
    return
  }
  func.func @transform_0(%arg0: i32) -> (i32, i32, i32, i32) {
    %c0_i32 = arith.constant 0 : i32
    %c0_i32_0 = arith.constant 0 : i32
    %c0_i32_1 = arith.constant 0 : i32
    %c0_i32_2 = arith.constant 0 : i32
    return %arg0, %c0_i32, %c0_i32_0, %c0_i32_1 : i32, i32, i32, i32
  }
  func.func @transform_1(%arg0: i32) -> (i32, i32, i32) {
    %c0_i32 = arith.constant 0 : i32
    %c0_i32_0 = arith.constant 0 : i32
    %c0_i32_1 = arith.constant 0 : i32
    %c0_i32_2 = arith.constant 0 : i32
    return %c0_i32, %c0_i32_0, %c0_i32_1 : i32, i32, i32
  }
  func.func @transform_2(%arg0: i32) -> (i32, i32, i32) {
    %c0_i32 = arith.constant 0 : i32
    %c0_i32_0 = arith.constant 0 : i32
    %c0_i32_1 = arith.constant 0 : i32
    %c0_i32_2 = arith.constant 0 : i32
    return %c0_i32, %c0_i32_0, %c0_i32_1 : i32, i32, i32
  }
  func.func @transform_3(%arg0: i32) -> (i32, i32, i32) {
    %c0_i32 = arith.constant 0 : i32
    %c0_i32_0 = arith.constant 0 : i32
    %c0_i32_1 = arith.constant 0 : i32
    %c0_i32_2 = arith.constant 0 : i32
    return %c0_i32, %c0_i32_0, %c0_i32_1 : i32, i32, i32
  }
  func.func @transform_4(%arg0: i32) -> (i32, i32) {
    %c0_i32 = arith.constant 0 : i32
    %c0_i32_0 = arith.constant 0 : i32
    %c0_i32_1 = arith.constant 0 : i32
    return %c0_i32, %c0_i32_0 : i32, i32
  }
  func.func @transform_5(%arg0: i32) -> (i32, i32) {
    %c0_i32 = arith.constant 0 : i32
    %c0_i32_0 = arith.constant 0 : i32
    %c0_i32_1 = arith.constant 0 : i32
    return %c0_i32, %c0_i32_0 : i32, i32
  }
  func.func @transform_6(%arg0: i32) -> (i32, i32) {
    %c0_i32 = arith.constant 0 : i32
    %c0_i32_0 = arith.constant 0 : i32
    %c0_i32_1 = arith.constant 0 : i32
    return %c0_i32, %c0_i32_0 : i32, i32
  }
  func.func @transform_7(%arg0: i32) -> (i32, i32, i32) {
    %c0_i32 = arith.constant 0 : i32
    %c0_i32_0 = arith.constant 0 : i32
    %c0_i32_1 = arith.constant 0 : i32
    return %arg0, %c0_i32, %c0_i32_0 : i32, i32, i32
  }
}

</mosaic_0001>

<llo_original>
// kernel: mynet_forward.1
$region0: #{mynet_forward.1}
  #allocation0 [shape = 'u32[]', space=smem, size = 0x4, offset = 0x4, fixed_abs, tag = 'smem constant byte address 0x4 - core index']
  #allocation1 [shape = 'u32[72,128]{1,0:T(1,128)}', space=vmem, size = 0x9000, scoped, tag = 'internal scratch']
  #allocation2 [shape = 'f32[2,64,128]{2,1,0:T(8,128)}', space=vmem, size = 0x10000, scoped, tag = 'scratch operand']
  #allocation3 [shape = 'f32[64,128]{1,0:T(8,128)}', space=vmem, size = 0x8000, scoped, tag = 'scratch operand']
  %s0 = inlined_call_operand.vmem [shape: f32[2,8,56,96], index: 0, kind: input, shape index: {}]
  %s1 = inlined_call_operand.vmem [shape: f32[5,96,256], index: 1, kind: input, shape index: {}]
  %s2 = inlined_call_operand.vmem [shape: f32[5,128,256], index: 2, kind: input, shape index: {}]
  %s3 = inlined_call_operand.vmem [shape: f32[5,128,128], index: 3, kind: input, shape index: {}]
  %s4 = inlined_call_operand.vmem [shape: f32[128,128], index: 4, kind: input, shape index: {}]
  %s5 = inlined_call_operand.vmem [shape: f32[128,128], index: 5, kind: input, shape index: {}]
  %s6 = inlined_call_operand.vmem [shape: f32[5,128], index: 6, kind: input, shape index: {}]
  %s7 = inlined_call_operand.vmem [shape: f32[2,56,128], index: 7, kind: output, shape index: {}]
  %s8 = sld [smem:[#allocation0]]
  $region61: #{mynet_forward.1} parent=0
    _
  %s10 = ssub.s32 1, %s8
  %s11 = scalar_select 0, %s10, %s8
  loop: start=0, step=1, limit=4
  $region2: #{mynet_forward.1} parent=0 // loop_pre_header
    _
  $region3: #{mynet_forward.1} parent=0 // loop_header
    %s13 = sphi 0, %s17
    %p14 = scmp.ge.s32.totalorder %s13, 4
    %s23 = sphi 0, %s25
    %s26 = sphi 0, %s23
    %s27 = sphi 0, %s26
    %s43 = sphi 0, %s27
    %s47 = sphi 0, %s47
    %s49 = sphi 0, %s47
    %s50 = sphi 0, %s49
    %s64 = sphi 0, %s50
    %s68 = sphi 0, %s68
    %s70 = sphi 0, %s68
    %s71 = sphi 0, %s70
    %s85 = sphi 0, %s71
    %s89 = sphi 0, %s89
    %s91 = sphi 0, %s89
    %s92 = sphi 0, %s91
    %s106 = sphi 0, %s92
    %s110 = sphi 0, %s110
    %s112 = sphi 0, %s110
    %s113 = sphi 0, %s112
    %s127 = sphi 0, %s113
    %s131 = sphi 0, %s131
    %s133 = sphi 0, %s131
    %s134 = sphi 0, %s133
    %s148 = sphi 0, %s134
    %s152 = sphi 0, %s152
    %s154 = sphi 0, %s152
    %s155 = sphi 0, %s154
    %s169 = sphi 0, %s155
    %s175 = sphi 0, %s177
    %s178 = sphi 0, %s175
    %s179 = sphi 0, %s178
    %s195 = sphi 0, %s179
  $region4: #{mynet_forward.1} parent=0 // loop_header_branch
    %16 = sbr.rel (%p14) target = $region8
  $region5: #{mynet_forward.1} parent=0 // loop_body
    %s18 = ssub.s32 %s13, 1
    %s19 = ssub.s32 %s13, 2
    %s20 = sadd.s32 %s13, 1
    %s21 = ssub.s32 %s13, %s20
    %p22 = scmp.eq.s32.totalorder %s21, 0
    %s24 = sadd.s32 %s23, 1
    %s25 = scalar_select %p22, %s23, %s24
    %p28 = pneg %p22
    %p29 = scmp.eq.s32.totalorder %s13, 1
    %p30 = por %p28, %p29
    %p31 = scmp.ne.s32.totalorder %s23, %s26
    %p32 = scmp.eq.s32.totalorder %s13, 0
    %p33 = por %p31, %p32
    %p34 = scmp.ne.s32.totalorder %s23, %s26
    %p35 = scmp.eq.s32.totalorder %s18, 1
    %p36 = por %p34, %p35
    %p37 = scmp.ne.s32.totalorder %s26, %s27
    %p38 = scmp.eq.s32.totalorder %s18, 0
    %p39 = por %p37, %p38
    %p40 = scmp.ne.s32.totalorder %s26, %s27
    %p41 = scmp.eq.s32.totalorder %s19, 1
    %p42 = por %p40, %p41
    %p44 = scmp.ne.s32.totalorder %s27, %s43
    %p45 = scmp.eq.s32.totalorder %s19, 0
    %p46 = por %p44, %p45
    %s48 = sadd.s32 %s47, 1
    %p51 = scmp.eq.s32.totalorder %s13, 1
    %p52 = scmp.ne.s32.totalorder %s47, %s49
    %p53 = scmp.eq.s32.totalorder %s13, 0
    %p54 = por %p52, %p53
    %p55 = scmp.ne.s32.totalorder %s47, %s49
    %p56 = scmp.eq.s32.totalorder %s18, 1
    %p57 = por %p55, %p56
    %p58 = scmp.ne.s32.totalorder %s49, %s50
    %p59 = scmp.eq.s32.totalorder %s18, 0
    %p60 = por %p58, %p59
    %p61 = scmp.ne.s32.totalorder %s49, %s50
    %p62 = scmp.eq.s32.totalorder %s19, 1
    %p63 = por %p61, %p62
    %p65 = scmp.ne.s32.totalorder %s50, %s64
    %p66 = scmp.eq.s32.totalorder %s19, 0
    %p67 = por %p65, %p66
    %s69 = sadd.s32 %s68, 1
    %p72 = scmp.eq.s32.totalorder %s13, 1
    %p73 = scmp.ne.s32.totalorder %s68, %s70
    %p74 = scmp.eq.s32.totalorder %s13, 0
    %p75 = por %p73, %p74
    %p76 = scmp.ne.s32.totalorder %s68, %s70
    %p77 = scmp.eq.s32.totalorder %s18, 1
    %p78 = por %p76, %p77
    %p79 = scmp.ne.s32.totalorder %s70, %s71
    %p80 = scmp.eq.s32.totalorder %s18, 0
    %p81 = por %p79, %p80
    %p82 = scmp.ne.s32.totalorder %s70, %s71
    %p83 = scmp.eq.s32.totalorder %s19, 1
    %p84 = por %p82, %p83
    %p86 = scmp.ne.s32.totalorder %s71, %s85
    %p87 = scmp.eq.s32.totalorder %s19, 0
    %p88 = por %p86, %p87
    %s90 = sadd.s32 %s89, 1
    %p93 = scmp.eq.s32.totalorder %s13, 1
    %p94 = scmp.ne.s32.totalorder %s89, %s91
    %p95 = scmp.eq.s32.totalorder %s13, 0
    %p96 = por %p94, %p95
    %p97 = scmp.ne.s32.totalorder %s89, %s91
    %p98 = scmp.eq.s32.totalorder %s18, 1
    %p99 = por %p97, %p98
    %p100 = scmp.ne.s32.totalorder %s91, %s92
    %p101 = scmp.eq.s32.totalorder %s18, 0
    %p102 = por %p100, %p101
    %p103 = scmp.ne.s32.totalorder %s91, %s92
    %p104 = scmp.eq.s32.totalorder %s19, 1
    %p105 = por %p103, %p104
    %p107 = scmp.ne.s32.totalorder %s92, %s106
    %p108 = scmp.eq.s32.totalorder %s19, 0
    %p109 = por %p107, %p108
    %s111 = sadd.s32 %s110, 1
    %p114 = scmp.eq.s32.totalorder %s13, 1
    %p115 = scmp.ne.s32.totalorder %s110, %s112
    %p116 = scmp.eq.s32.totalorder %s13, 0
    %p117 = por %p115, %p116
    %p118 = scmp.ne.s32.totalorder %s110, %s112
    %p119 = scmp.eq.s32.totalorder %s18, 1
    %p120 = por %p118, %p119
    %p121 = scmp.ne.s32.totalorder %s112, %s113
    %p122 = scmp.eq.s32.totalorder %s18, 0
    %p123 = por %p121, %p122
    %p124 = scmp.ne.s32.totalorder %s112, %s113
    %p125 = scmp.eq.s32.totalorder %s19, 1
    %p126 = por %p124, %p125
    %p128 = scmp.ne.s32.totalorder %s113, %s127
    %p129 = scmp.eq.s32.totalorder %s19, 0
    %p130 = por %p128, %p129
    %s132 = sadd.s32 %s131, 1
    %p135 = scmp.eq.s32.totalorder %s13, 1
    %p136 = scmp.ne.s32.totalorder %s131, %s133
    %p137 = scmp.eq.s32.totalorder %s13, 0
    %p138 = por %p136, %p137
    %p139 = scmp.ne.s32.totalorder %s131, %s133
    %p140 = scmp.eq.s32.totalorder %s18, 1
    %p141 = por %p139, %p140
    %p142 = scmp.ne.s32.totalorder %s133, %s134
    %p143 = scmp.eq.s32.totalorder %s18, 0
    %p144 = por %p142, %p143
    %p145 = scmp.ne.s32.totalorder %s133, %s134
    %p146 = scmp.eq.s32.totalorder %s19, 1
    %p147 = por %p145, %p146
    %p149 = scmp.ne.s32.totalorder %s134, %s148
    %p150 = scmp.eq.s32.totalorder %s19, 0
    %p151 = por %p149, %p150
    %s153 = sadd.s32 %s152, 1
    %p156 = scmp.eq.s32.totalorder %s13, 1
    %p157 = scmp.ne.s32.totalorder %s152, %s154
    %p158 = scmp.eq.s32.totalorder %s13, 0
    %p159 = por %p157, %p158
    %p160 = scmp.ne.s32.totalorder %s152, %s154
    %p161 = scmp.eq.s32.totalorder %s18, 1
    %p162 = por %p160, %p161
    %p163 = scmp.ne.s32.totalorder %s154, %s155
    %p164 = scmp.eq.s32.totalorder %s18, 0
    %p165 = por %p163, %p164
    %p166 = scmp.ne.s32.totalorder %s154, %s155
    %p167 = scmp.eq.s32.totalorder %s19, 1
    %p168 = por %p166, %p167
    %p170 = scmp.ne.s32.totalorder %s155, %s169
    %p171 = scmp.eq.s32.totalorder %s19, 0
    %p172 = por %p170, %p171
    %s173 = ssub.s32 %s13, %s20
    %p174 = scmp.eq.s32.totalorder %s173, 0
    %s176 = sadd.s32 %s175, 1
    %s177 = scalar_select %p174, %s175, %s176
    %p180 = pneg %p174
    %p181 = scmp.eq.s32.totalorder %s13, 1
    %p182 = por %p180, %p181
    %p183 = scmp.ne.s32.totalorder %s175, %s178
    %p184 = scmp.eq.s32.totalorder %s13, 0
    %p185 = por %p183, %p184
    %p186 = scmp.ne.s32.totalorder %s175, %s178
    %p187 = scmp.eq.s32.totalorder %s18, 1
    %p188 = por %p186, %p187
    %p189 = scmp.ne.s32.totalorder %s178, %s179
    %p190 = scmp.eq.s32.totalorder %s18, 0
    %p191 = por %p189, %p190
    %p192 = scmp.ne.s32.totalorder %s178, %s179
    %p193 = scmp.eq.s32.totalorder %s19, 1
    %p194 = por %p192, %p193
    %p196 = scmp.ne.s32.totalorder %s179, %s195
    %p197 = scmp.eq.s32.totalorder %s19, 0
    %p198 = por %p196, %p197
    %p199 = scmp.le.s32.totalorder 1, %s13
    %p200 = scmp.lt.s32.totalorder %s13, 3
    %p201 = pnand %p199, %p200
    %p202 = pneg %p201
    // Predicated region
    $region9: #{mynet_forward.1} parent=5 // pred_check
      _
    $region10: #{mynet_forward.1} parent=5 // pred_check_branch
      %204 = sbr.rel (%p201) target = $region12
    $region11: #{mynet_forward.1} parent=5 // pred_region
      %s205 = ssub.s32 %s13, 1
      // Predicated region
      $region13: #{mynet_forward.1} parent=11 // pred_check
        %p206 = pneg %p60
      $region14: #{mynet_forward.1} parent=11 // pred_check_branch
        %208 = sbr.rel (%p206) target = $region16
      $region15: #{mynet_forward.1} parent=11 // pred_region
        _
      $region16: #{mynet_forward.1} parent=11 // pred_fallthru
        _
      // Predicated region
      $region17: #{mynet_forward.1} parent=11 // pred_check
        %p209 = pneg %p81
      $region18: #{mynet_forward.1} parent=11 // pred_check_branch
        %211 = sbr.rel (%p209) target = $region20
      $region19: #{mynet_forward.1} parent=11 // pred_region
        _
      $region20: #{mynet_forward.1} parent=11 // pred_fallthru
        _
      // Predicated region
      $region21: #{mynet_forward.1} parent=11 // pred_check
        %p212 = pneg %p102
      $region22: #{mynet_forward.1} parent=11 // pred_check_branch
        %214 = sbr.rel (%p212) target = $region24
      $region23: #{mynet_forward.1} parent=11 // pred_region
        _
      $region24: #{mynet_forward.1} parent=11 // pred_fallthru
        _
      // Predicated region
      $region25: #{mynet_forward.1} parent=11 // pred_check
        %p215 = pneg %p123
      $region26: #{mynet_forward.1} parent=11 // pred_check_branch
        %217 = sbr.rel (%p215) target = $region28
      $region27: #{mynet_forward.1} parent=11 // pred_region
        _
      $region28: #{mynet_forward.1} parent=11 // pred_fallthru
        _
      // Predicated region
      $region29: #{mynet_forward.1} parent=11 // pred_check
        %p218 = pneg %p144
      $region30: #{mynet_forward.1} parent=11 // pred_check_branch
        %220 = sbr.rel (%p218) target = $region32
      $region31: #{mynet_forward.1} parent=11 // pred_region
        _
      $region32: #{mynet_forward.1} parent=11 // pred_fallthru
        _
      // Predicated region
      $region33: #{mynet_forward.1} parent=11 // pred_check
        %p221 = pneg %p165
      $region34: #{mynet_forward.1} parent=11 // pred_check_branch
        %223 = sbr.rel (%p221) target = $region36
      $region35: #{mynet_forward.1} parent=11 // pred_region
        _
      $region36: #{mynet_forward.1} parent=11 // pred_fallthru
        _
    $region12: #{mynet_forward.1} parent=5 // pred_fallthru
      _
    %p224 = scmp.lt.s32.totalorder %s13, 2
    // Predicated region
    $region37: #{mynet_forward.1} parent=5 // pred_check
      %p225 = pneg %p224
    $region38: #{mynet_forward.1} parent=5 // pred_check_branch
      %227 = sbr.rel (%p225) target = $region40
    $region39: #{mynet_forward.1} parent=5 // pred_region
      // Predicated region
      $region41: #{mynet_forward.1} parent=39 // pred_check
        %p228 = pneg %p33
      $region42: #{mynet_forward.1} parent=39 // pred_check_branch
        %230 = sbr.rel (%p228) target = $region44
      $region43: #{mynet_forward.1} parent=39 // pred_region
        %p231 = scmp.lt.s32.totalorder %s13, 1
        %s232 = scalar_select %p231, %s13, 1
        %s233 = smul.addr %s232, 56
        %s234 = smul.addr %s233, 8
        %s235 = scalar_lea.vmem %s0, %s234
      $region44: #{mynet_forward.1} parent=39 // pred_fallthru
        _
    $region40: #{mynet_forward.1} parent=5 // pred_fallthru
      _
    %p236 = scmp.le.s32.totalorder 1, %s13
    %p237 = scmp.lt.s32.totalorder %s13, 3
    %p238 = pnand %p236, %p237
    %p239 = pneg %p238
    // Predicated region
    $region45: #{mynet_forward.1} parent=5 // pred_check
      _
    $region46: #{mynet_forward.1} parent=5 // pred_check_branch
      %241 = sbr.rel (%p238) target = $region48
    $region47: #{mynet_forward.1} parent=5 // pred_region
      %s242 = ssub.s32 %s13, 1
      %p243 = scmp.lt.s32.totalorder %s18, 1
      %s244 = scalar_select %p243, %s18, 1
      %s245 = smul.addr %s244, 56
      %s246 = smul.addr %s245, 8
      %s247 = scalar_lea.vmem %s0, %s246
      %p248 = pneg %p39
      %p249 = pneg %p36
      %p250 = pneg %p60
      %p251 = pneg %p57
      %p252 = pneg %p81
      %p253 = pneg %p78
      %p254 = pneg %p102
      %p255 = pneg %p99
      %p256 = pneg %p123
      %p257 = pneg %p120
      %p258 = pneg %p144
      %p259 = pneg %p141
      %p260 = pneg %p165
      %p261 = pneg %p162
      %p262 = pneg %p191
      %p263 = pneg %p188
      %p264 = scmp.lt.s32.totalorder %s18, 1
      %s265 = scalar_select %p264, %s18, 1
      %s266 = smul.addr %s265, 7
      %s267 = smul.addr %s266, 8
      %s268 = scalar_lea.vmem %s7, %s267
      %p269 = scmp.lt.s32.totalorder %s18, 1
      %s270 = scalar_select %p269, %s18, 1
      %s271 = smul.addr %s270, 56
      %s272 = smul.addr %s271, 8
      %s273 = scalar_lea.vmem %s0, %s272
      %p274 = scmp.lt.s32.totalorder %s18, 1
      %s275 = scalar_select %p274, %s18, 1
      %s276 = smul.addr %s275, 7
      %s277 = smul.addr %s276, 8
      %s278 = scalar_lea.vmem %s7, %s277
      %v279 = vld [vmem:[%s6] sm:$0x1]
      %v280 = vld [vmem:[%s273] sm:$0xff]
      %v281 = vld [vmem:[%s273 + $0x8] sm:$0xff]
      %v282 = vld [vmem:[%s273 + $0x10] sm:$0xff]
      %v283 = vld [vmem:[%s273 + $0x18] sm:$0xff]
      %v284 = vld [vmem:[%s273 + $0x20] sm:$0xff]
      %v285 = vld [vmem:[%s273 + $0x28] sm:$0xff]
      %v286 = vld [vmem:[%s273 + $0x30] sm:$0xff]
      %v287 = vld [vmem:[%s1] sm:$0xff]
      %v288 = vld [vmem:[%s1 + $0x8] sm:$0xff]
      %v289 = vld [vmem:[%s1 + $0x10] sm:$0xff]
      %v290 = vld [vmem:[%s1 + $0x18] sm:$0xff]
      %v291 = vld [vmem:[%s1 + $0x20] sm:$0xff]
      %v292 = vld [vmem:[%s1 + $0x28] sm:$0xff]
      %v293 = vld [vmem:[%s1 + $0x30] sm:$0xff]
      %v294 = vld [vmem:[%s1 + $0x38] sm:$0xff]
      %v295 = vld [vmem:[%s1 + $0x40] sm:$0xff]
      %v296 = vld [vmem:[%s1 + $0x48] sm:$0xff]
      %v297 = vld [vmem:[%s1 + $0x50] sm:$0xff]
      %v298 = vld [vmem:[%s1 + $0x58] sm:$0xff]
      %v299 = vld [vmem:[%s1 + $0x60] sm:$0xff]
      %v300 = vld [vmem:[%s1 + $0x68] sm:$0xff]
      %v301 = vld [vmem:[%s1 + $0x70] sm:$0xff]
      %v302 = vld [vmem:[%s1 + $0x78] sm:$0xff]
      %v303 = vld [vmem:[%s1 + $0x80] sm:$0xff]
      %v304 = vld [vmem:[%s1 + $0x88] sm:$0xff]
      %v305 = vld [vmem:[%s1 + $0x90] sm:$0xff]
      %v306 = vld [vmem:[%s1 + $0x98] sm:$0xff]
      %v307 = vld [vmem:[%s1 + $0xa0] sm:$0xff]
      %v308 = vld [vmem:[%s1 + $0xa8] sm:$0xff]
      %v309 = vld [vmem:[%s1 + $0xb0] sm:$0xff]
      %v310 = vld [vmem:[%s1 + $0xb8] sm:$0xff]
      %s311 = scalar_lea.vmem %s273, 56
      %v312 = vld [vmem:[%s311] sm:$0xff]
      %v313 = vld [vmem:[%s311 + $0x8] sm:$0xff]
      %v314 = vld [vmem:[%s311 + $0x10] sm:$0xff]
      %v315 = vld [vmem:[%s311 + $0x18] sm:$0xff]
      %v316 = vld [vmem:[%s311 + $0x20] sm:$0xff]
      %v317 = vld [vmem:[%s311 + $0x28] sm:$0xff]
      %v318 = vld [vmem:[%s311 + $0x30] sm:$0xff]
      %s319 = scalar_lea.vmem %s1, 192
      %v320 = vld [vmem:[%s319] sm:$0xff]
      %v321 = vld [vmem:[%s319 + $0x8] sm:$0xff]
      %v322 = vld [vmem:[%s319 + $0x10] sm:$0xff]
      %v323 = vld [vmem:[%s319 + $0x18] sm:$0xff]
      %v324 = vld [vmem:[%s319 + $0x20] sm:$0xff]
      %v325 = vld [vmem:[%s319 + $0x28] sm:$0xff]
      %v326 = vld [vmem:[%s319 + $0x30] sm:$0xff]
      %v327 = vld [vmem:[%s319 + $0x38] sm:$0xff]
      %v328 = vld [vmem:[%s319 + $0x40] sm:$0xff]
      %v329 = vld [vmem:[%s319 + $0x48] sm:$0xff]
      %v330 = vld [vmem:[%s319 + $0x50] sm:$0xff]
      %v331 = vld [vmem:[%s319 + $0x58] sm:$0xff]
      %v332 = vld [vmem:[%s319 + $0x60] sm:$0xff]
      %v333 = vld [vmem:[%s319 + $0x68] sm:$0xff]
      %v334 = vld [vmem:[%s319 + $0x70] sm:$0xff]
      %v335 = vld [vmem:[%s319 + $0x78] sm:$0xff]
      %v336 = vld [vmem:[%s319 + $0x80] sm:$0xff]
      %v337 = vld [vmem:[%s319 + $0x88] sm:$0xff]
      %v338 = vld [vmem:[%s319 + $0x90] sm:$0xff]
      %v339 = vld [vmem:[%s319 + $0x98] sm:$0xff]
      %v340 = vld [vmem:[%s319 + $0xa0] sm:$0xff]
      %v341 = vld [vmem:[%s319 + $0xa8] sm:$0xff]
      %v342 = vld [vmem:[%s319 + $0xb0] sm:$0xff]
      %v343 = vld [vmem:[%s319 + $0xb8] sm:$0xff]
      %vm344 = vcmask 785408
      %v346 = vsel %vm344, %v312, 0
      %v349 = vsel %vm344, %v313, 0
      %v352 = vsel %vm344, %v314, 0
      %v355 = vsel %vm344, %v315, 0
      %v358 = vsel %vm344, %v316, 0
      %v361 = vsel %vm344, %v317, 0
      %v364 = vsel %vm344, %v318, 0
      %366 = vmatpush.msra.mxu0 0.0
      %367 = vmatpush.msra.mxu0 0.0
      %368 = vmatpush.msra.mxu0 0.0
      %369 = vmatpush.msra.mxu0 0.0
      %370 = vmatpush.msra.mxu0 %v342
      %371 = vmatpush.msra.mxu0 %v340
      %372 = vmatpush.msra.mxu0 %v338
      %373 = vmatpush.msra.mxu0 %v336
      %374 = vmatpush.msra.mxu0 %v334
      %375 = vmatpush.msra.mxu0 %v332
      %376 = vmatpush.msra.mxu0 %v330
      %377 = vmatpush.msra.mxu0 %v328
      %378 = vmatpush.msra.mxu0 %v326
      %379 = vmatpush.msra.mxu0 %v324
      %380 = vmatpush.msra.mxu0 %v322
      %381 = vmatpush.msra.mxu0 %v320
      %382 = vmatmul.f32.gmra.mxu0 %v346
      %v383 = vpop.f32.mrf.mxu0
      %v384 = vadd.f32 0.0, %v383
      %385 = vmatmul.f32.gmra.mxu0 %v349
      %v386 = vpop.f32.mrf.mxu0
      %v387 = vadd.f32 0.0, %v386
      %388 = vmatmul.f32.gmra.mxu0 %v352
      %v389 = vpop.f32.mrf.mxu0
      %v390 = vadd.f32 0.0, %v389
      %391 = vmatmul.f32.gmra.mxu0 %v355
      %v392 = vpop.f32.mrf.mxu0
      %v393 = vadd.f32 0.0, %v392
      %394 = vmatmul.f32.gmra.mxu0 %v358
      %v395 = vpop.f32.mrf.mxu0
      %v396 = vadd.f32 0.0, %v395
      %397 = vmatmul.f32.gmra.mxu0 %v361
      %v398 = vpop.f32.mrf.mxu0
      %v399 = vadd.f32 0.0, %v398
      %400 = vmatmul.f32.gmra.mxu0 %v364
      %v401 = vpop.f32.mrf.mxu0
      %v402 = vadd.f32 0.0, %v401
      %403 = vdwg.mxu0
      %404 = vmatpush.msra.mxu0 0.0
      %405 = vmatpush.msra.mxu0 0.0
      %406 = vmatpush.msra.mxu0 0.0
      %407 = vmatpush.msra.mxu0 0.0
      %408 = vmatpush.msra.mxu0 %v343
      %409 = vmatpush.msra.mxu0 %v341
      %410 = vmatpush.msra.mxu0 %v339
      %411 = vmatpush.msra.mxu0 %v337
      %412 = vmatpush.msra.mxu0 %v335
      %413 = vmatpush.msra.mxu0 %v333
      %414 = vmatpush.msra.mxu0 %v331
      %415 = vmatpush.msra.mxu0 %v329
      %416 = vmatpush.msra.mxu0 %v327
      %417 = vmatpush.msra.mxu0 %v325
      %418 = vmatpush.msra.mxu0 %v323
      %419 = vmatpush.msra.mxu0 %v321
      %420 = vmatmul.f32.gmra.mxu0 %v346
      %v421 = vpop.f32.mrf.mxu0
      %v422 = vadd.f32 0.0, %v421
      %423 = vmatmul.f32.gmra.mxu0 %v349
      %v424 = vpop.f32.mrf.mxu0
      %v425 = vadd.f32 0.0, %v424
      %426 = vmatmul.f32.gmra.mxu0 %v352
      %v427 = vpop.f32.mrf.mxu0
      %v428 = vadd.f32 0.0, %v427
      %429 = vmatmul.f32.gmra.mxu0 %v355
      %v430 = vpop.f32.mrf.mxu0
      %v431 = vadd.f32 0.0, %v430
      %432 = vmatmul.f32.gmra.mxu0 %v358
      %v433 = vpop.f32.mrf.mxu0
      %v434 = vadd.f32 0.0, %v433
      %435 = vmatmul.f32.gmra.mxu0 %v361
      %v436 = vpop.f32.mrf.mxu0
      %v437 = vadd.f32 0.0, %v436
      %438 = vmatmul.f32.gmra.mxu0 %v364
      %v439 = vpop.f32.mrf.mxu0
      %v440 = vadd.f32 0.0, %v439
      %441 = vdwg.mxu0
      %v443 = vsel %vm344, %v280, 0
      %v446 = vsel %vm344, %v281, 0
      %v449 = vsel %vm344, %v282, 0
      %v452 = vsel %vm344, %v283, 0
      %v455 = vsel %vm344, %v284, 0
      %v458 = vsel %vm344, %v285, 0
      %v461 = vsel %vm344, %v286, 0
      %463 = vmatpush.msra.mxu0 0.0
      %464 = vmatpush.msra.mxu0 0.0
      %465 = vmatpush.msra.mxu0 0.0
      %466 = vmatpush.msra.mxu0 0.0
      %467 = vmatpush.msra.mxu0 %v309
      %468 = vmatpush.msra.mxu0 %v307
      %469 = vmatpush.msra.mxu0 %v305
      %470 = vmatpush.msra.mxu0 %v303
      %471 = vmatpush.msra.mxu0 %v301
      %472 = vmatpush.msra.mxu0 %v299
      %473 = vmatpush.msra.mxu0 %v297
      %474 = vmatpush.msra.mxu0 %v295
      %475 = vmatpush.msra.mxu0 %v293
      %476 = vmatpush.msra.mxu0 %v291
      %477 = vmatpush.msra.mxu0 %v289
      %478 = vmatpush.msra.mxu0 %v287
      %479 = vmatmul.f32.gmra.mxu0 %v443
      %v480 = vpop.f32.mrf.mxu0
      %v481 = vadd.f32 %v384, %v480
      %482 = vmatmul.f32.gmra.mxu0 %v446
      %v483 = vpop.f32.mrf.mxu0
      %v484 = vadd.f32 %v387, %v483
      %485 = vmatmul.f32.gmra.mxu0 %v449
      %v486 = vpop.f32.mrf.mxu0
      %v487 = vadd.f32 %v390, %v486
      %488 = vmatmul.f32.gmra.mxu0 %v452
      %v489 = vpop.f32.mrf.mxu0
      %v490 = vadd.f32 %v393, %v489
      %491 = vmatmul.f32.gmra.mxu0 %v455
      %v492 = vpop.f32.mrf.mxu0
      %v493 = vadd.f32 %v396, %v492
      %494 = vmatmul.f32.gmra.mxu0 %v458
      %v495 = vpop.f32.mrf.mxu0
      %v496 = vadd.f32 %v399, %v495
      %497 = vmatmul.f32.gmra.mxu0 %v461
      %v498 = vpop.f32.mrf.mxu0
      %v499 = vadd.f32 %v402, %v498
      %500 = vdwg.mxu0
      %501 = vmatpush.msra.mxu0 0.0
      %502 = vmatpush.msra.mxu0 0.0
      %503 = vmatpush.msra.mxu0 0.0
      %504 = vmatpush.msra.mxu0 0.0
      %505 = vmatpush.msra.mxu0 %v310
      %506 = vmatpush.msra.mxu0 %v308
      %507 = vmatpush.msra.mxu0 %v306
      %508 = vmatpush.msra.mxu0 %v304
      %509 = vmatpush.msra.mxu0 %v302
      %510 = vmatpush.msra.mxu0 %v300
      %511 = vmatpush.msra.mxu0 %v298
      %512 = vmatpush.msra.mxu0 %v296
      %513 = vmatpush.msra.mxu0 %v294
      %514 = vmatpush.msra.mxu0 %v292
      %515 = vmatpush.msra.mxu0 %v290
      %516 = vmatpush.msra.mxu0 %v288
      %517 = vmatmul.f32.gmra.mxu0 %v443
      %v518 = vpop.f32.mrf.mxu0
      %v519 = vadd.f32 %v422, %v518
      %520 = vmatmul.f32.gmra.mxu0 %v446
      %v521 = vpop.f32.mrf.mxu0
      %v522 = vadd.f32 %v425, %v521
      %523 = vmatmul.f32.gmra.mxu0 %v449
      %v524 = vpop.f32.mrf.mxu0
      %v525 = vadd.f32 %v428, %v524
      %526 = vmatmul.f32.gmra.mxu0 %v452
      %v527 = vpop.f32.mrf.mxu0
      %v528 = vadd.f32 %v431, %v527
      %529 = vmatmul.f32.gmra.mxu0 %v455
      %v530 = vpop.f32.mrf.mxu0
      %v531 = vadd.f32 %v434, %v530
      %532 = vmatmul.f32.gmra.mxu0 %v458
      %v533 = vpop.f32.mrf.mxu0
      %v534 = vadd.f32 %v437, %v533
      %535 = vmatmul.f32.gmra.mxu0 %v461
      %v536 = vpop.f32.mrf.mxu0
      %v537 = vadd.f32 %v440, %v536
      %538 = vdwg.mxu0
      %s539 = scalar_lea.vmem %s273, 112
      %v540 = vld [vmem:[%s539] sm:$0xff]
      %v541 = vld [vmem:[%s539 + $0x8] sm:$0xff]
      %v542 = vld [vmem:[%s539 + $0x10] sm:$0xff]
      %v543 = vld [vmem:[%s539 + $0x18] sm:$0xff]
      %v544 = vld [vmem:[%s539 + $0x20] sm:$0xff]
      %v545 = vld [vmem:[%s539 + $0x28] sm:$0xff]
      %v546 = vld [vmem:[%s539 + $0x30] sm:$0xff]
      %s547 = scalar_lea.vmem %s1, 384
      %v548 = vld [vmem:[%s547] sm:$0xff]
      %v549 = vld [vmem:[%s547 + $0x8] sm:$0xff]
      %v550 = vld [vmem:[%s547 + $0x10] sm:$0xff]
      %v551 = vld [vmem:[%s547 + $0x18] sm:$0xff]
      %v552 = vld [vmem:[%s547 + $0x20] sm:$0xff]
      %v553 = vld [vmem:[%s547 + $0x28] sm:$0xff]
      %v554 = vld [vmem:[%s547 + $0x30] sm:$0xff]
      %v555 = vld [vmem:[%s547 + $0x38] sm:$0xff]
      %v556 = vld [vmem:[%s547 + $0x40] sm:$0xff]
      %v557 = vld [vmem:[%s547 + $0x48] sm:$0xff]
      %v558 = vld [vmem:[%s547 + $0x50] sm:$0xff]
      %v559 = vld [vmem:[%s547 + $0x58] sm:$0xff]
      %v560 = vld [vmem:[%s547 + $0x60] sm:$0xff]
      %v561 = vld [vmem:[%s547 + $0x68] sm:$0xff]
      %v562 = vld [vmem:[%s547 + $0x70] sm:$0xff]
      %v563 = vld [vmem:[%s547 + $0x78] sm:$0xff]
      %v564 = vld [vmem:[%s547 + $0x80] sm:$0xff]
      %v565 = vld [vmem:[%s547 + $0x88] sm:$0xff]
      %v566 = vld [vmem:[%s547 + $0x90] sm:$0xff]
      %v567 = vld [vmem:[%s547 + $0x98] sm:$0xff]
      %v568 = vld [vmem:[%s547 + $0xa0] sm:$0xff]
      %v569 = vld [vmem:[%s547 + $0xa8] sm:$0xff]
      %v570 = vld [vmem:[%s547 + $0xb0] sm:$0xff]
      %v571 = vld [vmem:[%s547 + $0xb8] sm:$0xff]
      %v573 = vsel %vm344, %v540, 0
      %v576 = vsel %vm344, %v541, 0
      %v579 = vsel %vm344, %v542, 0
      %v582 = vsel %vm344, %v543, 0
      %v585 = vsel %vm344, %v544, 0
      %v588 = vsel %vm344, %v545, 0
      %v591 = vsel %vm344, %v546, 0
      %593 = vmatpush.msra.mxu0 0.0
      %594 = vmatpush.msra.mxu0 0.0
      %595 = vmatpush.msra.mxu0 0.0
      %596 = vmatpush.msra.mxu0 0.0
      %597 = vmatpush.msra.mxu0 %v570
      %598 = vmatpush.msra.mxu0 %v568
      %599 = vmatpush.msra.mxu0 %v566
      %600 = vmatpush.msra.mxu0 %v564
      %601 = vmatpush.msra.mxu0 %v562
      %602 = vmatpush.msra.mxu0 %v560
      %603 = vmatpush.msra.mxu0 %v558
      %604 = vmatpush.msra.mxu0 %v556
      %605 = vmatpush.msra.mxu0 %v554
      %606 = vmatpush.msra.mxu0 %v552
      %607 = vmatpush.msra.mxu0 %v550
      %608 = vmatpush.msra.mxu0 %v548
      %609 = vmatmul.f32.gmra.mxu0 %v573
      %v610 = vpop.f32.mrf.mxu0
      %v611 = vadd.f32 0.0, %v610
      %612 = vmatmul.f32.gmra.mxu0 %v576
      %v613 = vpop.f32.mrf.mxu0
      %v614 = vadd.f32 0.0, %v613
      %615 = vmatmul.f32.gmra.mxu0 %v579
      %v616 = vpop.f32.mrf.mxu0
      %v617 = vadd.f32 0.0, %v616
      %618 = vmatmul.f32.gmra.mxu0 %v582
      %v619 = vpop.f32.mrf.mxu0
      %v620 = vadd.f32 0.0, %v619
      %621 = vmatmul.f32.gmra.mxu0 %v585
      %v622 = vpop.f32.mrf.mxu0
      %v623 = vadd.f32 0.0, %v622
      %624 = vmatmul.f32.gmra.mxu0 %v588
      %v625 = vpop.f32.mrf.mxu0
      %v626 = vadd.f32 0.0, %v625
      %627 = vmatmul.f32.gmra.mxu0 %v591
      %v628 = vpop.f32.mrf.mxu0
      %v629 = vadd.f32 0.0, %v628
      %630 = vdwg.mxu0
      %631 = vmatpush.msra.mxu0 0.0
      %632 = vmatpush.msra.mxu0 0.0
      %633 = vmatpush.msra.mxu0 0.0
      %634 = vmatpush.msra.mxu0 0.0
      %635 = vmatpush.msra.mxu0 %v571
      %636 = vmatpush.msra.mxu0 %v569
      %637 = vmatpush.msra.mxu0 %v567
      %638 = vmatpush.msra.mxu0 %v565
      %639 = vmatpush.msra.mxu0 %v563
      %640 = vmatpush.msra.mxu0 %v561
      %641 = vmatpush.msra.mxu0 %v559
      %642 = vmatpush.msra.mxu0 %v557
      %643 = vmatpush.msra.mxu0 %v555
      %644 = vmatpush.msra.mxu0 %v553
      %645 = vmatpush.msra.mxu0 %v551
      %646 = vmatpush.msra.mxu0 %v549
      %647 = vmatmul.f32.gmra.mxu0 %v573
      %v648 = vpop.f32.mrf.mxu0
      %v649 = vadd.f32 0.0, %v648
      %650 = vmatmul.f32.gmra.mxu0 %v576
      %v651 = vpop.f32.mrf.mxu0
      %v652 = vadd.f32 0.0, %v651
      %653 = vmatmul.f32.gmra.mxu0 %v579
      %v654 = vpop.f32.mrf.mxu0
      %v655 = vadd.f32 0.0, %v654
      %656 = vmatmul.f32.gmra.mxu0 %v582
      %v657 = vpop.f32.mrf.mxu0
      %v658 = vadd.f32 0.0, %v657
      %659 = vmatmul.f32.gmra.mxu0 %v585
      %v660 = vpop.f32.mrf.mxu0
      %v661 = vadd.f32 0.0, %v660
      %662 = vmatmul.f32.gmra.mxu0 %v588
      %v663 = vpop.f32.mrf.mxu0
      %v664 = vadd.f32 0.0, %v663
      %665 = vmatmul.f32.gmra.mxu0 %v591
      %v666 = vpop.f32.mrf.mxu0
      %v667 = vadd.f32 0.0, %v666
      %668 = vdwg.mxu0
      %v669 = vadd.f32 %v481, %v611
      %v670 = vadd.f32 %v519, %v649
      %v671 = vadd.f32 %v484, %v614
      %v672 = vadd.f32 %v522, %v652
      %v673 = vadd.f32 %v487, %v617
      %v674 = vadd.f32 %v525, %v655
      %v675 = vadd.f32 %v490, %v620
      %v676 = vadd.f32 %v528, %v658
      %v677 = vadd.f32 %v493, %v623
      %v678 = vadd.f32 %v531, %v661
      %v679 = vadd.f32 %v496, %v626
      %v680 = vadd.f32 %v534, %v664
      %v681 = vadd.f32 %v499, %v629
      %v682 = vadd.f32 %v537, %v667
      %s683 = scalar_lea.vmem %s273, 168
      %v684 = vld [vmem:[%s683] sm:$0xff]
      %v685 = vld [vmem:[%s683 + $0x8] sm:$0xff]
      %v686 = vld [vmem:[%s683 + $0x10] sm:$0xff]
      %v687 = vld [vmem:[%s683 + $0x18] sm:$0xff]
      %v688 = vld [vmem:[%s683 + $0x20] sm:$0xff]
      %v689 = vld [vmem:[%s683 + $0x28] sm:$0xff]
      %v690 = vld [vmem:[%s683 + $0x30] sm:$0xff]
      %s691 = scalar_lea.vmem %s1, 576
      %v692 = vld [vmem:[%s691] sm:$0xff]
      %v693 = vld [vmem:[%s691 + $0x8] sm:$0xff]
      %v694 = vld [vmem:[%s691 + $0x10] sm:$0xff]
      %v695 = vld [vmem:[%s691 + $0x18] sm:$0xff]
      %v696 = vld [vmem:[%s691 + $0x20] sm:$0xff]
      %v697 = vld [vmem:[%s691 + $0x28] sm:$0xff]
      %v698 = vld [vmem:[%s691 + $0x30] sm:$0xff]
      %v699 = vld [vmem:[%s691 + $0x38] sm:$0xff]
      %v700 = vld [vmem:[%s691 + $0x40] sm:$0xff]
      %v701 = vld [vmem:[%s691 + $0x48] sm:$0xff]
      %v702 = vld [vmem:[%s691 + $0x50] sm:$0xff]
      %v703 = vld [vmem:[%s691 + $0x58] sm:$0xff]
      %v704 = vld [vmem:[%s691 + $0x60] sm:$0xff]
      %v705 = vld [vmem:[%s691 + $0x68] sm:$0xff]
      %v706 = vld [vmem:[%s691 + $0x70] sm:$0xff]
      %v707 = vld [vmem:[%s691 + $0x78] sm:$0xff]
      %v708 = vld [vmem:[%s691 + $0x80] sm:$0xff]
      %v709 = vld [vmem:[%s691 + $0x88] sm:$0xff]
      %v710 = vld [vmem:[%s691 + $0x90] sm:$0xff]
      %v711 = vld [vmem:[%s691 + $0x98] sm:$0xff]
      %v712 = vld [vmem:[%s691 + $0xa0] sm:$0xff]
      %v713 = vld [vmem:[%s691 + $0xa8] sm:$0xff]
      %v714 = vld [vmem:[%s691 + $0xb0] sm:$0xff]
      %v715 = vld [vmem:[%s691 + $0xb8] sm:$0xff]
      %v717 = vsel %vm344, %v684, 0
      %v720 = vsel %vm344, %v685, 0
      %v723 = vsel %vm344, %v686, 0
      %v726 = vsel %vm344, %v687, 0
      %v729 = vsel %vm344, %v688, 0
      %v732 = vsel %vm344, %v689, 0
      %v735 = vsel %vm344, %v690, 0
      %737 = vmatpush.msra.mxu0 0.0
      %738 = vmatpush.msra.mxu0 0.0
      %739 = vmatpush.msra.mxu0 0.0
      %740 = vmatpush.msra.mxu0 0.0
      %741 = vmatpush.msra.mxu0 %v714
      %742 = vmatpush.msra.mxu0 %v712
      %743 = vmatpush.msra.mxu0 %v710
      %744 = vmatpush.msra.mxu0 %v708
      %745 = vmatpush.msra.mxu0 %v706
      %746 = vmatpush.msra.mxu0 %v704
      %747 = vmatpush.msra.mxu0 %v702
      %748 = vmatpush.msra.mxu0 %v700
      %749 = vmatpush.msra.mxu0 %v698
      %750 = vmatpush.msra.mxu0 %v696
      %751 = vmatpush.msra.mxu0 %v694
      %752 = vmatpush.msra.mxu0 %v692
      %753 = vmatmul.f32.gmra.mxu0 %v717
      %v754 = vpop.f32.mrf.mxu0
      %v755 = vadd.f32 0.0, %v754
      %756 = vmatmul.f32.gmra.mxu0 %v720
      %v757 = vpop.f32.mrf.mxu0
      %v758 = vadd.f32 0.0, %v757
      %759 = vmatmul.f32.gmra.mxu0 %v723
      %v760 = vpop.f32.mrf.mxu0
      %v761 = vadd.f32 0.0, %v760
      %762 = vmatmul.f32.gmra.mxu0 %v726
      %v763 = vpop.f32.mrf.mxu0
      %v764 = vadd.f32 0.0, %v763
      %765 = vmatmul.f32.gmra.mxu0 %v729
      %v766 = vpop.f32.mrf.mxu0
      %v767 = vadd.f32 0.0, %v766
      %768 = vmatmul.f32.gmra.mxu0 %v732
      %v769 = vpop.f32.mrf.mxu0
      %v770 = vadd.f32 0.0, %v769
      %771 = vmatmul.f32.gmra.mxu0 %v735
      %v772 = vpop.f32.mrf.mxu0
      %v773 = vadd.f32 0.0, %v772
      %774 = vdwg.mxu0
      %775 = vmatpush.msra.mxu0 0.0
      %776 = vmatpush.msra.mxu0 0.0
      %777 = vmatpush.msra.mxu0 0.0
      %778 = vmatpush.msra.mxu0 0.0
      %779 = vmatpush.msra.mxu0 %v715
      %780 = vmatpush.msra.mxu0 %v713
      %781 = vmatpush.msra.mxu0 %v711
      %782 = vmatpush.msra.mxu0 %v709
      %783 = vmatpush.msra.mxu0 %v707
      %784 = vmatpush.msra.mxu0 %v705
      %785 = vmatpush.msra.mxu0 %v703
      %786 = vmatpush.msra.mxu0 %v701
      %787 = vmatpush.msra.mxu0 %v699
      %788 = vmatpush.msra.mxu0 %v697
      %789 = vmatpush.msra.mxu0 %v695
      %790 = vmatpush.msra.mxu0 %v693
      %791 = vmatmul.f32.gmra.mxu0 %v717
      %v792 = vpop.f32.mrf.mxu0
      %v793 = vadd.f32 0.0, %v792
      %794 = vmatmul.f32.gmra.mxu0 %v720
      %v795 = vpop.f32.mrf.mxu0
      %v796 = vadd.f32 0.0, %v795
      %797 = vmatmul.f32.gmra.mxu0 %v723
      %v798 = vpop.f32.mrf.mxu0
      %v799 = vadd.f32 0.0, %v798
      %800 = vmatmul.f32.gmra.mxu0 %v726
      %v801 = vpop.f32.mrf.mxu0
      %v802 = vadd.f32 0.0, %v801
      %803 = vmatmul.f32.gmra.mxu0 %v729
      %v804 = vpop.f32.mrf.mxu0
      %v805 = vadd.f32 0.0, %v804
      %806 = vmatmul.f32.gmra.mxu0 %v732
      %v807 = vpop.f32.mrf.mxu0
      %v808 = vadd.f32 0.0, %v807
      %809 = vmatmul.f32.gmra.mxu0 %v735
      %v810 = vpop.f32.mrf.mxu0
      %v811 = vadd.f32 0.0, %v810
      %812 = vdwg.mxu0
      %v813 = vadd.f32 %v669, %v755
      %v814 = vadd.f32 %v670, %v793
      %v815 = vadd.f32 %v671, %v758
      %v816 = vadd.f32 %v672, %v796
      %v817 = vadd.f32 %v673, %v761
      %v818 = vadd.f32 %v674, %v799
      %v819 = vadd.f32 %v675, %v764
      %v820 = vadd.f32 %v676, %v802
      %v821 = vadd.f32 %v677, %v767
      %v822 = vadd.f32 %v678, %v805
      %v823 = vadd.f32 %v679, %v770
      %v824 = vadd.f32 %v680, %v808
      %v825 = vadd.f32 %v681, %v773
      %v826 = vadd.f32 %v682, %v811
      %s827 = scalar_lea.vmem %s273, 224
      %v828 = vld [vmem:[%s827] sm:$0xff]
      %v829 = vld [vmem:[%s827 + $0x8] sm:$0xff]
      %v830 = vld [vmem:[%s827 + $0x10] sm:$0xff]
      %v831 = vld [vmem:[%s827 + $0x18] sm:$0xff]
      %v832 = vld [vmem:[%s827 + $0x20] sm:$0xff]
      %v833 = vld [vmem:[%s827 + $0x28] sm:$0xff]
      %v834 = vld [vmem:[%s827 + $0x30] sm:$0xff]
      %s835 = scalar_lea.vmem %s1, 768
      %v836 = vld [vmem:[%s835] sm:$0xff]
      %v837 = vld [vmem:[%s835 + $0x8] sm:$0xff]
      %v838 = vld [vmem:[%s835 + $0x10] sm:$0xff]
      %v839 = vld [vmem:[%s835 + $0x18] sm:$0xff]
      %v840 = vld [vmem:[%s835 + $0x20] sm:$0xff]
      %v841 = vld [vmem:[%s835 + $0x28] sm:$0xff]
      %v842 = vld [vmem:[%s835 + $0x30] sm:$0xff]
      %v843 = vld [vmem:[%s835 + $0x38] sm:$0xff]
      %v844 = vld [vmem:[%s835 + $0x40] sm:$0xff]
      %v845 = vld [vmem:[%s835 + $0x48] sm:$0xff]
      %v846 = vld [vmem:[%s835 + $0x50] sm:$0xff]
      %v847 = vld [vmem:[%s835 + $0x58] sm:$0xff]
      %v848 = vld [vmem:[%s835 + $0x60] sm:$0xff]
      %v849 = vld [vmem:[%s835 + $0x68] sm:$0xff]
      %v850 = vld [vmem:[%s835 + $0x70] sm:$0xff]
      %v851 = vld [vmem:[%s835 + $0x78] sm:$0xff]
      %v852 = vld [vmem:[%s835 + $0x80] sm:$0xff]
      %v853 = vld [vmem:[%s835 + $0x88] sm:$0xff]
      %v854 = vld [vmem:[%s835 + $0x90] sm:$0xff]
      %v855 = vld [vmem:[%s835 + $0x98] sm:$0xff]
      %v856 = vld [vmem:[%s835 + $0xa0] sm:$0xff]
      %v857 = vld [vmem:[%s835 + $0xa8] sm:$0xff]
      %v858 = vld [vmem:[%s835 + $0xb0] sm:$0xff]
      %v859 = vld [vmem:[%s835 + $0xb8] sm:$0xff]
      %v861 = vsel %vm344, %v828, 0
      %v864 = vsel %vm344, %v829, 0
      %v867 = vsel %vm344, %v830, 0
      %v870 = vsel %vm344, %v831, 0
      %v873 = vsel %vm344, %v832, 0
      %v876 = vsel %vm344, %v833, 0
      %v879 = vsel %vm344, %v834, 0
      %881 = vmatpush.msra.mxu0 0.0
      %882 = vmatpush.msra.mxu0 0.0
      %883 = vmatpush.msra.mxu0 0.0
      %884 = vmatpush.msra.mxu0 0.0
      %885 = vmatpush.msra.mxu0 %v858
      %886 = vmatpush.msra.mxu0 %v856
      %887 = vmatpush.msra.mxu0 %v854
      %888 = vmatpush.msra.mxu0 %v852
      %889 = vmatpush.msra.mxu0 %v850
      %890 = vmatpush.msra.mxu0 %v848
      %891 = vmatpush.msra.mxu0 %v846
      %892 = vmatpush.msra.mxu0 %v844
      %893 = vmatpush.msra.mxu0 %v842
      %894 = vmatpush.msra.mxu0 %v840
      %895 = vmatpush.msra.mxu0 %v838
      %896 = vmatpush.msra.mxu0 %v836
      %897 = vmatmul.f32.gmra.mxu0 %v861
      %v898 = vpop.f32.mrf.mxu0
      %v899 = vadd.f32 0.0, %v898
      %900 = vmatmul.f32.gmra.mxu0 %v864
      %v901 = vpop.f32.mrf.mxu0
      %v902 = vadd.f32 0.0, %v901
      %903 = vmatmul.f32.gmra.mxu0 %v867
      %v904 = vpop.f32.mrf.mxu0
      %v905 = vadd.f32 0.0, %v904
      %906 = vmatmul.f32.gmra.mxu0 %v870
      %v907 = vpop.f32.mrf.mxu0
      %v908 = vadd.f32 0.0, %v907
      %909 = vmatmul.f32.gmra.mxu0 %v873
      %v910 = vpop.f32.mrf.mxu0
      %v911 = vadd.f32 0.0, %v910
      %912 = vmatmul.f32.gmra.mxu0 %v876
      %v913 = vpop.f32.mrf.mxu0
      %v914 = vadd.f32 0.0, %v913
      %915 = vmatmul.f32.gmra.mxu0 %v879
      %v916 = vpop.f32.mrf.mxu0
      %v917 = vadd.f32 0.0, %v916
      %918 = vdwg.mxu0
      %919 = vmatpush.msra.mxu0 0.0
      %920 = vmatpush.msra.mxu0 0.0
      %921 = vmatpush.msra.mxu0 0.0
      %922 = vmatpush.msra.mxu0 0.0
      %923 = vmatpush.msra.mxu0 %v859
      %924 = vmatpush.msra.mxu0 %v857
      %925 = vmatpush.msra.mxu0 %v855
      %926 = vmatpush.msra.mxu0 %v853
      %927 = vmatpush.msra.mxu0 %v851
      %928 = vmatpush.msra.mxu0 %v849
      %929 = vmatpush.msra.mxu0 %v847
      %930 = vmatpush.msra.mxu0 %v845
      %931 = vmatpush.msra.mxu0 %v843
      %932 = vmatpush.msra.mxu0 %v841
      %933 = vmatpush.msra.mxu0 %v839
      %934 = vmatpush.msra.mxu0 %v837
      %935 = vmatmul.f32.gmra.mxu0 %v861
      %v936 = vpop.f32.mrf.mxu0
      %v937 = vadd.f32 0.0, %v936
      %938 = vmatmul.f32.gmra.mxu0 %v864
      %v939 = vpop.f32.mrf.mxu0
      %v940 = vadd.f32 0.0, %v939
      %941 = vmatmul.f32.gmra.mxu0 %v867
      %v942 = vpop.f32.mrf.mxu0
      %v943 = vadd.f32 0.0, %v942
      %944 = vmatmul.f32.gmra.mxu0 %v870
      %v945 = vpop.f32.mrf.mxu0
      %v946 = vadd.f32 0.0, %v945
      %947 = vmatmul.f32.gmra.mxu0 %v873
      %v948 = vpop.f32.mrf.mxu0
      %v949 = vadd.f32 0.0, %v948
      %950 = vmatmul.f32.gmra.mxu0 %v876
      %v951 = vpop.f32.mrf.mxu0
      %v952 = vadd.f32 0.0, %v951
      %953 = vmatmul.f32.gmra.mxu0 %v879
      %v954 = vpop.f32.mrf.mxu0
      %v955 = vadd.f32 0.0, %v954
      %956 = vdwg.mxu0
      %v957 = vadd.f32 %v813, %v899
      %v958 = vadd.f32 %v814, %v937
      %v959 = vadd.f32 %v815, %v902
      %v960 = vadd.f32 %v816, %v940
      %v961 = vadd.f32 %v817, %v905
      %v962 = vadd.f32 %v818, %v943
      %v963 = vadd.f32 %v819, %v908
      %v964 = vadd.f32 %v820, %v946
      %v965 = vadd.f32 %v821, %v911
      %v966 = vadd.f32 %v822, %v949
      %v967 = vadd.f32 %v823, %v914
      %v968 = vadd.f32 %v824, %v952
      %v969 = vadd.f32 %v825, %v917
      %v970 = vadd.f32 %v826, %v955
      %v971 = vmax.f32 %v957, %v958
      %v972 = vmax.f32 %v959, %v960
      %v973 = vmax.f32 %v961, %v962
      %v974 = vmax.f32 %v963, %v964
      %v975 = vmax.f32 %v965, %v966
      %v976 = vmax.f32 %v967, %v968
      %v977 = vmax.f32 %v969, %v970
      %978 = vmatpush.msra.mxu0 0.0
      %979 = vmatpush.msra.mxu0 0.0
      %980 = vmatpush.msra.mxu0 0.0
      %981 = vmatpush.msra.mxu0 0.0
      %982 = vmatpush.msra.mxu0 %v342
      %983 = vmatpush.msra.mxu0 %v340
      %984 = vmatpush.msra.mxu0 %v338
      %985 = vmatpush.msra.mxu0 %v336
      %986 = vmatpush.msra.mxu0 %v334
      %987 = vmatpush.msra.mxu0 %v332
      %988 = vmatpush.msra.mxu0 %v330
      %989 = vmatpush.msra.mxu0 %v328
      %990 = vmatpush.msra.mxu0 %v326
      %991 = vmatpush.msra.mxu0 %v324
      %992 = vmatpush.msra.mxu0 %v322
      %993 = vmatpush.msra.mxu0 %v320
      %994 = vmatmul.f32.gmra.mxu0 %v573
      %v995 = vpop.f32.mrf.mxu0
      %v996 = vadd.f32 0.0, %v995
      %997 = vmatmul.f32.gmra.mxu0 %v576
      %v998 = vpop.f32.mrf.mxu0
      %v999 = vadd.f32 0.0, %v998
      %1000 = vmatmul.f32.gmra.mxu0 %v579
      %v1001 = vpop.f32.mrf.mxu0
      %v1002 = vadd.f32 0.0, %v1001
      %1003 = vmatmul.f32.gmra.mxu0 %v582
      %v1004 = vpop.f32.mrf.mxu0
      %v1005 = vadd.f32 0.0, %v1004
      %1006 = vmatmul.f32.gmra.mxu0 %v585
      %v1007 = vpop.f32.mrf.mxu0
      %v1008 = vadd.f32 0.0, %v1007
      %1009 = vmatmul.f32.gmra.mxu0 %v588
      %v1010 = vpop.f32.mrf.mxu0
      %v1011 = vadd.f32 0.0, %v1010
      %1012 = vmatmul.f32.gmra.mxu0 %v591
      %v1013 = vpop.f32.mrf.mxu0
      %v1014 = vadd.f32 0.0, %v1013
      %1015 = vdwg.mxu0
      %1016 = vmatpush.msra.mxu0 0.0
      %1017 = vmatpush.msra.mxu0 0.0
      %1018 = vmatpush.msra.mxu0 0.0
      %1019 = vmatpush.msra.mxu0 0.0
      %1020 = vmatpush.msra.mxu0 %v343
      %1021 = vmatpush.msra.mxu0 %v341
      %1022 = vmatpush.msra.mxu0 %v339
      %1023 = vmatpush.msra.mxu0 %v337
      %1024 = vmatpush.msra.mxu0 %v335
      %1025 = vmatpush.msra.mxu0 %v333
      %1026 = vmatpush.msra.mxu0 %v331
      %1027 = vmatpush.msra.mxu0 %v329
      %1028 = vmatpush.msra.mxu0 %v327
      %1029 = vmatpush.msra.mxu0 %v325
      %1030 = vmatpush.msra.mxu0 %v323
      %1031 = vmatpush.msra.mxu0 %v321
      %1032 = vmatmul.f32.gmra.mxu0 %v573
      %v1033 = vpop.f32.mrf.mxu0
      %v1034 = vadd.f32 0.0, %v1033
      %1035 = vmatmul.f32.gmra.mxu0 %v576
      %v1036 = vpop.f32.mrf.mxu0
      %v1037 = vadd.f32 0.0, %v1036
      %1038 = vmatmul.f32.gmra.mxu0 %v579
      %v1039 = vpop.f32.mrf.mxu0
      %v1040 = vadd.f32 0.0, %v1039
      %1041 = vmatmul.f32.gmra.mxu0 %v582
      %v1042 = vpop.f32.mrf.mxu0
      %v1043 = vadd.f32 0.0, %v1042
      %1044 = vmatmul.f32.gmra.mxu0 %v585
      %v1045 = vpop.f32.mrf.mxu0
      %v1046 = vadd.f32 0.0, %v1045
      %1047 = vmatmul.f32.gmra.mxu0 %v588
      %v1048 = vpop.f32.mrf.mxu0
      %v1049 = vadd.f32 0.0, %v1048
      %1050 = vmatmul.f32.gmra.mxu0 %v591
      %v1051 = vpop.f32.mrf.mxu0
      %v1052 = vadd.f32 0.0, %v1051
      %1053 = vdwg.mxu0
      %1054 = vmatpush.msra.mxu0 0.0
      %1055 = vmatpush.msra.mxu0 0.0
      %1056 = vmatpush.msra.mxu0 0.0
      %1057 = vmatpush.msra.mxu0 0.0
      %1058 = vmatpush.msra.mxu0 %v309
      %1059 = vmatpush.msra.mxu0 %v307
      %1060 = vmatpush.msra.mxu0 %v305
      %1061 = vmatpush.msra.mxu0 %v303
      %1062 = vmatpush.msra.mxu0 %v301
      %1063 = vmatpush.msra.mxu0 %v299
      %1064 = vmatpush.msra.mxu0 %v297
      %1065 = vmatpush.msra.mxu0 %v295
      %1066 = vmatpush.msra.mxu0 %v293
      %1067 = vmatpush.msra.mxu0 %v291
      %1068 = vmatpush.msra.mxu0 %v289
      %1069 = vmatpush.msra.mxu0 %v287
      %1070 = vmatmul.f32.gmra.mxu0 %v346
      %v1071 = vpop.f32.mrf.mxu0
      %v1072 = vadd.f32 %v996, %v1071
      %1073 = vmatmul.f32.gmra.mxu0 %v349
      %v1074 = vpop.f32.mrf.mxu0
      %v1075 = vadd.f32 %v999, %v1074
      %1076 = vmatmul.f32.gmra.mxu0 %v352
      %v1077 = vpop.f32.mrf.mxu0
      %v1078 = vadd.f32 %v1002, %v1077
      %1079 = vmatmul.f32.gmra.mxu0 %v355
      %v1080 = vpop.f32.mrf.mxu0
      %v1081 = vadd.f32 %v1005, %v1080
      %1082 = vmatmul.f32.gmra.mxu0 %v358
      %v1083 = vpop.f32.mrf.mxu0
      %v1084 = vadd.f32 %v1008, %v1083
      %1085 = vmatmul.f32.gmra.mxu0 %v361
      %v1086 = vpop.f32.mrf.mxu0
      %v1087 = vadd.f32 %v1011, %v1086
      %1088 = vmatmul.f32.gmra.mxu0 %v364
      %v1089 = vpop.f32.mrf.mxu0
      %v1090 = vadd.f32 %v1014, %v1089
      %1091 = vdwg.mxu0
      %1092 = vmatpush.msra.mxu0 0.0
      %1093 = vmatpush.msra.mxu0 0.0
      %1094 = vmatpush.msra.mxu0 0.0
      %1095 = vmatpush.msra.mxu0 0.0
      %1096 = vmatpush.msra.mxu0 %v310
      %1097 = vmatpush.msra.mxu0 %v308
      %1098 = vmatpush.msra.mxu0 %v306
      %1099 = vmatpush.msra.mxu0 %v304
      %1100 = vmatpush.msra.mxu0 %v302
      %1101 = vmatpush.msra.mxu0 %v300
      %1102 = vmatpush.msra.mxu0 %v298
      %1103 = vmatpush.msra.mxu0 %v296
      %1104 = vmatpush.msra.mxu0 %v294
      %1105 = vmatpush.msra.mxu0 %v292
      %1106 = vmatpush.msra.mxu0 %v290
      %1107 = vmatpush.msra.mxu0 %v288
      %1108 = vmatmul.f32.gmra.mxu0 %v346
      %v1109 = vpop.f32.mrf.mxu0
      %v1110 = vadd.f32 %v1034, %v1109
      %1111 = vmatmul.f32.gmra.mxu0 %v349
      %v1112 = vpop.f32.mrf.mxu0
      %v1113 = vadd.f32 %v1037, %v1112
      %1114 = vmatmul.f32.gmra.mxu0 %v352
      %v1115 = vpop.f32.mrf.mxu0
      %v1116 = vadd.f32 %v1040, %v1115
      %1117 = vmatmul.f32.gmra.mxu0 %v355
      %v1118 = vpop.f32.mrf.mxu0
      %v1119 = vadd.f32 %v1043, %v1118
      %1120 = vmatmul.f32.gmra.mxu0 %v358
      %v1121 = vpop.f32.mrf.mxu0
      %v1122 = vadd.f32 %v1046, %v1121
      %1123 = vmatmul.f32.gmra.mxu0 %v361
      %v1124 = vpop.f32.mrf.mxu0
      %v1125 = vadd.f32 %v1049, %v1124
      %1126 = vmatmul.f32.gmra.mxu0 %v364
      %v1127 = vpop.f32.mrf.mxu0
      %v1128 = vadd.f32 %v1052, %v1127
      %1129 = vdwg.mxu0
      %1130 = vmatpush.msra.mxu0 0.0
      %1131 = vmatpush.msra.mxu0 0.0
      %1132 = vmatpush.msra.mxu0 0.0
      %1133 = vmatpush.msra.mxu0 0.0
      %1134 = vmatpush.msra.mxu0 %v570
      %1135 = vmatpush.msra.mxu0 %v568
      %1136 = vmatpush.msra.mxu0 %v566
      %1137 = vmatpush.msra.mxu0 %v564
      %1138 = vmatpush.msra.mxu0 %v562
      %1139 = vmatpush.msra.mxu0 %v560
      %1140 = vmatpush.msra.mxu0 %v558
      %1141 = vmatpush.msra.mxu0 %v556
      %1142 = vmatpush.msra.mxu0 %v554
      %1143 = vmatpush.msra.mxu0 %v552
      %1144 = vmatpush.msra.mxu0 %v550
      %1145 = vmatpush.msra.mxu0 %v548
      %1146 = vmatmul.f32.gmra.mxu0 %v717
      %v1147 = vpop.f32.mrf.mxu0
      %v1148 = vadd.f32 0.0, %v1147
      %1149 = vmatmul.f32.gmra.mxu0 %v720
      %v1150 = vpop.f32.mrf.mxu0
      %v1151 = vadd.f32 0.0, %v1150
      %1152 = vmatmul.f32.gmra.mxu0 %v723
      %v1153 = vpop.f32.mrf.mxu0
      %v1154 = vadd.f32 0.0, %v1153
      %1155 = vmatmul.f32.gmra.mxu0 %v726
      %v1156 = vpop.f32.mrf.mxu0
      %v1157 = vadd.f32 0.0, %v1156
      %1158 = vmatmul.f32.gmra.mxu0 %v729
      %v1159 = vpop.f32.mrf.mxu0
      %v1160 = vadd.f32 0.0, %v1159
      %1161 = vmatmul.f32.gmra.mxu0 %v732
      %v1162 = vpop.f32.mrf.mxu0
      %v1163 = vadd.f32 0.0, %v1162
      %1164 = vmatmul.f32.gmra.mxu0 %v735
      %v1165 = vpop.f32.mrf.mxu0
      %v1166 = vadd.f32 0.0, %v1165
      %1167 = vdwg.mxu0
      %1168 = vmatpush.msra.mxu0 0.0
      %1169 = vmatpush.msra.mxu0 0.0
      %1170 = vmatpush.msra.mxu0 0.0
      %1171 = vmatpush.msra.mxu0 0.0
      %1172 = vmatpush.msra.mxu0 %v571
      %1173 = vmatpush.msra.mxu0 %v569
      %1174 = vmatpush.msra.mxu0 %v567
      %1175 = vmatpush.msra.mxu0 %v565
      %1176 = vmatpush.msra.mxu0 %v563
      %1177 = vmatpush.msra.mxu0 %v561
      %1178 = vmatpush.msra.mxu0 %v559
      %1179 = vmatpush.msra.mxu0 %v557
      %1180 = vmatpush.msra.mxu0 %v555
      %1181 = vmatpush.msra.mxu0 %v553
      %1182 = vmatpush.msra.mxu0 %v551
      %1183 = vmatpush.msra.mxu0 %v549
      %1184 = vmatmul.f32.gmra.mxu0 %v717
      %v1185 = vpop.f32.mrf.mxu0
      %v1186 = vadd.f32 0.0, %v1185
      %1187 = vmatmul.f32.gmra.mxu0 %v720
      %v1188 = vpop.f32.mrf.mxu0
      %v1189 = vadd.f32 0.0, %v1188
      %1190 = vmatmul.f32.gmra.mxu0 %v723
      %v1191 = vpop.f32.mrf.mxu0
      %v1192 = vadd.f32 0.0, %v1191
      %1193 = vmatmul.f32.gmra.mxu0 %v726
      %v1194 = vpop.f32.mrf.mxu0
      %v1195 = vadd.f32 0.0, %v1194
      %1196 = vmatmul.f32.gmra.mxu0 %v729
      %v1197 = vpop.f32.mrf.mxu0
      %v1198 = vadd.f32 0.0, %v1197
      %1199 = vmatmul.f32.gmra.mxu0 %v732
      %v1200 = vpop.f32.mrf.mxu0
      %v1201 = vadd.f32 0.0, %v1200
      %1202 = vmatmul.f32.gmra.mxu0 %v735
      %v1203 = vpop.f32.mrf.mxu0
      %v1204 = vadd.f32 0.0, %v1203
      %1205 = vdwg.mxu0
      %v1206 = vadd.f32 %v1072, %v1148
      %v1207 = vadd.f32 %v1110, %v1186
      %v1208 = vadd.f32 %v1075, %v1151
      %v1209 = vadd.f32 %v1113, %v1189
      %v1210 = vadd.f32 %v1078, %v1154
      %v1211 = vadd.f32 %v1116, %v1192
      %v1212 = vadd.f32 %v1081, %v1157
      %v1213 = vadd.f32 %v1119, %v1195
      %v1214 = vadd.f32 %v1084, %v1160
      %v1215 = vadd.f32 %v1122, %v1198
      %v1216 = vadd.f32 %v1087, %v1163
      %v1217 = vadd.f32 %v1125, %v1201
      %v1218 = vadd.f32 %v1090, %v1166
      %v1219 = vadd.f32 %v1128, %v1204
      %1220 = vmatpush.msra.mxu0 0.0
      %1221 = vmatpush.msra.mxu0 0.0
      %1222 = vmatpush.msra.mxu0 0.0
      %1223 = vmatpush.msra.mxu0 0.0
      %1224 = vmatpush.msra.mxu0 %v714
      %1225 = vmatpush.msra.mxu0 %v712
      %1226 = vmatpush.msra.mxu0 %v710
      %1227 = vmatpush.msra.mxu0 %v708
      %1228 = vmatpush.msra.mxu0 %v706
      %1229 = vmatpush.msra.mxu0 %v704
      %1230 = vmatpush.msra.mxu0 %v702
      %1231 = vmatpush.msra.mxu0 %v700
      %1232 = vmatpush.msra.mxu0 %v698
      %1233 = vmatpush.msra.mxu0 %v696
      %1234 = vmatpush.msra.mxu0 %v694
      %1235 = vmatpush.msra.mxu0 %v692
      %1236 = vmatmul.f32.gmra.mxu0 %v861
      %v1237 = vpop.f32.mrf.mxu0
      %v1238 = vadd.f32 0.0, %v1237
      %1239 = vmatmul.f32.gmra.mxu0 %v864
      %v1240 = vpop.f32.mrf.mxu0
      %v1241 = vadd.f32 0.0, %v1240
      %1242 = vmatmul.f32.gmra.mxu0 %v867
      %v1243 = vpop.f32.mrf.mxu0
      %v1244 = vadd.f32 0.0, %v1243
      %1245 = vmatmul.f32.gmra.mxu0 %v870
      %v1246 = vpop.f32.mrf.mxu0
      %v1247 = vadd.f32 0.0, %v1246
      %1248 = vmatmul.f32.gmra.mxu0 %v873
      %v1249 = vpop.f32.mrf.mxu0
      %v1250 = vadd.f32 0.0, %v1249
      %1251 = vmatmul.f32.gmra.mxu0 %v876
      %v1252 = vpop.f32.mrf.mxu0
      %v1253 = vadd.f32 0.0, %v1252
      %1254 = vmatmul.f32.gmra.mxu0 %v879
      %v1255 = vpop.f32.mrf.mxu0
      %v1256 = vadd.f32 0.0, %v1255
      %1257 = vdwg.mxu0
      %1258 = vmatpush.msra.mxu0 0.0
      %1259 = vmatpush.msra.mxu0 0.0
      %1260 = vmatpush.msra.mxu0 0.0
      %1261 = vmatpush.msra.mxu0 0.0
      %1262 = vmatpush.msra.mxu0 %v715
      %1263 = vmatpush.msra.mxu0 %v713
      %1264 = vmatpush.msra.mxu0 %v711
      %1265 = vmatpush.msra.mxu0 %v709
      %1266 = vmatpush.msra.mxu0 %v707
      %1267 = vmatpush.msra.mxu0 %v705
      %1268 = vmatpush.msra.mxu0 %v703
      %1269 = vmatpush.msra.mxu0 %v701
      %1270 = vmatpush.msra.mxu0 %v699
      %1271 = vmatpush.msra.mxu0 %v697
      %1272 = vmatpush.msra.mxu0 %v695
      %1273 = vmatpush.msra.mxu0 %v693
      %1274 = vmatmul.f32.gmra.mxu0 %v861
      %v1275 = vpop.f32.mrf.mxu0
      %v1276 = vadd.f32 0.0, %v1275
      %1277 = vmatmul.f32.gmra.mxu0 %v864
      %v1278 = vpop.f32.mrf.mxu0
      %v1279 = vadd.f32 0.0, %v1278
      %1280 = vmatmul.f32.gmra.mxu0 %v867
      %v1281 = vpop.f32.mrf.mxu0
      %v1282 = vadd.f32 0.0, %v1281
      %1283 = vmatmul.f32.gmra.mxu0 %v870
      %v1284 = vpop.f32.mrf.mxu0
      %v1285 = vadd.f32 0.0, %v1284
      %1286 = vmatmul.f32.gmra.mxu0 %v873
      %v1287 = vpop.f32.mrf.mxu0
      %v1288 = vadd.f32 0.0, %v1287
      %1289 = vmatmul.f32.gmra.mxu0 %v876
      %v1290 = vpop.f32.mrf.mxu0
      %v1291 = vadd.f32 0.0, %v1290
      %1292 = vmatmul.f32.gmra.mxu0 %v879
      %v1293 = vpop.f32.mrf.mxu0
      %v1294 = vadd.f32 0.0, %v1293
      %1295 = vdwg.mxu0
      %v1296 = vadd.f32 %v1206, %v1238
      %v1297 = vadd.f32 %v1207, %v1276
      %v1298 = vadd.f32 %v1208, %v1241
      %v1299 = vadd.f32 %v1209, %v1279
      %v1300 = vadd.f32 %v1210, %v1244
      %v1301 = vadd.f32 %v1211, %v1282
      %v1302 = vadd.f32 %v1212, %v1247
      %v1303 = vadd.f32 %v1213, %v1285
      %v1304 = vadd.f32 %v1214, %v1250
      %v1305 = vadd.f32 %v1215, %v1288
      %v1306 = vadd.f32 %v1216, %v1253
      %v1307 = vadd.f32 %v1217, %v1291
      %v1308 = vadd.f32 %v1218, %v1256
      %v1309 = vadd.f32 %v1219, %v1294
      %s1310 = scalar_lea.vmem %s273, 280
      %v1311 = vld [vmem:[%s1310] sm:$0xff]
      %v1312 = vld [vmem:[%s1310 + $0x8] sm:$0xff]
      %v1313 = vld [vmem:[%s1310 + $0x10] sm:$0xff]
      %v1314 = vld [vmem:[%s1310 + $0x18] sm:$0xff]
      %v1315 = vld [vmem:[%s1310 + $0x20] sm:$0xff]
      %v1316 = vld [vmem:[%s1310 + $0x28] sm:$0xff]
      %v1317 = vld [vmem:[%s1310 + $0x30] sm:$0xff]
      %v1319 = vsel %vm344, %v1311, 0
      %v1322 = vsel %vm344, %v1312, 0
      %v1325 = vsel %vm344, %v1313, 0
      %v1328 = vsel %vm344, %v1314, 0
      %v1331 = vsel %vm344, %v1315, 0
      %v1334 = vsel %vm344, %v1316, 0
      %v1337 = vsel %vm344, %v1317, 0
      %1339 = vmatpush.msra.mxu0 0.0
      %1340 = vmatpush.msra.mxu0 0.0
      %1341 = vmatpush.msra.mxu0 0.0
      %1342 = vmatpush.msra.mxu0 0.0
      %1343 = vmatpush.msra.mxu0 %v858
      %1344 = vmatpush.msra.mxu0 %v856
      %1345 = vmatpush.msra.mxu0 %v854
      %1346 = vmatpush.msra.mxu0 %v852
      %1347 = vmatpush.msra.mxu0 %v850
      %1348 = vmatpush.msra.mxu0 %v848
      %1349 = vmatpush.msra.mxu0 %v846
      %1350 = vmatpush.msra.mxu0 %v844
      %1351 = vmatpush.msra.mxu0 %v842
      %1352 = vmatpush.msra.mxu0 %v840
      %1353 = vmatpush.msra.mxu0 %v838
      %1354 = vmatpush.msra.mxu0 %v836
      %1355 = vmatmul.f32.gmra.mxu0 %v1319
      %v1356 = vpop.f32.mrf.mxu0
      %v1357 = vadd.f32 0.0, %v1356
      %1358 = vmatmul.f32.gmra.mxu0 %v1322
      %v1359 = vpop.f32.mrf.mxu0
      %v1360 = vadd.f32 0.0, %v1359
      %1361 = vmatmul.f32.gmra.mxu0 %v1325
      %v1362 = vpop.f32.mrf.mxu0
      %v1363 = vadd.f32 0.0, %v1362
      %1364 = vmatmul.f32.gmra.mxu0 %v1328
      %v1365 = vpop.f32.mrf.mxu0
      %v1366 = vadd.f32 0.0, %v1365
      %1367 = vmatmul.f32.gmra.mxu0 %v1331
      %v1368 = vpop.f32.mrf.mxu0
      %v1369 = vadd.f32 0.0, %v1368
      %1370 = vmatmul.f32.gmra.mxu0 %v1334
      %v1371 = vpop.f32.mrf.mxu0
      %v1372 = vadd.f32 0.0, %v1371
      %1373 = vmatmul.f32.gmra.mxu0 %v1337
      %v1374 = vpop.f32.mrf.mxu0
      %v1375 = vadd.f32 0.0, %v1374
      %1376 = vdwg.mxu0
      %1377 = vmatpush.msra.mxu0 0.0
      %1378 = vmatpush.msra.mxu0 0.0
      %1379 = vmatpush.msra.mxu0 0.0
      %1380 = vmatpush.msra.mxu0 0.0
      %1381 = vmatpush.msra.mxu0 %v859
      %1382 = vmatpush.msra.mxu0 %v857
      %1383 = vmatpush.msra.mxu0 %v855
      %1384 = vmatpush.msra.mxu0 %v853
      %1385 = vmatpush.msra.mxu0 %v851
      %1386 = vmatpush.msra.mxu0 %v849
      %1387 = vmatpush.msra.mxu0 %v847
      %1388 = vmatpush.msra.mxu0 %v845
      %1389 = vmatpush.msra.mxu0 %v843
      %1390 = vmatpush.msra.mxu0 %v841
      %1391 = vmatpush.msra.mxu0 %v839
      %1392 = vmatpush.msra.mxu0 %v837
      %1393 = vmatmul.f32.gmra.mxu0 %v1319
      %v1394 = vpop.f32.mrf.mxu0
      %v1395 = vadd.f32 0.0, %v1394
      %1396 = vmatmul.f32.gmra.mxu0 %v1322
      %v1397 = vpop.f32.mrf.mxu0
      %v1398 = vadd.f32 0.0, %v1397
      %1399 = vmatmul.f32.gmra.mxu0 %v1325
      %v1400 = vpop.f32.mrf.mxu0
      %v1401 = vadd.f32 0.0, %v1400
      %1402 = vmatmul.f32.gmra.mxu0 %v1328
      %v1403 = vpop.f32.mrf.mxu0
      %v1404 = vadd.f32 0.0, %v1403
      %1405 = vmatmul.f32.gmra.mxu0 %v1331
      %v1406 = vpop.f32.mrf.mxu0
      %v1407 = vadd.f32 0.0, %v1406
      %1408 = vmatmul.f32.gmra.mxu0 %v1334
      %v1409 = vpop.f32.mrf.mxu0
      %v1410 = vadd.f32 0.0, %v1409
      %1411 = vmatmul.f32.gmra.mxu0 %v1337
      %v1412 = vpop.f32.mrf.mxu0
      %v1413 = vadd.f32 0.0, %v1412
      %1414 = vdwg.mxu0
      %v1415 = vadd.f32 %v1296, %v1357
      %v1416 = vadd.f32 %v1297, %v1395
      %v1417 = vadd.f32 %v1298, %v1360
      %v1418 = vadd.f32 %v1299, %v1398
      %v1419 = vadd.f32 %v1300, %v1363
      %v1420 = vadd.f32 %v1301, %v1401
      %v1421 = vadd.f32 %v1302, %v1366
      %v1422 = vadd.f32 %v1303, %v1404
      %v1423 = vadd.f32 %v1304, %v1369
      %v1424 = vadd.f32 %v1305, %v1407
      %v1425 = vadd.f32 %v1306, %v1372
      %v1426 = vadd.f32 %v1307, %v1410
      %v1427 = vadd.f32 %v1308, %v1375
      %v1428 = vadd.f32 %v1309, %v1413
      %v1429 = vmax.f32 %v1415, %v1416
      %v1430 = vmax.f32 %v1417, %v1418
      %v1431 = vmax.f32 %v1419, %v1420
      %v1432 = vmax.f32 %v1421, %v1422
      %v1433 = vmax.f32 %v1423, %v1424
      %v1434 = vmax.f32 %v1425, %v1426
      %v1435 = vmax.f32 %v1427, %v1428
      %v1436 = vmax.f32 %v971, %v1429
      %v1437 = vmax.f32 %v972, %v1430
      %v1438 = vmax.f32 %v973, %v1431
      %v1439 = vmax.f32 %v974, %v1432
      %v1440 = vmax.f32 %v975, %v1433
      %v1441 = vmax.f32 %v976, %v1434
      %v1442 = vmax.f32 %v977, %v1435
      %v1443 = vperm.slane %v279, 0
      %v1444 = vadd.f32 %v1436, %v1443
      %v1445 = vadd.f32 %v1437, %v1443
      %v1446 = vadd.f32 %v1438, %v1443
      %v1447 = vadd.f32 %v1439, %v1443
      %v1448 = vadd.f32 %v1440, %v1443
      %v1449 = vadd.f32 %v1441, %v1443
      %v1450 = vadd.f32 %v1442, %v1443
      %v1451 = vmax.f32 %v1444, 0.0
      %v1452 = vmax.f32 %v1445, 0.0
      %v1453 = vmax.f32 %v1446, 0.0
      %v1454 = vmax.f32 %v1447, 0.0
      %v1455 = vmax.f32 %v1448, 0.0
      %v1456 = vmax.f32 %v1449, 0.0
      %v1457 = vmax.f32 %v1450, 0.0
      %1458 = vst [vmem:[#allocation2] sm:$0xff] %v1451
      %1459 = vst [vmem:[#allocation2 + $0x8] sm:$0xff] %v1452
      %1460 = vst [vmem:[#allocation2 + $0x10] sm:$0xff] %v1453
      %1461 = vst [vmem:[#allocation2 + $0x18] sm:$0xff] %v1454
      %1462 = vst [vmem:[#allocation2 + $0x20] sm:$0xff] %v1455
      %1463 = vst [vmem:[#allocation2 + $0x28] sm:$0xff] %v1456
      %1464 = vst [vmem:[#allocation2 + $0x30] sm:$0xff] %v1457
      %1465 = vst [vmem:[#allocation2 + $0x38] sm:$0xff] 0.0
      %v1466 = vld [vmem:[%s539] sm:$0xff]
      %v1467 = vld [vmem:[%s539 + $0x8] sm:$0xff]
      %v1468 = vld [vmem:[%s539 + $0x10] sm:$0xff]
      %v1469 = vld [vmem:[%s539 + $0x18] sm:$0xff]
      %v1470 = vld [vmem:[%s539 + $0x20] sm:$0xff]
      %v1471 = vld [vmem:[%s539 + $0x28] sm:$0xff]
      %v1472 = vld [vmem:[%s539 + $0x30] sm:$0xff]
      %v1473 = vld [vmem:[%s1] sm:$0xff]
      %v1474 = vld [vmem:[%s1 + $0x8] sm:$0xff]
      %v1475 = vld [vmem:[%s1 + $0x10] sm:$0xff]
      %v1476 = vld [vmem:[%s1 + $0x18] sm:$0xff]
      %v1477 = vld [vmem:[%s1 + $0x20] sm:$0xff]
      %v1478 = vld [vmem:[%s1 + $0x28] sm:$0xff]
      %v1479 = vld [vmem:[%s1 + $0x30] sm:$0xff]
      %v1480 = vld [vmem:[%s1 + $0x38] sm:$0xff]
      %v1481 = vld [vmem:[%s1 + $0x40] sm:$0xff]
      %v1482 = vld [vmem:[%s1 + $0x48] sm:$0xff]
      %v1483 = vld [vmem:[%s1 + $0x50] sm:$0xff]
      %v1484 = vld [vmem:[%s1 + $0x58] sm:$0xff]
      %v1485 = vld [vmem:[%s1 + $0x60] sm:$0xff]
      %v1486 = vld [vmem:[%s1 + $0x68] sm:$0xff]
      %v1487 = vld [vmem:[%s1 + $0x70] sm:$0xff]
      %v1488 = vld [vmem:[%s1 + $0x78] sm:$0xff]
      %v1489 = vld [vmem:[%s1 + $0x80] sm:$0xff]
      %v1490 = vld [vmem:[%s1 + $0x88] sm:$0xff]
      %v1491 = vld [vmem:[%s1 + $0x90] sm:$0xff]
      %v1492 = vld [vmem:[%s1 + $0x98] sm:$0xff]
      %v1493 = vld [vmem:[%s1 + $0xa0] sm:$0xff]
      %v1494 = vld [vmem:[%s1 + $0xa8] sm:$0xff]
      %v1495 = vld [vmem:[%s1 + $0xb0] sm:$0xff]
      %v1496 = vld [vmem:[%s1 + $0xb8] sm:$0xff]
      %v1497 = vld [vmem:[%s683] sm:$0xff]
      %v1498 = vld [vmem:[%s683 + $0x8] sm:$0xff]
      %v1499 = vld [vmem:[%s683 + $0x10] sm:$0xff]
      %v1500 = vld [vmem:[%s683 + $0x18] sm:$0xff]
      %v1501 = vld [vmem:[%s683 + $0x20] sm:$0xff]
      %v1502 = vld [vmem:[%s683 + $0x28] sm:$0xff]
      %v1503 = vld [vmem:[%s683 + $0x30] sm:$0xff]
      %v1504 = vld [vmem:[%s319] sm:$0xff]
      %v1505 = vld [vmem:[%s319 + $0x8] sm:$0xff]
      %v1506 = vld [vmem:[%s319 + $0x10] sm:$0xff]
      %v1507 = vld [vmem:[%s319 + $0x18] sm:$0xff]
      %v1508 = vld [vmem:[%s319 + $0x20] sm:$0xff]
      %v1509 = vld [vmem:[%s319 + $0x28] sm:$0xff]
      %v1510 = vld [vmem:[%s319 + $0x30] sm:$0xff]
      %v1511 = vld [vmem:[%s319 + $0x38] sm:$0xff]
      %v1512 = vld [vmem:[%s319 + $0x40] sm:$0xff]
      %v1513 = vld [vmem:[%s319 + $0x48] sm:$0xff]
      %v1514 = vld [vmem:[%s319 + $0x50] sm:$0xff]
      %v1515 = vld [vmem:[%s319 + $0x58] sm:$0xff]
      %v1516 = vld [vmem:[%s319 + $0x60] sm:$0xff]
      %v1517 = vld [vmem:[%s319 + $0x68] sm:$0xff]
      %v1518 = vld [vmem:[%s319 + $0x70] sm:$0xff]
      %v1519 = vld [vmem:[%s319 + $0x78] sm:$0xff]
      %v1520 = vld [vmem:[%s319 + $0x80] sm:$0xff]
      %v1521 = vld [vmem:[%s319 + $0x88] sm:$0xff]
      %v1522 = vld [vmem:[%s319 + $0x90] sm:$0xff]
      %v1523 = vld [vmem:[%s319 + $0x98] sm:$0xff]
      %v1524 = vld [vmem:[%s319 + $0xa0] sm:$0xff]
      %v1525 = vld [vmem:[%s319 + $0xa8] sm:$0xff]
      %v1526 = vld [vmem:[%s319 + $0xb0] sm:$0xff]
      %v1527 = vld [vmem:[%s319 + $0xb8] sm:$0xff]
      %v1529 = vsel %vm344, %v1497, 0
      %v1532 = vsel %vm344, %v1498, 0
      %v1535 = vsel %vm344, %v1499, 0
      %v1538 = vsel %vm344, %v1500, 0
      %v1541 = vsel %vm344, %v1501, 0
      %v1544 = vsel %vm344, %v1502, 0
      %v1547 = vsel %vm344, %v1503, 0
      %1549 = vmatpush.msra.mxu0 0.0
      %1550 = vmatpush.msra.mxu0 0.0
      %1551 = vmatpush.msra.mxu0 0.0
      %1552 = vmatpush.msra.mxu0 0.0
      %1553 = vmatpush.msra.mxu0 %v1526
      %1554 = vmatpush.msra.mxu0 %v1524
      %1555 = vmatpush.msra.mxu0 %v1522
      %1556 = vmatpush.msra.mxu0 %v1520
      %1557 = vmatpush.msra.mxu0 %v1518
      %1558 = vmatpush.msra.mxu0 %v1516
      %1559 = vmatpush.msra.mxu0 %v1514
      %1560 = vmatpush.msra.mxu0 %v1512
      %1561 = vmatpush.msra.mxu0 %v1510
      %1562 = vmatpush.msra.mxu0 %v1508
      %1563 = vmatpush.msra.mxu0 %v1506
      %1564 = vmatpush.msra.mxu0 %v1504
      %1565 = vmatmul.f32.gmra.mxu0 %v1529
      %v1566 = vpop.f32.mrf.mxu0
      %v1567 = vadd.f32 0.0, %v1566
      %1568 = vmatmul.f32.gmra.mxu0 %v1532
      %v1569 = vpop.f32.mrf.mxu0
      %v1570 = vadd.f32 0.0, %v1569
      %1571 = vmatmul.f32.gmra.mxu0 %v1535
      %v1572 = vpop.f32.mrf.mxu0
      %v1573 = vadd.f32 0.0, %v1572
      %1574 = vmatmul.f32.gmra.mxu0 %v1538
      %v1575 = vpop.f32.mrf.mxu0
      %v1576 = vadd.f32 0.0, %v1575
      %1577 = vmatmul.f32.gmra.mxu0 %v1541
      %v1578 = vpop.f32.mrf.mxu0
      %v1579 = vadd.f32 0.0, %v1578
      %1580 = vmatmul.f32.gmra.mxu0 %v1544
      %v1581 = vpop.f32.mrf.mxu0
      %v1582 = vadd.f32 0.0, %v1581
      %1583 = vmatmul.f32.gmra.mxu0 %v1547
      %v1584 = vpop.f32.mrf.mxu0
      %v1585 = vadd.f32 0.0, %v1584
      %1586 = vdwg.mxu0
      %1587 = vmatpush.msra.mxu0 0.0
      %1588 = vmatpush.msra.mxu0 0.0
      %1589 = vmatpush.msra.mxu0 0.0
      %1590 = vmatpush.msra.mxu0 0.0
      %1591 = vmatpush.msra.mxu0 %v1527
      %1592 = vmatpush.msra.mxu0 %v1525
      %1593 = vmatpush.msra.mxu0 %v1523
      %1594 = vmatpush.msra.mxu0 %v1521
      %1595 = vmatpush.msra.mxu0 %v1519
      %1596 = vmatpush.msra.mxu0 %v1517
      %1597 = vmatpush.msra.mxu0 %v1515
      %1598 = vmatpush.msra.mxu0 %v1513
      %1599 = vmatpush.msra.mxu0 %v1511
      %1600 = vmatpush.msra.mxu0 %v1509
      %1601 = vmatpush.msra.mxu0 %v1507
      %1602 = vmatpush.msra.mxu0 %v1505
      %1603 = vmatmul.f32.gmra.mxu0 %v1529
      %v1604 = vpop.f32.mrf.mxu0
      %v1605 = vadd.f32 0.0, %v1604
      %1606 = vmatmul.f32.gmra.mxu0 %v1532
      %v1607 = vpop.f32.mrf.mxu0
      %v1608 = vadd.f32 0.0, %v1607
      %1609 = vmatmul.f32.gmra.mxu0 %v1535
      %v1610 = vpop.f32.mrf.mxu0
      %v1611 = vadd.f32 0.0, %v1610
      %1612 = vmatmul.f32.gmra.mxu0 %v1538
      %v1613 = vpop.f32.mrf.mxu0
      %v1614 = vadd.f32 0.0, %v1613
      %1615 = vmatmul.f32.gmra.mxu0 %v1541
      %v1616 = vpop.f32.mrf.mxu0
      %v1617 = vadd.f32 0.0, %v1616
      %1618 = vmatmul.f32.gmra.mxu0 %v1544
      %v1619 = vpop.f32.mrf.mxu0
      %v1620 = vadd.f32 0.0, %v1619
      %1621 = vmatmul.f32.gmra.mxu0 %v1547
      %v1622 = vpop.f32.mrf.mxu0
      %v1623 = vadd.f32 0.0, %v1622
      %1624 = vdwg.mxu0
      %v1626 = vsel %vm344, %v1466, 0
      %v1629 = vsel %vm344, %v1467, 0
      %v1632 = vsel %vm344, %v1468, 0
      %v1635 = vsel %vm344, %v1469, 0
      %v1638 = vsel %vm344, %v1470, 0
      %v1641 = vsel %vm344, %v1471, 0
      %v1644 = vsel %vm344, %v1472, 0
      %1646 = vmatpush.msra.mxu0 0.0
      %1647 = vmatpush.msra.mxu0 0.0
      %1648 = vmatpush.msra.mxu0 0.0
      %1649 = vmatpush.msra.mxu0 0.0
      %1650 = vmatpush.msra.mxu0 %v1495
      %1651 = vmatpush.msra.mxu0 %v1493
      %1652 = vmatpush.msra.mxu0 %v1491
      %1653 = vmatpush.msra.mxu0 %v1489
      %1654 = vmatpush.msra.mxu0 %v1487
      %1655 = vmatpush.msra.mxu0 %v1485
      %1656 = vmatpush.msra.mxu0 %v1483
      %1657 = vmatpush.msra.mxu0 %v1481
      %1658 = vmatpush.msra.mxu0 %v1479
      %1659 = vmatpush.msra.mxu0 %v1477
      %1660 = vmatpush.msra.mxu0 %v1475
      %1661 = vmatpush.msra.mxu0 %v1473
      %1662 = vmatmul.f32.gmra.mxu0 %v1626
      %v1663 = vpop.f32.mrf.mxu0
      %v1664 = vadd.f32 %v1567, %v1663
      %1665 = vmatmul.f32.gmra.mxu0 %v1629
      %v1666 = vpop.f32.mrf.mxu0
      %v1667 = vadd.f32 %v1570, %v1666
      %1668 = vmatmul.f32.gmra.mxu0 %v1632
      %v1669 = vpop.f32.mrf.mxu0
      %v1670 = vadd.f32 %v1573, %v1669
      %1671 = vmatmul.f32.gmra.mxu0 %v1635
      %v1672 = vpop.f32.mrf.mxu0
      %v1673 = vadd.f32 %v1576, %v1672
      %1674 = vmatmul.f32.gmra.mxu0 %v1638
      %v1675 = vpop.f32.mrf.mxu0
      %v1676 = vadd.f32 %v1579, %v1675
      %1677 = vmatmul.f32.gmra.mxu0 %v1641
      %v1678 = vpop.f32.mrf.mxu0
      %v1679 = vadd.f32 %v1582, %v1678
      %1680 = vmatmul.f32.gmra.mxu0 %v1644
      %v1681 = vpop.f32.mrf.mxu0
      %v1682 = vadd.f32 %v1585, %v1681
      %1683 = vdwg.mxu0
      %1684 = vmatpush.msra.mxu0 0.0
      %1685 = vmatpush.msra.mxu0 0.0
      %1686 = vmatpush.msra.mxu0 0.0
      %1687 = vmatpush.msra.mxu0 0.0
      %1688 = vmatpush.msra.mxu0 %v1496
      %1689 = vmatpush.msra.mxu0 %v1494
      %1690 = vmatpush.msra.mxu0 %v1492
      %1691 = vmatpush.msra.mxu0 %v1490
      %1692 = vmatpush.msra.mxu0 %v1488
      %1693 = vmatpush.msra.mxu0 %v1486
      %1694 = vmatpush.msra.mxu0 %v1484
      %1695 = vmatpush.msra.mxu0 %v1482
      %1696 = vmatpush.msra.mxu0 %v1480
      %1697 = vmatpush.msra.mxu0 %v1478
      %1698 = vmatpush.msra.mxu0 %v1476
      %1699 = vmatpush.msra.mxu0 %v1474
      %1700 = vmatmul.f32.gmra.mxu0 %v1626
      %v1701 = vpop.f32.mrf.mxu0
      %v1702 = vadd.f32 %v1605, %v1701
      %1703 = vmatmul.f32.gmra.mxu0 %v1629
      %v1704 = vpop.f32.mrf.mxu0
      %v1705 = vadd.f32 %v1608, %v1704
      %1706 = vmatmul.f32.gmra.mxu0 %v1632
      %v1707 = vpop.f32.mrf.mxu0
      %v1708 = vadd.f32 %v1611, %v1707
      %1709 = vmatmul.f32.gmra.mxu0 %v1635
      %v1710 = vpop.f32.mrf.mxu0
      %v1711 = vadd.f32 %v1614, %v1710
      %1712 = vmatmul.f32.gmra.mxu0 %v1638
      %v1713 = vpop.f32.mrf.mxu0
      %v1714 = vadd.f32 %v1617, %v1713
      %1715 = vmatmul.f32.gmra.mxu0 %v1641
      %v1716 = vpop.f32.mrf.mxu0
      %v1717 = vadd.f32 %v1620, %v1716
      %1718 = vmatmul.f32.gmra.mxu0 %v1644
      %v1719 = vpop.f32.mrf.mxu0
      %v1720 = vadd.f32 %v1623, %v1719
      %1721 = vdwg.mxu0
      %v1722 = vld [vmem:[%s827] sm:$0xff]
      %v1723 = vld [vmem:[%s827 + $0x8] sm:$0xff]
      %v1724 = vld [vmem:[%s827 + $0x10] sm:$0xff]
      %v1725 = vld [vmem:[%s827 + $0x18] sm:$0xff]
      %v1726 = vld [vmem:[%s827 + $0x20] sm:$0xff]
      %v1727 = vld [vmem:[%s827 + $0x28] sm:$0xff]
      %v1728 = vld [vmem:[%s827 + $0x30] sm:$0xff]
      %v1729 = vld [vmem:[%s547] sm:$0xff]
      %v1730 = vld [vmem:[%s547 + $0x8] sm:$0xff]
      %v1731 = vld [vmem:[%s547 + $0x10] sm:$0xff]
      %v1732 = vld [vmem:[%s547 + $0x18] sm:$0xff]
      %v1733 = vld [vmem:[%s547 + $0x20] sm:$0xff]
      %v1734 = vld [vmem:[%s547 + $0x28] sm:$0xff]
      %v1735 = vld [vmem:[%s547 + $0x30] sm:$0xff]
      %v1736 = vld [vmem:[%s547 + $0x38] sm:$0xff]
      %v1737 = vld [vmem:[%s547 + $0x40] sm:$0xff]
      %v1738 = vld [vmem:[%s547 + $0x48] sm:$0xff]
      %v1739 = vld [vmem:[%s547 + $0x50] sm:$0xff]
      %v1740 = vld [vmem:[%s547 + $0x58] sm:$0xff]
      %v1741 = vld [vmem:[%s547 + $0x60] sm:$0xff]
      %v1742 = vld [vmem:[%s547 + $0x68] sm:$0xff]
      %v1743 = vld [vmem:[%s547 + $0x70] sm:$0xff]
      %v1744 = vld [vmem:[%s547 + $0x78] sm:$0xff]
      %v1745 = vld [vmem:[%s547 + $0x80] sm:$0xff]
      %v1746 = vld [vmem:[%s547 + $0x88] sm:$0xff]
      %v1747 = vld [vmem:[%s547 + $0x90] sm:$0xff]
      %v1748 = vld [vmem:[%s547 + $0x98] sm:$0xff]
      %v1749 = vld [vmem:[%s547 + $0xa0] sm:$0xff]
      %v1750 = vld [vmem:[%s547 + $0xa8] sm:$0xff]
      %v1751 = vld [vmem:[%s547 + $0xb0] sm:$0xff]
      %v1752 = vld [vmem:[%s547 + $0xb8] sm:$0xff]
      %v1754 = vsel %vm344, %v1722, 0
      %v1757 = vsel %vm344, %v1723, 0
      %v1760 = vsel %vm344, %v1724, 0
      %v1763 = vsel %vm344, %v1725, 0
      %v1766 = vsel %vm344, %v1726, 0
      %v1769 = vsel %vm344, %v1727, 0
      %v1772 = vsel %vm344, %v1728, 0
      %1774 = vmatpush.msra.mxu0 0.0
      %1775 = vmatpush.msra.mxu0 0.0
      %1776 = vmatpush.msra.mxu0 0.0
      %1777 = vmatpush.msra.mxu0 0.0
      %1778 = vmatpush.msra.mxu0 %v1751
      %1779 = vmatpush.msra.mxu0 %v1749
      %1780 = vmatpush.msra.mxu0 %v1747
      %1781 = vmatpush.msra.mxu0 %v1745
      %1782 = vmatpush.msra.mxu0 %v1743
      %1783 = vmatpush.msra.mxu0 %v1741
      %1784 = vmatpush.msra.mxu0 %v1739
      %1785 = vmatpush.msra.mxu0 %v1737
      %1786 = vmatpush.msra.mxu0 %v1735
      %1787 = vmatpush.msra.mxu0 %v1733
      %1788 = vmatpush.msra.mxu0 %v1731
      %1789 = vmatpush.msra.mxu0 %v1729
      %1790 = vmatmul.f32.gmra.mxu0 %v1754
      %v1791 = vpop.f32.mrf.mxu0
      %v1792 = vadd.f32 0.0, %v1791
      %1793 = vmatmul.f32.gmra.mxu0 %v1757
      %v1794 = vpop.f32.mrf.mxu0
      %v1795 = vadd.f32 0.0, %v1794
      %1796 = vmatmul.f32.gmra.mxu0 %v1760
      %v1797 = vpop.f32.mrf.mxu0
      %v1798 = vadd.f32 0.0, %v1797
      %1799 = vmatmul.f32.gmra.mxu0 %v1763
      %v1800 = vpop.f32.mrf.mxu0
      %v1801 = vadd.f32 0.0, %v1800
      %1802 = vmatmul.f32.gmra.mxu0 %v1766
      %v1803 = vpop.f32.mrf.mxu0
      %v1804 = vadd.f32 0.0, %v1803
      %1805 = vmatmul.f32.gmra.mxu0 %v1769
      %v1806 = vpop.f32.mrf.mxu0
      %v1807 = vadd.f32 0.0, %v1806
      %1808 = vmatmul.f32.gmra.mxu0 %v1772
      %v1809 = vpop.f32.mrf.mxu0
      %v1810 = vadd.f32 0.0, %v1809
      %1811 = vdwg.mxu0
      %1812 = vmatpush.msra.mxu0 0.0
      %1813 = vmatpush.msra.mxu0 0.0
      %1814 = vmatpush.msra.mxu0 0.0
      %1815 = vmatpush.msra.mxu0 0.0
      %1816 = vmatpush.msra.mxu0 %v1752
      %1817 = vmatpush.msra.mxu0 %v1750
      %1818 = vmatpush.msra.mxu0 %v1748
      %1819 = vmatpush.msra.mxu0 %v1746
      %1820 = vmatpush.msra.mxu0 %v1744
      %1821 = vmatpush.msra.mxu0 %v1742
      %1822 = vmatpush.msra.mxu0 %v1740
      %1823 = vmatpush.msra.mxu0 %v1738
      %1824 = vmatpush.msra.mxu0 %v1736
      %1825 = vmatpush.msra.mxu0 %v1734
      %1826 = vmatpush.msra.mxu0 %v1732
      %1827 = vmatpush.msra.mxu0 %v1730
      %1828 = vmatmul.f32.gmra.mxu0 %v1754
      %v1829 = vpop.f32.mrf.mxu0
      %v1830 = vadd.f32 0.0, %v1829
      %1831 = vmatmul.f32.gmra.mxu0 %v1757
      %v1832 = vpop.f32.mrf.mxu0
      %v1833 = vadd.f32 0.0, %v1832
      %1834 = vmatmul.f32.gmra.mxu0 %v1760
      %v1835 = vpop.f32.mrf.mxu0
      %v1836 = vadd.f32 0.0, %v1835
      %1837 = vmatmul.f32.gmra.mxu0 %v1763
      %v1838 = vpop.f32.mrf.mxu0
      %v1839 = vadd.f32 0.0, %v1838
      %1840 = vmatmul.f32.gmra.mxu0 %v1766
      %v1841 = vpop.f32.mrf.mxu0
      %v1842 = vadd.f32 0.0, %v1841
      %1843 = vmatmul.f32.gmra.mxu0 %v1769
      %v1844 = vpop.f32.mrf.mxu0
      %v1845 = vadd.f32 0.0, %v1844
      %1846 = vmatmul.f32.gmra.mxu0 %v1772
      %v1847 = vpop.f32.mrf.mxu0
      %v1848 = vadd.f32 0.0, %v1847
      %1849 = vdwg.mxu0
      %v1850 = vadd.f32 %v1664, %v1792
      %v1851 = vadd.f32 %v1702, %v1830
      %v1852 = vadd.f32 %v1667, %v1795
      %v1853 = vadd.f32 %v1705, %v1833
      %v1854 = vadd.f32 %v1670, %v1798
      %v1855 = vadd.f32 %v1708, %v1836
      %v1856 = vadd.f32 %v1673, %v1801
      %v1857 = vadd.f32 %v1711, %v1839
      %v1858 = vadd.f32 %v1676, %v1804
      %v1859 = vadd.f32 %v1714, %v1842
      %v1860 = vadd.f32 %v1679, %v1807
      %v1861 = vadd.f32 %v1717, %v1845
      %v1862 = vadd.f32 %v1682, %v1810
      %v1863 = vadd.f32 %v1720, %v1848
      %v1864 = vld [vmem:[%s1310] sm:$0xff]
      %v1865 = vld [vmem:[%s1310 + $0x8] sm:$0xff]
      %v1866 = vld [vmem:[%s1310 + $0x10] sm:$0xff]
      %v1867 = vld [vmem:[%s1310 + $0x18] sm:$0xff]
      %v1868 = vld [vmem:[%s1310 + $0x20] sm:$0xff]
      %v1869 = vld [vmem:[%s1310 + $0x28] sm:$0xff]
      %v1870 = vld [vmem:[%s1310 + $0x30] sm:$0xff]
      %v1871 = vld [vmem:[%s691] sm:$0xff]
      %v1872 = vld [vmem:[%s691 + $0x8] sm:$0xff]
      %v1873 = vld [vmem:[%s691 + $0x10] sm:$0xff]
      %v1874 = vld [vmem:[%s691 + $0x18] sm:$0xff]
      %v1875 = vld [vmem:[%s691 + $0x20] sm:$0xff]
      %v1876 = vld [vmem:[%s691 + $0x28] sm:$0xff]
      %v1877 = vld [vmem:[%s691 + $0x30] sm:$0xff]
      %v1878 = vld [vmem:[%s691 + $0x38] sm:$0xff]
      %v1879 = vld [vmem:[%s691 + $0x40] sm:$0xff]
      %v1880 = vld [vmem:[%s691 + $0x48] sm:$0xff]
      %v1881 = vld [vmem:[%s691 + $0x50] sm:$0xff]
      %v1882 = vld [vmem:[%s691 + $0x58] sm:$0xff]
      %v1883 = vld [vmem:[%s691 + $0x60] sm:$0xff]
      %v1884 = vld [vmem:[%s691 + $0x68] sm:$0xff]
      %v1885 = vld [vmem:[%s691 + $0x70] sm:$0xff]
      %v1886 = vld [vmem:[%s691 + $0x78] sm:$0xff]
      %v1887 = vld [vmem:[%s691 + $0x80] sm:$0xff]
      %v1888 = vld [vmem:[%s691 + $0x88] sm:$0xff]
      %v1889 = vld [vmem:[%s691 + $0x90] sm:$0xff]
      %v1890 = vld [vmem:[%s691 + $0x98] sm:$0xff]
      %v1891 = vld [vmem:[%s691 + $0xa0] sm:$0xff]
      %v1892 = vld [vmem:[%s691 + $0xa8] sm:$0xff]
      %v1893 = vld [vmem:[%s691 + $0xb0] sm:$0xff]
      %v1894 = vld [vmem:[%s691 + $0xb8] sm:$0xff]
      %v1896 = vsel %vm344, %v1864, 0
      %v1899 = vsel %vm344, %v1865, 0
      %v1902 = vsel %vm344, %v1866, 0
      %v1905 = vsel %vm344, %v1867, 0
      %v1908 = vsel %vm344, %v1868, 0
      %v1911 = vsel %vm344, %v1869, 0
      %v1914 = vsel %vm344, %v1870, 0
      %1916 = vmatpush.msra.mxu0 0.0
      %1917 = vmatpush.msra.mxu0 0.0
      %1918 = vmatpush.msra.mxu0 0.0
      %1919 = vmatpush.msra.mxu0 0.0
      %1920 = vmatpush.msra.mxu0 %v1893
      %1921 = vmatpush.msra.mxu0 %v1891
      %1922 = vmatpush.msra.mxu0 %v1889
      %1923 = vmatpush.msra.mxu0 %v1887
      %1924 = vmatpush.msra.mxu0 %v1885
      %1925 = vmatpush.msra.mxu0 %v1883
      %1926 = vmatpush.msra.mxu0 %v1881
      %1927 = vmatpush.msra.mxu0 %v1879
      %1928 = vmatpush.msra.mxu0 %v1877
      %1929 = vmatpush.msra.mxu0 %v1875
      %1930 = vmatpush.msra.mxu0 %v1873
      %1931 = vmatpush.msra.mxu0 %v1871
      %1932 = vmatmul.f32.gmra.mxu0 %v1896
      %v1933 = vpop.f32.mrf.mxu0
      %v1934 = vadd.f32 0.0, %v1933
      %1935 = vmatmul.f32.gmra.mxu0 %v1899
      %v1936 = vpop.f32.mrf.mxu0
      %v1937 = vadd.f32 0.0, %v1936
      %1938 = vmatmul.f32.gmra.mxu0 %v1902
      %v1939 = vpop.f32.mrf.mxu0
      %v1940 = vadd.f32 0.0, %v1939
      %1941 = vmatmul.f32.gmra.mxu0 %v1905
      %v1942 = vpop.f32.mrf.mxu0
      %v1943 = vadd.f32 0.0, %v1942
      %1944 = vmatmul.f32.gmra.mxu0 %v1908
      %v1945 = vpop.f32.mrf.mxu0
      %v1946 = vadd.f32 0.0, %v1945
      %1947 = vmatmul.f32.gmra.mxu0 %v1911
      %v1948 = vpop.f32.mrf.mxu0
      %v1949 = vadd.f32 0.0, %v1948
      %1950 = vmatmul.f32.gmra.mxu0 %v1914
      %v1951 = vpop.f32.mrf.mxu0
      %v1952 = vadd.f32 0.0, %v1951
      %1953 = vdwg.mxu0
      %1954 = vmatpush.msra.mxu0 0.0
      %1955 = vmatpush.msra.mxu0 0.0
      %1956 = vmatpush.msra.mxu0 0.0
      %1957 = vmatpush.msra.mxu0 0.0
      %1958 = vmatpush.msra.mxu0 %v1894
      %1959 = vmatpush.msra.mxu0 %v1892
      %1960 = vmatpush.msra.mxu0 %v1890
      %1961 = vmatpush.msra.mxu0 %v1888
      %1962 = vmatpush.msra.mxu0 %v1886
      %1963 = vmatpush.msra.mxu0 %v1884
      %1964 = vmatpush.msra.mxu0 %v1882
      %1965 = vmatpush.msra.mxu0 %v1880
      %1966 = vmatpush.msra.mxu0 %v1878
      %1967 = vmatpush.msra.mxu0 %v1876
      %1968 = vmatpush.msra.mxu0 %v1874
      %1969 = vmatpush.msra.mxu0 %v1872
      %1970 = vmatmul.f32.gmra.mxu0 %v1896
      %v1971 = vpop.f32.mrf.mxu0
      %v1972 = vadd.f32 0.0, %v1971
      %1973 = vmatmul.f32.gmra.mxu0 %v1899
      %v1974 = vpop.f32.mrf.mxu0
      %v1975 = vadd.f32 0.0, %v1974
      %1976 = vmatmul.f32.gmra.mxu0 %v1902
      %v1977 = vpop.f32.mrf.mxu0
      %v1978 = vadd.f32 0.0, %v1977
      %1979 = vmatmul.f32.gmra.mxu0 %v1905
      %v1980 = vpop.f32.mrf.mxu0
      %v1981 = vadd.f32 0.0, %v1980
      %1982 = vmatmul.f32.gmra.mxu0 %v1908
      %v1983 = vpop.f32.mrf.mxu0
      %v1984 = vadd.f32 0.0, %v1983
      %1985 = vmatmul.f32.gmra.mxu0 %v1911
      %v1986 = vpop.f32.mrf.mxu0
      %v1987 = vadd.f32 0.0, %v1986
      %1988 = vmatmul.f32.gmra.mxu0 %v1914
      %v1989 = vpop.f32.mrf.mxu0
      %v1990 = vadd.f32 0.0, %v1989
      %1991 = vdwg.mxu0
      %v1992 = vadd.f32 %v1850, %v1934
      %v1993 = vadd.f32 %v1851, %v1972
      %v1994 = vadd.f32 %v1852, %v1937
      %v1995 = vadd.f32 %v1853, %v1975
      %v1996 = vadd.f32 %v1854, %v1940
      %v1997 = vadd.f32 %v1855, %v1978
      %v1998 = vadd.f32 %v1856, %v1943
      %v1999 = vadd.f32 %v1857, %v1981
      %v2000 = vadd.f32 %v1858, %v1946
      %v2001 = vadd.f32 %v1859, %v1984
      %v2002 = vadd.f32 %v1860, %v1949
      %v2003 = vadd.f32 %v1861, %v1987
      %v2004 = vadd.f32 %v1862, %v1952
      %v2005 = vadd.f32 %v1863, %v1990
      %s2006 = scalar_lea.vmem %s273, 336
      %v2007 = vld [vmem:[%s2006] sm:$0xff]
      %v2008 = vld [vmem:[%s2006 + $0x8] sm:$0xff]
      %v2009 = vld [vmem:[%s2006 + $0x10] sm:$0xff]
      %v2010 = vld [vmem:[%s2006 + $0x18] sm:$0xff]
      %v2011 = vld [vmem:[%s2006 + $0x20] sm:$0xff]
      %v2012 = vld [vmem:[%s2006 + $0x28] sm:$0xff]
      %v2013 = vld [vmem:[%s2006 + $0x30] sm:$0xff]
      %v2014 = vld [vmem:[%s835] sm:$0xff]
      %v2015 = vld [vmem:[%s835 + $0x8] sm:$0xff]
      %v2016 = vld [vmem:[%s835 + $0x10] sm:$0xff]
      %v2017 = vld [vmem:[%s835 + $0x18] sm:$0xff]
      %v2018 = vld [vmem:[%s835 + $0x20] sm:$0xff]
      %v2019 = vld [vmem:[%s835 + $0x28] sm:$0xff]
      %v2020 = vld [vmem:[%s835 + $0x30] sm:$0xff]
      %v2021 = vld [vmem:[%s835 + $0x38] sm:$0xff]
      %v2022 = vld [vmem:[%s835 + $0x40] sm:$0xff]
      %v2023 = vld [vmem:[%s835 + $0x48] sm:$0xff]
      %v2024 = vld [vmem:[%s835 + $0x50] sm:$0xff]
      %v2025 = vld [vmem:[%s835 + $0x58] sm:$0xff]
      %v2026 = vld [vmem:[%s835 + $0x60] sm:$0xff]
      %v2027 = vld [vmem:[%s835 + $0x68] sm:$0xff]
      %v2028 = vld [vmem:[%s835 + $0x70] sm:$0xff]
      %v2029 = vld [vmem:[%s835 + $0x78] sm:$0xff]
      %v2030 = vld [vmem:[%s835 + $0x80] sm:$0xff]
      %v2031 = vld [vmem:[%s835 + $0x88] sm:$0xff]
      %v2032 = vld [vmem:[%s835 + $0x90] sm:$0xff]
      %v2033 = vld [vmem:[%s835 + $0x98] sm:$0xff]
      %v2034 = vld [vmem:[%s835 + $0xa0] sm:$0xff]
      %v2035 = vld [vmem:[%s835 + $0xa8] sm:$0xff]
      %v2036 = vld [vmem:[%s835 + $0xb0] sm:$0xff]
      %v2037 = vld [vmem:[%s835 + $0xb8] sm:$0xff]
      %v2039 = vsel %vm344, %v2007, 0
      %v2042 = vsel %vm344, %v2008, 0
      %v2045 = vsel %vm344, %v2009, 0
      %v2048 = vsel %vm344, %v2010, 0
      %v2051 = vsel %vm344, %v2011, 0
      %v2054 = vsel %vm344, %v2012, 0
      %v2057 = vsel %vm344, %v2013, 0
      %2059 = vmatpush.msra.mxu0 0.0
      %2060 = vmatpush.msra.mxu0 0.0
      %2061 = vmatpush.msra.mxu0 0.0
      %2062 = vmatpush.msra.mxu0 0.0
      %2063 = vmatpush.msra.mxu0 %v2036
      %2064 = vmatpush.msra.mxu0 %v2034
      %2065 = vmatpush.msra.mxu0 %v2032
      %2066 = vmatpush.msra.mxu0 %v2030
      %2067 = vmatpush.msra.mxu0 %v2028
      %2068 = vmatpush.msra.mxu0 %v2026
      %2069 = vmatpush.msra.mxu0 %v2024
      %2070 = vmatpush.msra.mxu0 %v2022
      %2071 = vmatpush.msra.mxu0 %v2020
      %2072 = vmatpush.msra.mxu0 %v2018
      %2073 = vmatpush.msra.mxu0 %v2016
      %2074 = vmatpush.msra.mxu0 %v2014
      %2075 = vmatmul.f32.gmra.mxu0 %v2039
      %v2076 = vpop.f32.mrf.mxu0
      %v2077 = vadd.f32 0.0, %v2076
      %2078 = vmatmul.f32.gmra.mxu0 %v2042
      %v2079 = vpop.f32.mrf.mxu0
      %v2080 = vadd.f32 0.0, %v2079
      %2081 = vmatmul.f32.gmra.mxu0 %v2045
      %v2082 = vpop.f32.mrf.mxu0
      %v2083 = vadd.f32 0.0, %v2082
      %2084 = vmatmul.f32.gmra.mxu0 %v2048
      %v2085 = vpop.f32.mrf.mxu0
      %v2086 = vadd.f32 0.0, %v2085
      %2087 = vmatmul.f32.gmra.mxu0 %v2051
      %v2088 = vpop.f32.mrf.mxu0
      %v2089 = vadd.f32 0.0, %v2088
      %2090 = vmatmul.f32.gmra.mxu0 %v2054
      %v2091 = vpop.f32.mrf.mxu0
      %v2092 = vadd.f32 0.0, %v2091
      %2093 = vmatmul.f32.gmra.mxu0 %v2057
      %v2094 = vpop.f32.mrf.mxu0
      %v2095 = vadd.f32 0.0, %v2094
      %2096 = vdwg.mxu0
      %2097 = vmatpush.msra.mxu0 0.0
      %2098 = vmatpush.msra.mxu0 0.0
      %2099 = vmatpush.msra.mxu0 0.0
      %2100 = vmatpush.msra.mxu0 0.0
      %2101 = vmatpush.msra.mxu0 %v2037
      %2102 = vmatpush.msra.mxu0 %v2035
      %2103 = vmatpush.msra.mxu0 %v2033
      %2104 = vmatpush.msra.mxu0 %v2031
      %2105 = vmatpush.msra.mxu0 %v2029
      %2106 = vmatpush.msra.mxu0 %v2027
      %2107 = vmatpush.msra.mxu0 %v2025
      %2108 = vmatpush.msra.mxu0 %v2023
      %2109 = vmatpush.msra.mxu0 %v2021
      %2110 = vmatpush.msra.mxu0 %v2019
      %2111 = vmatpush.msra.mxu0 %v2017
      %2112 = vmatpush.msra.mxu0 %v2015
      %2113 = vmatmul.f32.gmra.mxu0 %v2039
      %v2114 = vpop.f32.mrf.mxu0
      %v2115 = vadd.f32 0.0, %v2114
      %2116 = vmatmul.f32.gmra.mxu0 %v2042
      %v2117 = vpop.f32.mrf.mxu0
      %v2118 = vadd.f32 0.0, %v2117
      %2119 = vmatmul.f32.gmra.mxu0 %v2045
      %v2120 = vpop.f32.mrf.mxu0
      %v2121 = vadd.f32 0.0, %v2120
      %2122 = vmatmul.f32.gmra.mxu0 %v2048
      %v2123 = vpop.f32.mrf.mxu0
      %v2124 = vadd.f32 0.0, %v2123
      %2125 = vmatmul.f32.gmra.mxu0 %v2051
      %v2126 = vpop.f32.mrf.mxu0
      %v2127 = vadd.f32 0.0, %v2126
      %2128 = vmatmul.f32.gmra.mxu0 %v2054
      %v2129 = vpop.f32.mrf.mxu0
      %v2130 = vadd.f32 0.0, %v2129
      %2131 = vmatmul.f32.gmra.mxu0 %v2057
      %v2132 = vpop.f32.mrf.mxu0
      %v2133 = vadd.f32 0.0, %v2132
      %2134 = vdwg.mxu0
      %v2135 = vadd.f32 %v1992, %v2077
      %v2136 = vadd.f32 %v1993, %v2115
      %v2137 = vadd.f32 %v1994, %v2080
      %v2138 = vadd.f32 %v1995, %v2118
      %v2139 = vadd.f32 %v1996, %v2083
      %v2140 = vadd.f32 %v1997, %v2121
      %v2141 = vadd.f32 %v1998, %v2086
      %v2142 = vadd.f32 %v1999, %v2124
      %v2143 = vadd.f32 %v2000, %v2089
      %v2144 = vadd.f32 %v2001, %v2127
      %v2145 = vadd.f32 %v2002, %v2092
      %v2146 = vadd.f32 %v2003, %v2130
      %v2147 = vadd.f32 %v2004, %v2095
      %v2148 = vadd.f32 %v2005, %v2133
      %v2149 = vmax.f32 %v2135, %v2136
      %v2150 = vmax.f32 %v2137, %v2138
      %v2151 = vmax.f32 %v2139, %v2140
      %v2152 = vmax.f32 %v2141, %v2142
      %v2153 = vmax.f32 %v2143, %v2144
      %v2154 = vmax.f32 %v2145, %v2146
      %v2155 = vmax.f32 %v2147, %v2148
      %2156 = vmatpush.msra.mxu0 0.0
      %2157 = vmatpush.msra.mxu0 0.0
      %2158 = vmatpush.msra.mxu0 0.0
      %2159 = vmatpush.msra.mxu0 0.0
      %2160 = vmatpush.msra.mxu0 %v1526
      %2161 = vmatpush.msra.mxu0 %v1524
      %2162 = vmatpush.msra.mxu0 %v1522
      %2163 = vmatpush.msra.mxu0 %v1520
      %2164 = vmatpush.msra.mxu0 %v1518
      %2165 = vmatpush.msra.mxu0 %v1516
      %2166 = vmatpush.msra.mxu0 %v1514
      %2167 = vmatpush.msra.mxu0 %v1512
      %2168 = vmatpush.msra.mxu0 %v1510
      %2169 = vmatpush.msra.mxu0 %v1508
      %2170 = vmatpush.msra.mxu0 %v1506
      %2171 = vmatpush.msra.mxu0 %v1504
      %2172 = vmatmul.f32.gmra.mxu0 %v1754
      %v2173 = vpop.f32.mrf.mxu0
      %v2174 = vadd.f32 0.0, %v2173
      %2175 = vmatmul.f32.gmra.mxu0 %v1757
      %v2176 = vpop.f32.mrf.mxu0
      %v2177 = vadd.f32 0.0, %v2176
      %2178 = vmatmul.f32.gmra.mxu0 %v1760
      %v2179 = vpop.f32.mrf.mxu0
      %v2180 = vadd.f32 0.0, %v2179
      %2181 = vmatmul.f32.gmra.mxu0 %v1763
      %v2182 = vpop.f32.mrf.mxu0
      %v2183 = vadd.f32 0.0, %v2182
      %2184 = vmatmul.f32.gmra.mxu0 %v1766
      %v2185 = vpop.f32.mrf.mxu0
      %v2186 = vadd.f32 0.0, %v2185
      %2187 = vmatmul.f32.gmra.mxu0 %v1769
      %v2188 = vpop.f32.mrf.mxu0
      %v2189 = vadd.f32 0.0, %v2188
      %2190 = vmatmul.f32.gmra.mxu0 %v1772
      %v2191 = vpop.f32.mrf.mxu0
      %v2192 = vadd.f32 0.0, %v2191
      %2193 = vdwg.mxu0
      %2194 = vmatpush.msra.mxu0 0.0
      %2195 = vmatpush.msra.mxu0 0.0
      %2196 = vmatpush.msra.mxu0 0.0
      %2197 = vmatpush.msra.mxu0 0.0
      %2198 = vmatpush.msra.mxu0 %v1527
      %2199 = vmatpush.msra.mxu0 %v1525
      %2200 = vmatpush.msra.mxu0 %v1523
      %2201 = vmatpush.msra.mxu0 %v1521
      %2202 = vmatpush.msra.mxu0 %v1519
      %2203 = vmatpush.msra.mxu0 %v1517
      %2204 = vmatpush.msra.mxu0 %v1515
      %2205 = vmatpush.msra.mxu0 %v1513
      %2206 = vmatpush.msra.mxu0 %v1511
      %2207 = vmatpush.msra.mxu0 %v1509
      %2208 = vmatpush.msra.mxu0 %v1507
      %2209 = vmatpush.msra.mxu0 %v1505
      %2210 = vmatmul.f32.gmra.mxu0 %v1754
      %v2211 = vpop.f32.mrf.mxu0
      %v2212 = vadd.f32 0.0, %v2211
      %2213 = vmatmul.f32.gmra.mxu0 %v1757
      %v2214 = vpop.f32.mrf.mxu0
      %v2215 = vadd.f32 0.0, %v2214
      %2216 = vmatmul.f32.gmra.mxu0 %v1760
      %v2217 = vpop.f32.mrf.mxu0
      %v2218 = vadd.f32 0.0, %v2217
      %2219 = vmatmul.f32.gmra.mxu0 %v1763
      %v2220 = vpop.f32.mrf.mxu0
      %v2221 = vadd.f32 0.0, %v2220
      %2222 = vmatmul.f32.gmra.mxu0 %v1766
      %v2223 = vpop.f32.mrf.mxu0
      %v2224 = vadd.f32 0.0, %v2223
      %2225 = vmatmul.f32.gmra.mxu0 %v1769
      %v2226 = vpop.f32.mrf.mxu0
      %v2227 = vadd.f32 0.0, %v2226
      %2228 = vmatmul.f32.gmra.mxu0 %v1772
      %v2229 = vpop.f32.mrf.mxu0
      %v2230 = vadd.f32 0.0, %v2229
      %2231 = vdwg.mxu0
      %2232 = vmatpush.msra.mxu0 0.0
      %2233 = vmatpush.msra.mxu0 0.0
      %2234 = vmatpush.msra.mxu0 0.0
      %2235 = vmatpush.msra.mxu0 0.0
      %2236 = vmatpush.msra.mxu0 %v1495
      %2237 = vmatpush.msra.mxu0 %v1493
      %2238 = vmatpush.msra.mxu0 %v1491
      %2239 = vmatpush.msra.mxu0 %v1489
      %2240 = vmatpush.msra.mxu0 %v1487
      %2241 = vmatpush.msra.mxu0 %v1485
      %2242 = vmatpush.msra.mxu0 %v1483
      %2243 = vmatpush.msra.mxu0 %v1481
      %2244 = vmatpush.msra.mxu0 %v1479
      %2245 = vmatpush.msra.mxu0 %v1477
      %2246 = vmatpush.msra.mxu0 %v1475
      %2247 = vmatpush.msra.mxu0 %v1473
      %2248 = vmatmul.f32.gmra.mxu0 %v1529
      %v2249 = vpop.f32.mrf.mxu0
      %v2250 = vadd.f32 %v2174, %v2249
      %2251 = vmatmul.f32.gmra.mxu0 %v1532
      %v2252 = vpop.f32.mrf.mxu0
      %v2253 = vadd.f32 %v2177, %v2252
      %2254 = vmatmul.f32.gmra.mxu0 %v1535
      %v2255 = vpop.f32.mrf.mxu0
      %v2256 = vadd.f32 %v2180, %v2255
      %2257 = vmatmul.f32.gmra.mxu0 %v1538
      %v2258 = vpop.f32.mrf.mxu0
      %v2259 = vadd.f32 %v2183, %v2258
      %2260 = vmatmul.f32.gmra.mxu0 %v1541
      %v2261 = vpop.f32.mrf.mxu0
      %v2262 = vadd.f32 %v2186, %v2261
      %2263 = vmatmul.f32.gmra.mxu0 %v1544
      %v2264 = vpop.f32.mrf.mxu0
      %v2265 = vadd.f32 %v2189, %v2264
      %2266 = vmatmul.f32.gmra.mxu0 %v1547
      %v2267 = vpop.f32.mrf.mxu0
      %v2268 = vadd.f32 %v2192, %v2267
      %2269 = vdwg.mxu0
      %2270 = vmatpush.msra.mxu0 0.0
      %2271 = vmatpush.msra.mxu0 0.0
      %2272 = vmatpush.msra.mxu0 0.0
      %2273 = vmatpush.msra.mxu0 0.0
      %2274 = vmatpush.msra.mxu0 %v1496
      %2275 = vmatpush.msra.mxu0 %v1494
      %2276 = vmatpush.msra.mxu0 %v1492
      %2277 = vmatpush.msra.mxu0 %v1490
      %2278 = vmatpush.msra.mxu0 %v1488
      %2279 = vmatpush.msra.mxu0 %v1486
      %2280 = vmatpush.msra.mxu0 %v1484
      %2281 = vmatpush.msra.mxu0 %v1482
      %2282 = vmatpush.msra.mxu0 %v1480
      %2283 = vmatpush.msra.mxu0 %v1478
      %2284 = vmatpush.msra.mxu0 %v1476
      %2285 = vmatpush.msra.mxu0 %v1474
      %2286 = vmatmul.f32.gmra.mxu0 %v1529
      %v2287 = vpop.f32.mrf.mxu0
      %v2288 = vadd.f32 %v2212, %v2287
      %2289 = vmatmul.f32.gmra.mxu0 %v1532
      %v2290 = vpop.f32.mrf.mxu0
      %v2291 = vadd.f32 %v2215, %v2290
      %2292 = vmatmul.f32.gmra.mxu0 %v1535
      %v2293 = vpop.f32.mrf.mxu0
      %v2294 = vadd.f32 %v2218, %v2293
      %2295 = vmatmul.f32.gmra.mxu0 %v1538
      %v2296 = vpop.f32.mrf.mxu0
      %v2297 = vadd.f32 %v2221, %v2296
      %2298 = vmatmul.f32.gmra.mxu0 %v1541
      %v2299 = vpop.f32.mrf.mxu0
      %v2300 = vadd.f32 %v2224, %v2299
      %2301 = vmatmul.f32.gmra.mxu0 %v1544
      %v2302 = vpop.f32.mrf.mxu0
      %v2303 = vadd.f32 %v2227, %v2302
      %2304 = vmatmul.f32.gmra.mxu0 %v1547
      %v2305 = vpop.f32.mrf.mxu0
      %v2306 = vadd.f32 %v2230, %v2305
      %2307 = vdwg.mxu0
      %2308 = vmatpush.msra.mxu0 0.0
      %2309 = vmatpush.msra.mxu0 0.0
      %2310 = vmatpush.msra.mxu0 0.0
      %2311 = vmatpush.msra.mxu0 0.0
      %2312 = vmatpush.msra.mxu0 %v1751
      %2313 = vmatpush.msra.mxu0 %v1749
      %2314 = vmatpush.msra.mxu0 %v1747
      %2315 = vmatpush.msra.mxu0 %v1745
      %2316 = vmatpush.msra.mxu0 %v1743
      %2317 = vmatpush.msra.mxu0 %v1741
      %2318 = vmatpush.msra.mxu0 %v1739
      %2319 = vmatpush.msra.mxu0 %v1737
      %2320 = vmatpush.msra.mxu0 %v1735
      %2321 = vmatpush.msra.mxu0 %v1733
      %2322 = vmatpush.msra.mxu0 %v1731
      %2323 = vmatpush.msra.mxu0 %v1729
      %2324 = vmatmul.f32.gmra.mxu0 %v1896
      %v2325 = vpop.f32.mrf.mxu0
      %v2326 = vadd.f32 0.0, %v2325
      %2327 = vmatmul.f32.gmra.mxu0 %v1899
      %v2328 = vpop.f32.mrf.mxu0
      %v2329 = vadd.f32 0.0, %v2328
      %2330 = vmatmul.f32.gmra.mxu0 %v1902
      %v2331 = vpop.f32.mrf.mxu0
      %v2332 = vadd.f32 0.0, %v2331
      %2333 = vmatmul.f32.gmra.mxu0 %v1905
      %v2334 = vpop.f32.mrf.mxu0
      %v2335 = vadd.f32 0.0, %v2334
      %2336 = vmatmul.f32.gmra.mxu0 %v1908
      %v2337 = vpop.f32.mrf.mxu0
      %v2338 = vadd.f32 0.0, %v2337
      %2339 = vmatmul.f32.gmra.mxu0 %v1911
      %v2340 = vpop.f32.mrf.mxu0
      %v2341 = vadd.f32 0.0, %v2340
      %2342 = vmatmul.f32.gmra.mxu0 %v1914
      %v2343 = vpop.f32.mrf.mxu0
      %v2344 = vadd.f32 0.0, %v2343
      %2345 = vdwg.mxu0
      %2346 = vmatpush.msra.mxu0 0.0
      %2347 = vmatpush.msra.mxu0 0.0
      %2348 = vmatpush.msra.mxu0 0.0
      %2349 = vmatpush.msra.mxu0 0.0
      %2350 = vmatpush.msra.mxu0 %v1752
      %2351 = vmatpush.msra.mxu0 %v1750
      %2352 = vmatpush.msra.mxu0 %v1748
      %2353 = vmatpush.msra.mxu0 %v1746
      %2354 = vmatpush.msra.mxu0 %v1744
      %2355 = vmatpush.msra.mxu0 %v1742
      %2356 = vmatpush.msra.mxu0 %v1740
      %2357 = vmatpush.msra.mxu0 %v1738
      %2358 = vmatpush.msra.mxu0 %v1736
      %2359 = vmatpush.msra.mxu0 %v1734
      %2360 = vmatpush.msra.mxu0 %v1732
      %2361 = vmatpush.msra.mxu0 %v1730
      %2362 = vmatmul.f32.gmra.mxu0 %v1896
      %v2363 = vpop.f32.mrf.mxu0
      %v2364 = vadd.f32 0.0, %v2363
      %2365 = vmatmul.f32.gmra.mxu0 %v1899
      %v2366 = vpop.f32.mrf.mxu0
      %v2367 = vadd.f32 0.0, %v2366
      %2368 = vmatmul.f32.gmra.mxu0 %v1902
      %v2369 = vpop.f32.mrf.mxu0
      %v2370 = vadd.f32 0.0, %v2369
      %2371 = vmatmul.f32.gmra.mxu0 %v1905
      %v2372 = vpop.f32.mrf.mxu0
      %v2373 = vadd.f32 0.0, %v2372
      %2374 = vmatmul.f32.gmra.mxu0 %v1908
      %v2375 = vpop.f32.mrf.mxu0
      %v2376 = vadd.f32 0.0, %v2375
      %2377 = vmatmul.f32.gmra.mxu0 %v1911
      %v2378 = vpop.f32.mrf.mxu0
      %v2379 = vadd.f32 0.0, %v2378
      %2380 = vmatmul.f32.gmra.mxu0 %v1914
      %v2381 = vpop.f32.mrf.mxu0
      %v2382 = vadd.f32 0.0, %v2381
      %2383 = vdwg.mxu0
      %v2384 = vadd.f32 %v2250, %v2326
      %v2385 = vadd.f32 %v2288, %v2364
      %v2386 = vadd.f32 %v2253, %v2329
      %v2387 = vadd.f32 %v2291, %v2367
      %v2388 = vadd.f32 %v2256, %v2332
      %v2389 = vadd.f32 %v2294, %v2370
      %v2390 = vadd.f32 %v2259, %v2335
      %v2391 = vadd.f32 %v2297, %v2373
      %v2392 = vadd.f32 %v2262, %v2338
      %v2393 = vadd.f32 %v2300, %v2376
      %v2394 = vadd.f32 %v2265, %v2341
      %v2395 = vadd.f32 %v2303, %v2379
      %v2396 = vadd.f32 %v2268, %v2344
      %v2397 = vadd.f32 %v2306, %v2382
      %2398 = vmatpush.msra.mxu0 0.0
      %2399 = vmatpush.msra.mxu0 0.0
      %2400 = vmatpush.msra.mxu0 0.0
      %2401 = vmatpush.msra.mxu0 0.0
      %2402 = vmatpush.msra.mxu0 %v1893
      %2403 = vmatpush.msra.mxu0 %v1891
      %2404 = vmatpush.msra.mxu0 %v1889
      %2405 = vmatpush.msra.mxu0 %v1887
      %2406 = vmatpush.msra.mxu0 %v1885
      %2407 = vmatpush.msra.mxu0 %v1883
      %2408 = vmatpush.msra.mxu0 %v1881
      %2409 = vmatpush.msra.mxu0 %v1879
      %2410 = vmatpush.msra.mxu0 %v1877
      %2411 = vmatpush.msra.mxu0 %v1875
      %2412 = vmatpush.msra.mxu0 %v1873
      %2413 = vmatpush.msra.mxu0 %v1871
      %2414 = vmatmul.f32.gmra.mxu0 %v2039
      %v2415 = vpop.f32.mrf.mxu0
      %v2416 = vadd.f32 0.0, %v2415
      %2417 = vmatmul.f32.gmra.mxu0 %v2042
      %v2418 = vpop.f32.mrf.mxu0
      %v2419 = vadd.f32 0.0, %v2418
      %2420 = vmatmul.f32.gmra.mxu0 %v2045
      %v2421 = vpop.f32.mrf.mxu0
      %v2422 = vadd.f32 0.0, %v2421
      %2423 = vmatmul.f32.gmra.mxu0 %v2048
      %v2424 = vpop.f32.mrf.mxu0
      %v2425 = vadd.f32 0.0, %v2424
      %2426 = vmatmul.f32.gmra.mxu0 %v2051
      %v2427 = vpop.f32.mrf.mxu0
      %v2428 = vadd.f32 0.0, %v2427
      %2429 = vmatmul.f32.gmra.mxu0 %v2054
      %v2430 = vpop.f32.mrf.mxu0
      %v2431 = vadd.f32 0.0, %v2430
      %2432 = vmatmul.f32.gmra.mxu0 %v2057
      %v2433 = vpop.f32.mrf.mxu0
      %v2434 = vadd.f32 0.0, %v2433
      %2435 = vdwg.mxu0
      %2436 = vmatpush.msra.mxu0 0.0
      %2437 = vmatpush.msra.mxu0 0.0
      %2438 = vmatpush.msra.mxu0 0.0
      %2439 = vmatpush.msra.mxu0 0.0
      %2440 = vmatpush.msra.mxu0 %v1894
      %2441 = vmatpush.msra.mxu0 %v1892
      %2442 = vmatpush.msra.mxu0 %v1890
      %2443 = vmatpush.msra.mxu0 %v1888
      %2444 = vmatpush.msra.mxu0 %v1886
      %2445 = vmatpush.msra.mxu0 %v1884
      %2446 = vmatpush.msra.mxu0 %v1882
      %2447 = vmatpush.msra.mxu0 %v1880
      %2448 = vmatpush.msra.mxu0 %v1878
      %2449 = vmatpush.msra.mxu0 %v1876
      %2450 = vmatpush.msra.mxu0 %v1874
      %2451 = vmatpush.msra.mxu0 %v1872
      %2452 = vmatmul.f32.gmra.mxu0 %v2039
      %v2453 = vpop.f32.mrf.mxu0
      %v2454 = vadd.f32 0.0, %v2453
      %2455 = vmatmul.f32.gmra.mxu0 %v2042
      %v2456 = vpop.f32.mrf.mxu0
      %v2457 = vadd.f32 0.0, %v2456
      %2458 = vmatmul.f32.gmra.mxu0 %v2045
      %v2459 = vpop.f32.mrf.mxu0
      %v2460 = vadd.f32 0.0, %v2459
      %2461 = vmatmul.f32.gmra.mxu0 %v2048
      %v2462 = vpop.f32.mrf.mxu0
      %v2463 = vadd.f32 0.0, %v2462
      %2464 = vmatmul.f32.gmra.mxu0 %v2051
      %v2465 = vpop.f32.mrf.mxu0
      %v2466 = vadd.f32 0.0, %v2465
      %2467 = vmatmul.f32.gmra.mxu0 %v2054
      %v2468 = vpop.f32.mrf.mxu0
      %v2469 = vadd.f32 0.0, %v2468
      %2470 = vmatmul.f32.gmra.mxu0 %v2057
      %v2471 = vpop.f32.mrf.mxu0
      %v2472 = vadd.f32 0.0, %v2471
      %2473 = vdwg.mxu0
      %v2474 = vadd.f32 %v2384, %v2416
      %v2475 = vadd.f32 %v2385, %v2454
      %v2476 = vadd.f32 %v2386, %v2419
      %v2477 = vadd.f32 %v2387, %v2457
      %v2478 = vadd.f32 %v2388, %v2422
      %v2479 = vadd.f32 %v2389, %v2460
      %v2480 = vadd.f32 %v2390, %v2425
      %v2481 = vadd.f32 %v2391, %v2463
      %v2482 = vadd.f32 %v2392, %v2428
      %v2483 = vadd.f32 %v2393, %v2466
      %v2484 = vadd.f32 %v2394, %v2431
      %v2485 = vadd.f32 %v2395, %v2469
      %v2486 = vadd.f32 %v2396, %v2434
      %v2487 = vadd.f32 %v2397, %v2472
      %s2488 = scalar_lea.vmem %s273, 392
      %v2489 = vld [vmem:[%s2488] sm:$0xff]
      %v2490 = vld [vmem:[%s2488 + $0x8] sm:$0xff]
      %v2491 = vld [vmem:[%s2488 + $0x10] sm:$0xff]
      %v2492 = vld [vmem:[%s2488 + $0x18] sm:$0xff]
      %v2493 = vld [vmem:[%s2488 + $0x20] sm:$0xff]
      %v2494 = vld [vmem:[%s2488 + $0x28] sm:$0xff]
      %v2495 = vld [vmem:[%s2488 + $0x30] sm:$0xff]
      %v2497 = vsel %vm344, %v2489, 0
      %v2500 = vsel %vm344, %v2490, 0
      %v2503 = vsel %vm344, %v2491, 0
      %v2506 = vsel %vm344, %v2492, 0
      %v2509 = vsel %vm344, %v2493, 0
      %v2512 = vsel %vm344, %v2494, 0
      %v2515 = vsel %vm344, %v2495, 0
      %2517 = vmatpush.msra.mxu0 0.0
      %2518 = vmatpush.msra.mxu0 0.0
      %2519 = vmatpush.msra.mxu0 0.0
      %2520 = vmatpush.msra.mxu0 0.0
      %2521 = vmatpush.msra.mxu0 %v2036
      %2522 = vmatpush.msra.mxu0 %v2034
      %2523 = vmatpush.msra.mxu0 %v2032
      %2524 = vmatpush.msra.mxu0 %v2030
      %2525 = vmatpush.msra.mxu0 %v2028
      %2526 = vmatpush.msra.mxu0 %v2026
      %2527 = vmatpush.msra.mxu0 %v2024
      %2528 = vmatpush.msra.mxu0 %v2022
      %2529 = vmatpush.msra.mxu0 %v2020
      %2530 = vmatpush.msra.mxu0 %v2018
      %2531 = vmatpush.msra.mxu0 %v2016
      %2532 = vmatpush.msra.mxu0 %v2014
      %2533 = vmatmul.f32.gmra.mxu0 %v2497
      %v2534 = vpop.f32.mrf.mxu0
      %v2535 = vadd.f32 0.0, %v2534
      %2536 = vmatmul.f32.gmra.mxu0 %v2500
      %v2537 = vpop.f32.mrf.mxu0
      %v2538 = vadd.f32 0.0, %v2537
      %2539 = vmatmul.f32.gmra.mxu0 %v2503
      %v2540 = vpop.f32.mrf.mxu0
      %v2541 = vadd.f32 0.0, %v2540
      %2542 = vmatmul.f32.gmra.mxu0 %v2506
      %v2543 = vpop.f32.mrf.mxu0
      %v2544 = vadd.f32 0.0, %v2543
      %2545 = vmatmul.f32.gmra.mxu0 %v2509
      %v2546 = vpop.f32.mrf.mxu0
      %v2547 = vadd.f32 0.0, %v2546
      %2548 = vmatmul.f32.gmra.mxu0 %v2512
      %v2549 = vpop.f32.mrf.mxu0
      %v2550 = vadd.f32 0.0, %v2549
      %2551 = vmatmul.f32.gmra.mxu0 %v2515
      %v2552 = vpop.f32.mrf.mxu0
      %v2553 = vadd.f32 0.0, %v2552
      %2554 = vdwg.mxu0
      %2555 = vmatpush.msra.mxu0 0.0
      %2556 = vmatpush.msra.mxu0 0.0
      %2557 = vmatpush.msra.mxu0 0.0
      %2558 = vmatpush.msra.mxu0 0.0
      %2559 = vmatpush.msra.mxu0 %v2037
      %2560 = vmatpush.msra.mxu0 %v2035
      %2561 = vmatpush.msra.mxu0 %v2033
      %2562 = vmatpush.msra.mxu0 %v2031
      %2563 = vmatpush.msra.mxu0 %v2029
      %2564 = vmatpush.msra.mxu0 %v2027
      %2565 = vmatpush.msra.mxu0 %v2025
      %2566 = vmatpush.msra.mxu0 %v2023
      %2567 = vmatpush.msra.mxu0 %v2021
      %2568 = vmatpush.msra.mxu0 %v2019
      %2569 = vmatpush.msra.mxu0 %v2017
      %2570 = vmatpush.msra.mxu0 %v2015
      %2571 = vmatmul.f32.gmra.mxu0 %v2497
      %v2572 = vpop.f32.mrf.mxu0
      %v2573 = vadd.f32 0.0, %v2572
      %2574 = vmatmul.f32.gmra.mxu0 %v2500
      %v2575 = vpop.f32.mrf.mxu0
      %v2576 = vadd.f32 0.0, %v2575
      %2577 = vmatmul.f32.gmra.mxu0 %v2503
      %v2578 = vpop.f32.mrf.mxu0
      %v2579 = vadd.f32 0.0, %v2578
      %2580 = vmatmul.f32.gmra.mxu0 %v2506
      %v2581 = vpop.f32.mrf.mxu0
      %v2582 = vadd.f32 0.0, %v2581
      %2583 = vmatmul.f32.gmra.mxu0 %v2509
      %v2584 = vpop.f32.mrf.mxu0
      %v2585 = vadd.f32 0.0, %v2584
      %2586 = vmatmul.f32.gmra.mxu0 %v2512
      %v2587 = vpop.f32.mrf.mxu0
      %v2588 = vadd.f32 0.0, %v2587
      %2589 = vmatmul.f32.gmra.mxu0 %v2515
      %v2590 = vpop.f32.mrf.mxu0
      %v2591 = vadd.f32 0.0, %v2590
      %2592 = vdwg.mxu0
      %v2593 = vadd.f32 %v2474, %v2535
      %v2594 = vadd.f32 %v2475, %v2573
      %v2595 = vadd.f32 %v2476, %v2538
      %v2596 = vadd.f32 %v2477, %v2576
      %v2597 = vadd.f32 %v2478, %v2541
      %v2598 = vadd.f32 %v2479, %v2579
      %v2599 = vadd.f32 %v2480, %v2544
      %v2600 = vadd.f32 %v2481, %v2582
      %v2601 = vadd.f32 %v2482, %v2547
      %v2602 = vadd.f32 %v2483, %v2585
      %v2603 = vadd.f32 %v2484, %v2550
      %v2604 = vadd.f32 %v2485, %v2588
      %v2605 = vadd.f32 %v2486, %v2553
      %v2606 = vadd.f32 %v2487, %v2591
      %v2607 = vmax.f32 %v2593, %v2594
      %v2608 = vmax.f32 %v2595, %v2596
      %v2609 = vmax.f32 %v2597, %v2598
      %v2610 = vmax.f32 %v2599, %v2600
      %v2611 = vmax.f32 %v2601, %v2602
      %v2612 = vmax.f32 %v2603, %v2604
      %v2613 = vmax.f32 %v2605, %v2606
      %v2614 = vmax.f32 %v2149, %v2607
      %v2615 = vmax.f32 %v2150, %v2608
      %v2616 = vmax.f32 %v2151, %v2609
      %v2617 = vmax.f32 %v2152, %v2610
      %v2618 = vmax.f32 %v2153, %v2611
      %v2619 = vmax.f32 %v2154, %v2612
      %v2620 = vmax.f32 %v2155, %v2613
      %v2621 = vadd.f32 %v2614, %v1443
      %v2622 = vadd.f32 %v2615, %v1443
      %v2623 = vadd.f32 %v2616, %v1443
      %v2624 = vadd.f32 %v2617, %v1443
      %v2625 = vadd.f32 %v2618, %v1443
      %v2626 = vadd.f32 %v2619, %v1443
      %v2627 = vadd.f32 %v2620, %v1443
      %v2628 = vmax.f32 %v2621, 0.0
      %v2629 = vmax.f32 %v2622, 0.0
      %v2630 = vmax.f32 %v2623, 0.0
      %v2631 = vmax.f32 %v2624, 0.0
      %v2632 = vmax.f32 %v2625, 0.0
      %v2633 = vmax.f32 %v2626, 0.0
      %v2634 = vmax.f32 %v2627, 0.0
      %s2635 = scalar_lea.vmem [#allocation2], 64
      %2636 = vst [vmem:[%s2635] sm:$0xff] %v2628
      %2637 = vst [vmem:[%s2635 + $0x8] sm:$0xff] %v2629
      %2638 = vst [vmem:[%s2635 + $0x10] sm:$0xff] %v2630
      %2639 = vst [vmem:[%s2635 + $0x18] sm:$0xff] %v2631
      %2640 = vst [vmem:[%s2635 + $0x20] sm:$0xff] %v2632
      %2641 = vst [vmem:[%s2635 + $0x28] sm:$0xff] %v2633
      %2642 = vst [vmem:[%s2635 + $0x30] sm:$0xff] %v2634
      %2643 = vst [vmem:[%s2635 + $0x38] sm:$0xff] 0.0
      %v2644 = vld [vmem:[%s6 + $0x1] sm:$0x1]
      %v2645 = vld [vmem:[#allocation2] sm:$0xff]
      %v2646 = vld [vmem:[#allocation2 + $0x8] sm:$0xff]
      %v2647 = vld [vmem:[#allocation2 + $0x10] sm:$0xff]
      %v2648 = vld [vmem:[#allocation2 + $0x18] sm:$0xff]
      %v2649 = vld [vmem:[#allocation2 + $0x20] sm:$0xff]
      %v2650 = vld [vmem:[#allocation2 + $0x28] sm:$0xff]
      %v2651 = vld [vmem:[#allocation2 + $0x30] sm:$0xff]
      %v2652 = vld [vmem:[%s2] sm:$0xff]
      %v2653 = vld [vmem:[%s2 + $0x8] sm:$0xff]
      %v2654 = vld [vmem:[%s2 + $0x10] sm:$0xff]
      %v2655 = vld [vmem:[%s2 + $0x18] sm:$0xff]
      %v2656 = vld [vmem:[%s2 + $0x20] sm:$0xff]
      %v2657 = vld [vmem:[%s2 + $0x28] sm:$0xff]
      %v2658 = vld [vmem:[%s2 + $0x30] sm:$0xff]
      %v2659 = vld [vmem:[%s2 + $0x38] sm:$0xff]
      %v2660 = vld [vmem:[%s2 + $0x40] sm:$0xff]
      %v2661 = vld [vmem:[%s2 + $0x48] sm:$0xff]
      %v2662 = vld [vmem:[%s2 + $0x50] sm:$0xff]
      %v2663 = vld [vmem:[%s2 + $0x58] sm:$0xff]
      %v2664 = vld [vmem:[%s2 + $0x60] sm:$0xff]
      %v2665 = vld [vmem:[%s2 + $0x68] sm:$0xff]
      %v2666 = vld [vmem:[%s2 + $0x70] sm:$0xff]
      %v2667 = vld [vmem:[%s2 + $0x78] sm:$0xff]
      %v2668 = vld [vmem:[%s2 + $0x80] sm:$0xff]
      %v2669 = vld [vmem:[%s2 + $0x88] sm:$0xff]
      %v2670 = vld [vmem:[%s2 + $0x90] sm:$0xff]
      %v2671 = vld [vmem:[%s2 + $0x98] sm:$0xff]
      %v2672 = vld [vmem:[%s2 + $0xa0] sm:$0xff]
      %v2673 = vld [vmem:[%s2 + $0xa8] sm:$0xff]
      %v2674 = vld [vmem:[%s2 + $0xb0] sm:$0xff]
      %v2675 = vld [vmem:[%s2 + $0xb8] sm:$0xff]
      %v2676 = vld [vmem:[%s2 + $0xc0] sm:$0xff]
      %v2677 = vld [vmem:[%s2 + $0xc8] sm:$0xff]
      %v2678 = vld [vmem:[%s2 + $0xd0] sm:$0xff]
      %v2679 = vld [vmem:[%s2 + $0xd8] sm:$0xff]
      %v2680 = vld [vmem:[%s2 + $0xe0] sm:$0xff]
      %v2681 = vld [vmem:[%s2 + $0xe8] sm:$0xff]
      %v2682 = vld [vmem:[%s2 + $0xf0] sm:$0xff]
      %v2683 = vld [vmem:[%s2 + $0xf8] sm:$0xff]
      %v2684 = vld [vmem:[%s2635] sm:$0xff]
      %v2685 = vld [vmem:[%s2635 + $0x8] sm:$0xff]
      %v2686 = vld [vmem:[%s2635 + $0x10] sm:$0xff]
      %v2687 = vld [vmem:[%s2635 + $0x18] sm:$0xff]
      %v2688 = vld [vmem:[%s2635 + $0x20] sm:$0xff]
      %v2689 = vld [vmem:[%s2635 + $0x28] sm:$0xff]
      %v2690 = vld [vmem:[%s2635 + $0x30] sm:$0xff]
      %s2691 = scalar_lea.vmem %s2, 256
      %v2692 = vld [vmem:[%s2691] sm:$0xff]
      %v2693 = vld [vmem:[%s2691 + $0x8] sm:$0xff]
      %v2694 = vld [vmem:[%s2691 + $0x10] sm:$0xff]
      %v2695 = vld [vmem:[%s2691 + $0x18] sm:$0xff]
      %v2696 = vld [vmem:[%s2691 + $0x20] sm:$0xff]
      %v2697 = vld [vmem:[%s2691 + $0x28] sm:$0xff]
      %v2698 = vld [vmem:[%s2691 + $0x30] sm:$0xff]
      %v2699 = vld [vmem:[%s2691 + $0x38] sm:$0xff]
      %v2700 = vld [vmem:[%s2691 + $0x40] sm:$0xff]
      %v2701 = vld [vmem:[%s2691 + $0x48] sm:$0xff]
      %v2702 = vld [vmem:[%s2691 + $0x50] sm:$0xff]
      %v2703 = vld [vmem:[%s2691 + $0x58] sm:$0xff]
      %v2704 = vld [vmem:[%s2691 + $0x60] sm:$0xff]
      %v2705 = vld [vmem:[%s2691 + $0x68] sm:$0xff]
      %v2706 = vld [vmem:[%s2691 + $0x70] sm:$0xff]
      %v2707 = vld [vmem:[%s2691 + $0x78] sm:$0xff]
      %v2708 = vld [vmem:[%s2691 + $0x80] sm:$0xff]
      %v2709 = vld [vmem:[%s2691 + $0x88] sm:$0xff]
      %v2710 = vld [vmem:[%s2691 + $0x90] sm:$0xff]
      %v2711 = vld [vmem:[%s2691 + $0x98] sm:$0xff]
      %v2712 = vld [vmem:[%s2691 + $0xa0] sm:$0xff]
      %v2713 = vld [vmem:[%s2691 + $0xa8] sm:$0xff]
      %v2714 = vld [vmem:[%s2691 + $0xb0] sm:$0xff]
      %v2715 = vld [vmem:[%s2691 + $0xb8] sm:$0xff]
      %v2716 = vld [vmem:[%s2691 + $0xc0] sm:$0xff]
      %v2717 = vld [vmem:[%s2691 + $0xc8] sm:$0xff]
      %v2718 = vld [vmem:[%s2691 + $0xd0] sm:$0xff]
      %v2719 = vld [vmem:[%s2691 + $0xd8] sm:$0xff]
      %v2720 = vld [vmem:[%s2691 + $0xe0] sm:$0xff]
      %v2721 = vld [vmem:[%s2691 + $0xe8] sm:$0xff]
      %v2722 = vld [vmem:[%s2691 + $0xf0] sm:$0xff]
      %v2723 = vld [vmem:[%s2691 + $0xf8] sm:$0xff]
      %2724 = vmatpush.msra.mxu0 %v2722
      %2725 = vmatpush.msra.mxu0 %v2720
      %2726 = vmatpush.msra.mxu0 %v2718
      %2727 = vmatpush.msra.mxu0 %v2716
      %2728 = vmatpush.msra.mxu0 %v2714
      %2729 = vmatpush.msra.mxu0 %v2712
      %2730 = vmatpush.msra.mxu0 %v2710
      %2731 = vmatpush.msra.mxu0 %v2708
      %2732 = vmatpush.msra.mxu0 %v2706
      %2733 = vmatpush.msra.mxu0 %v2704
      %2734 = vmatpush.msra.mxu0 %v2702
      %2735 = vmatpush.msra.mxu0 %v2700
      %2736 = vmatpush.msra.mxu0 %v2698
      %2737 = vmatpush.msra.mxu0 %v2696
      %2738 = vmatpush.msra.mxu0 %v2694
      %2739 = vmatpush.msra.mxu0 %v2692
      %2740 = vmatmul.f32.gmra.mxu0 %v2684
      %v2741 = vpop.f32.mrf.mxu0
      %v2742 = vadd.f32 0.0, %v2741
      %2743 = vmatmul.f32.gmra.mxu0 %v2685
      %v2744 = vpop.f32.mrf.mxu0
      %v2745 = vadd.f32 0.0, %v2744
      %2746 = vmatmul.f32.gmra.mxu0 %v2686
      %v2747 = vpop.f32.mrf.mxu0
      %v2748 = vadd.f32 0.0, %v2747
      %2749 = vmatmul.f32.gmra.mxu0 %v2687
      %v2750 = vpop.f32.mrf.mxu0
      %v2751 = vadd.f32 0.0, %v2750
      %2752 = vmatmul.f32.gmra.mxu0 %v2688
      %v2753 = vpop.f32.mrf.mxu0
      %v2754 = vadd.f32 0.0, %v2753
      %2755 = vmatmul.f32.gmra.mxu0 %v2689
      %v2756 = vpop.f32.mrf.mxu0
      %v2757 = vadd.f32 0.0, %v2756
      %2758 = vmatmul.f32.gmra.mxu0 %v2690
      %v2759 = vpop.f32.mrf.mxu0
      %v2760 = vadd.f32 0.0, %v2759
      %2761 = vdwg.mxu0
      %2762 = vmatpush.msra.mxu0 %v2723
      %2763 = vmatpush.msra.mxu0 %v2721
      %2764 = vmatpush.msra.mxu0 %v2719
      %2765 = vmatpush.msra.mxu0 %v2717
      %2766 = vmatpush.msra.mxu0 %v2715
      %2767 = vmatpush.msra.mxu0 %v2713
      %2768 = vmatpush.msra.mxu0 %v2711
      %2769 = vmatpush.msra.mxu0 %v2709
      %2770 = vmatpush.msra.mxu0 %v2707
      %2771 = vmatpush.msra.mxu0 %v2705
      %2772 = vmatpush.msra.mxu0 %v2703
      %2773 = vmatpush.msra.mxu0 %v2701
      %2774 = vmatpush.msra.mxu0 %v2699
      %2775 = vmatpush.msra.mxu0 %v2697
      %2776 = vmatpush.msra.mxu0 %v2695
      %2777 = vmatpush.msra.mxu0 %v2693
      %2778 = vmatmul.f32.gmra.mxu0 %v2684
      %v2779 = vpop.f32.mrf.mxu0
      %v2780 = vadd.f32 0.0, %v2779
      %2781 = vmatmul.f32.gmra.mxu0 %v2685
      %v2782 = vpop.f32.mrf.mxu0
      %v2783 = vadd.f32 0.0, %v2782
      %2784 = vmatmul.f32.gmra.mxu0 %v2686
      %v2785 = vpop.f32.mrf.mxu0
      %v2786 = vadd.f32 0.0, %v2785
      %2787 = vmatmul.f32.gmra.mxu0 %v2687
      %v2788 = vpop.f32.mrf.mxu0
      %v2789 = vadd.f32 0.0, %v2788
      %2790 = vmatmul.f32.gmra.mxu0 %v2688
      %v2791 = vpop.f32.mrf.mxu0
      %v2792 = vadd.f32 0.0, %v2791
      %2793 = vmatmul.f32.gmra.mxu0 %v2689
      %v2794 = vpop.f32.mrf.mxu0
      %v2795 = vadd.f32 0.0, %v2794
      %2796 = vmatmul.f32.gmra.mxu0 %v2690
      %v2797 = vpop.f32.mrf.mxu0
      %v2798 = vadd.f32 0.0, %v2797
      %2799 = vdwg.mxu0
      %2800 = vmatpush.msra.mxu0 %v2682
      %2801 = vmatpush.msra.mxu0 %v2680
      %2802 = vmatpush.msra.mxu0 %v2678
      %2803 = vmatpush.msra.mxu0 %v2676
      %2804 = vmatpush.msra.mxu0 %v2674
      %2805 = vmatpush.msra.mxu0 %v2672
      %2806 = vmatpush.msra.mxu0 %v2670
      %2807 = vmatpush.msra.mxu0 %v2668
      %2808 = vmatpush.msra.mxu0 %v2666
      %2809 = vmatpush.msra.mxu0 %v2664
      %2810 = vmatpush.msra.mxu0 %v2662
      %2811 = vmatpush.msra.mxu0 %v2660
      %2812 = vmatpush.msra.mxu0 %v2658
      %2813 = vmatpush.msra.mxu0 %v2656
      %2814 = vmatpush.msra.mxu0 %v2654
      %2815 = vmatpush.msra.mxu0 %v2652
      %2816 = vmatmul.f32.gmra.mxu0 %v2645
      %v2817 = vpop.f32.mrf.mxu0
      %v2818 = vadd.f32 %v2742, %v2817
      %2819 = vmatmul.f32.gmra.mxu0 %v2646
      %v2820 = vpop.f32.mrf.mxu0
      %v2821 = vadd.f32 %v2745, %v2820
      %2822 = vmatmul.f32.gmra.mxu0 %v2647
      %v2823 = vpop.f32.mrf.mxu0
      %v2824 = vadd.f32 %v2748, %v2823
      %2825 = vmatmul.f32.gmra.mxu0 %v2648
      %v2826 = vpop.f32.mrf.mxu0
      %v2827 = vadd.f32 %v2751, %v2826
      %2828 = vmatmul.f32.gmra.mxu0 %v2649
      %v2829 = vpop.f32.mrf.mxu0
      %v2830 = vadd.f32 %v2754, %v2829
      %2831 = vmatmul.f32.gmra.mxu0 %v2650
      %v2832 = vpop.f32.mrf.mxu0
      %v2833 = vadd.f32 %v2757, %v2832
      %2834 = vmatmul.f32.gmra.mxu0 %v2651
      %v2835 = vpop.f32.mrf.mxu0
      %v2836 = vadd.f32 %v2760, %v2835
      %2837 = vdwg.mxu0
      %2838 = vmatpush.msra.mxu0 %v2683
      %2839 = vmatpush.msra.mxu0 %v2681
      %2840 = vmatpush.msra.mxu0 %v2679
      %2841 = vmatpush.msra.mxu0 %v2677
      %2842 = vmatpush.msra.mxu0 %v2675
      %2843 = vmatpush.msra.mxu0 %v2673
      %2844 = vmatpush.msra.mxu0 %v2671
      %2845 = vmatpush.msra.mxu0 %v2669
      %2846 = vmatpush.msra.mxu0 %v2667
      %2847 = vmatpush.msra.mxu0 %v2665
      %2848 = vmatpush.msra.mxu0 %v2663
      %2849 = vmatpush.msra.mxu0 %v2661
      %2850 = vmatpush.msra.mxu0 %v2659
      %2851 = vmatpush.msra.mxu0 %v2657
      %2852 = vmatpush.msra.mxu0 %v2655
      %2853 = vmatpush.msra.mxu0 %v2653
      %2854 = vmatmul.f32.gmra.mxu0 %v2645
      %v2855 = vpop.f32.mrf.mxu0
      %v2856 = vadd.f32 %v2780, %v2855
      %2857 = vmatmul.f32.gmra.mxu0 %v2646
      %v2858 = vpop.f32.mrf.mxu0
      %v2859 = vadd.f32 %v2783, %v2858
      %2860 = vmatmul.f32.gmra.mxu0 %v2647
      %v2861 = vpop.f32.mrf.mxu0
      %v2862 = vadd.f32 %v2786, %v2861
      %2863 = vmatmul.f32.gmra.mxu0 %v2648
      %v2864 = vpop.f32.mrf.mxu0
      %v2865 = vadd.f32 %v2789, %v2864
      %2866 = vmatmul.f32.gmra.mxu0 %v2649
      %v2867 = vpop.f32.mrf.mxu0
      %v2868 = vadd.f32 %v2792, %v2867
      %2869 = vmatmul.f32.gmra.mxu0 %v2650
      %v2870 = vpop.f32.mrf.mxu0
      %v2871 = vadd.f32 %v2795, %v2870
      %2872 = vmatmul.f32.gmra.mxu0 %v2651
      %v2873 = vpop.f32.mrf.mxu0
      %v2874 = vadd.f32 %v2798, %v2873
      %2875 = vdwg.mxu0
      %v2876 = vld [vmem:[#allocation2 + $0x1] sm:$0xff]
      %v2877 = vld [vmem:[#allocation2 + $0x9] sm:$0xff]
      %v2878 = vld [vmem:[#allocation2 + $0x11] sm:$0xff]
      %v2879 = vld [vmem:[#allocation2 + $0x19] sm:$0xff]
      %v2880 = vld [vmem:[#allocation2 + $0x21] sm:$0xff]
      %v2881 = vld [vmem:[#allocation2 + $0x29] sm:$0xff]
      %v2882 = vld [vmem:[#allocation2 + $0x31] sm:$0xff]
      %s2883 = scalar_lea.vmem %s2, 512
      %v2884 = vld [vmem:[%s2883] sm:$0xff]
      %v2885 = vld [vmem:[%s2883 + $0x8] sm:$0xff]
      %v2886 = vld [vmem:[%s2883 + $0x10] sm:$0xff]
      %v2887 = vld [vmem:[%s2883 + $0x18] sm:$0xff]
      %v2888 = vld [vmem:[%s2883 + $0x20] sm:$0xff]
      %v2889 = vld [vmem:[%s2883 + $0x28] sm:$0xff]
      %v2890 = vld [vmem:[%s2883 + $0x30] sm:$0xff]
      %v2891 = vld [vmem:[%s2883 + $0x38] sm:$0xff]
      %v2892 = vld [vmem:[%s2883 + $0x40] sm:$0xff]
      %v2893 = vld [vmem:[%s2883 + $0x48] sm:$0xff]
      %v2894 = vld [vmem:[%s2883 + $0x50] sm:$0xff]
      %v2895 = vld [vmem:[%s2883 + $0x58] sm:$0xff]
      %v2896 = vld [vmem:[%s2883 + $0x60] sm:$0xff]
      %v2897 = vld [vmem:[%s2883 + $0x68] sm:$0xff]
      %v2898 = vld [vmem:[%s2883 + $0x70] sm:$0xff]
      %v2899 = vld [vmem:[%s2883 + $0x78] sm:$0xff]
      %v2900 = vld [vmem:[%s2883 + $0x80] sm:$0xff]
      %v2901 = vld [vmem:[%s2883 + $0x88] sm:$0xff]
      %v2902 = vld [vmem:[%s2883 + $0x90] sm:$0xff]
      %v2903 = vld [vmem:[%s2883 + $0x98] sm:$0xff]
      %v2904 = vld [vmem:[%s2883 + $0xa0] sm:$0xff]
      %v2905 = vld [vmem:[%s2883 + $0xa8] sm:$0xff]
      %v2906 = vld [vmem:[%s2883 + $0xb0] sm:$0xff]
      %v2907 = vld [vmem:[%s2883 + $0xb8] sm:$0xff]
      %v2908 = vld [vmem:[%s2883 + $0xc0] sm:$0xff]
      %v2909 = vld [vmem:[%s2883 + $0xc8] sm:$0xff]
      %v2910 = vld [vmem:[%s2883 + $0xd0] sm:$0xff]
      %v2911 = vld [vmem:[%s2883 + $0xd8] sm:$0xff]
      %v2912 = vld [vmem:[%s2883 + $0xe0] sm:$0xff]
      %v2913 = vld [vmem:[%s2883 + $0xe8] sm:$0xff]
      %v2914 = vld [vmem:[%s2883 + $0xf0] sm:$0xff]
      %v2915 = vld [vmem:[%s2883 + $0xf8] sm:$0xff]
      %2916 = vmatpush.msra.mxu0 %v2914
      %2917 = vmatpush.msra.mxu0 %v2912
      %2918 = vmatpush.msra.mxu0 %v2910
      %2919 = vmatpush.msra.mxu0 %v2908
      %2920 = vmatpush.msra.mxu0 %v2906
      %2921 = vmatpush.msra.mxu0 %v2904
      %2922 = vmatpush.msra.mxu0 %v2902
      %2923 = vmatpush.msra.mxu0 %v2900
      %2924 = vmatpush.msra.mxu0 %v2898
      %2925 = vmatpush.msra.mxu0 %v2896
      %2926 = vmatpush.msra.mxu0 %v2894
      %2927 = vmatpush.msra.mxu0 %v2892
      %2928 = vmatpush.msra.mxu0 %v2890
      %2929 = vmatpush.msra.mxu0 %v2888
      %2930 = vmatpush.msra.mxu0 %v2886
      %2931 = vmatpush.msra.mxu0 %v2884
      %2932 = vmatmul.f32.gmra.mxu0 %v2876
      %v2933 = vpop.f32.mrf.mxu0
      %v2934 = vadd.f32 0.0, %v2933
      %2935 = vmatmul.f32.gmra.mxu0 %v2877
      %v2936 = vpop.f32.mrf.mxu0
      %v2937 = vadd.f32 0.0, %v2936
      %2938 = vmatmul.f32.gmra.mxu0 %v2878
      %v2939 = vpop.f32.mrf.mxu0
      %v2940 = vadd.f32 0.0, %v2939
      %2941 = vmatmul.f32.gmra.mxu0 %v2879
      %v2942 = vpop.f32.mrf.mxu0
      %v2943 = vadd.f32 0.0, %v2942
      %2944 = vmatmul.f32.gmra.mxu0 %v2880
      %v2945 = vpop.f32.mrf.mxu0
      %v2946 = vadd.f32 0.0, %v2945
      %2947 = vmatmul.f32.gmra.mxu0 %v2881
      %v2948 = vpop.f32.mrf.mxu0
      %v2949 = vadd.f32 0.0, %v2948
      %2950 = vmatmul.f32.gmra.mxu0 %v2882
      %v2951 = vpop.f32.mrf.mxu0
      %v2952 = vadd.f32 0.0, %v2951
      %2953 = vdwg.mxu0
      %2954 = vmatpush.msra.mxu0 %v2915
      %2955 = vmatpush.msra.mxu0 %v2913
      %2956 = vmatpush.msra.mxu0 %v2911
      %2957 = vmatpush.msra.mxu0 %v2909
      %2958 = vmatpush.msra.mxu0 %v2907
      %2959 = vmatpush.msra.mxu0 %v2905
      %2960 = vmatpush.msra.mxu0 %v2903
      %2961 = vmatpush.msra.mxu0 %v2901
      %2962 = vmatpush.msra.mxu0 %v2899
      %2963 = vmatpush.msra.mxu0 %v2897
      %2964 = vmatpush.msra.mxu0 %v2895
      %2965 = vmatpush.msra.mxu0 %v2893
      %2966 = vmatpush.msra.mxu0 %v2891
      %2967 = vmatpush.msra.mxu0 %v2889
      %2968 = vmatpush.msra.mxu0 %v2887
      %2969 = vmatpush.msra.mxu0 %v2885
      %2970 = vmatmul.f32.gmra.mxu0 %v2876
      %v2971 = vpop.f32.mrf.mxu0
      %v2972 = vadd.f32 0.0, %v2971
      %2973 = vmatmul.f32.gmra.mxu0 %v2877
      %v2974 = vpop.f32.mrf.mxu0
      %v2975 = vadd.f32 0.0, %v2974
      %2976 = vmatmul.f32.gmra.mxu0 %v2878
      %v2977 = vpop.f32.mrf.mxu0
      %v2978 = vadd.f32 0.0, %v2977
      %2979 = vmatmul.f32.gmra.mxu0 %v2879
      %v2980 = vpop.f32.mrf.mxu0
      %v2981 = vadd.f32 0.0, %v2980
      %2982 = vmatmul.f32.gmra.mxu0 %v2880
      %v2983 = vpop.f32.mrf.mxu0
      %v2984 = vadd.f32 0.0, %v2983
      %2985 = vmatmul.f32.gmra.mxu0 %v2881
      %v2986 = vpop.f32.mrf.mxu0
      %v2987 = vadd.f32 0.0, %v2986
      %2988 = vmatmul.f32.gmra.mxu0 %v2882
      %v2989 = vpop.f32.mrf.mxu0
      %v2990 = vadd.f32 0.0, %v2989
      %2991 = vdwg.mxu0
      %v2992 = vadd.f32 %v2818, %v2934
      %v2993 = vadd.f32 %v2856, %v2972
      %v2994 = vadd.f32 %v2821, %v2937
      %v2995 = vadd.f32 %v2859, %v2975
      %v2996 = vadd.f32 %v2824, %v2940
      %v2997 = vadd.f32 %v2862, %v2978
      %v2998 = vadd.f32 %v2827, %v2943
      %v2999 = vadd.f32 %v2865, %v2981
      %v3000 = vadd.f32 %v2830, %v2946
      %v3001 = vadd.f32 %v2868, %v2984
      %v3002 = vadd.f32 %v2833, %v2949
      %v3003 = vadd.f32 %v2871, %v2987
      %v3004 = vadd.f32 %v2836, %v2952
      %v3005 = vadd.f32 %v2874, %v2990
      %v3006 = vld [vmem:[%s2635 + $0x1] sm:$0xff]
      %v3007 = vld [vmem:[%s2635 + $0x9] sm:$0xff]
      %v3008 = vld [vmem:[%s2635 + $0x11] sm:$0xff]
      %v3009 = vld [vmem:[%s2635 + $0x19] sm:$0xff]
      %v3010 = vld [vmem:[%s2635 + $0x21] sm:$0xff]
      %v3011 = vld [vmem:[%s2635 + $0x29] sm:$0xff]
      %v3012 = vld [vmem:[%s2635 + $0x31] sm:$0xff]
      %s3013 = scalar_lea.vmem %s2, 768
      %v3014 = vld [vmem:[%s3013] sm:$0xff]
      %v3015 = vld [vmem:[%s3013 + $0x8] sm:$0xff]
      %v3016 = vld [vmem:[%s3013 + $0x10] sm:$0xff]
      %v3017 = vld [vmem:[%s3013 + $0x18] sm:$0xff]
      %v3018 = vld [vmem:[%s3013 + $0x20] sm:$0xff]
      %v3019 = vld [vmem:[%s3013 + $0x28] sm:$0xff]
      %v3020 = vld [vmem:[%s3013 + $0x30] sm:$0xff]
      %v3021 = vld [vmem:[%s3013 + $0x38] sm:$0xff]
      %v3022 = vld [vmem:[%s3013 + $0x40] sm:$0xff]
      %v3023 = vld [vmem:[%s3013 + $0x48] sm:$0xff]
      %v3024 = vld [vmem:[%s3013 + $0x50] sm:$0xff]
      %v3025 = vld [vmem:[%s3013 + $0x58] sm:$0xff]
      %v3026 = vld [vmem:[%s3013 + $0x60] sm:$0xff]
      %v3027 = vld [vmem:[%s3013 + $0x68] sm:$0xff]
      %v3028 = vld [vmem:[%s3013 + $0x70] sm:$0xff]
      %v3029 = vld [vmem:[%s3013 + $0x78] sm:$0xff]
      %v3030 = vld [vmem:[%s3013 + $0x80] sm:$0xff]
      %v3031 = vld [vmem:[%s3013 + $0x88] sm:$0xff]
      %v3032 = vld [vmem:[%s3013 + $0x90] sm:$0xff]
      %v3033 = vld [vmem:[%s3013 + $0x98] sm:$0xff]
      %v3034 = vld [vmem:[%s3013 + $0xa0] sm:$0xff]
      %v3035 = vld [vmem:[%s3013 + $0xa8] sm:$0xff]
      %v3036 = vld [vmem:[%s3013 + $0xb0] sm:$0xff]
      %v3037 = vld [vmem:[%s3013 + $0xb8] sm:$0xff]
      %v3038 = vld [vmem:[%s3013 + $0xc0] sm:$0xff]
      %v3039 = vld [vmem:[%s3013 + $0xc8] sm:$0xff]
      %v3040 = vld [vmem:[%s3013 + $0xd0] sm:$0xff]
      %v3041 = vld [vmem:[%s3013 + $0xd8] sm:$0xff]
      %v3042 = vld [vmem:[%s3013 + $0xe0] sm:$0xff]
      %v3043 = vld [vmem:[%s3013 + $0xe8] sm:$0xff]
      %v3044 = vld [vmem:[%s3013 + $0xf0] sm:$0xff]
      %v3045 = vld [vmem:[%s3013 + $0xf8] sm:$0xff]
      %3046 = vmatpush.msra.mxu0 %v3044
      %3047 = vmatpush.msra.mxu0 %v3042
      %3048 = vmatpush.msra.mxu0 %v3040
      %3049 = vmatpush.msra.mxu0 %v3038
      %3050 = vmatpush.msra.mxu0 %v3036
      %3051 = vmatpush.msra.mxu0 %v3034
      %3052 = vmatpush.msra.mxu0 %v3032
      %3053 = vmatpush.msra.mxu0 %v3030
      %3054 = vmatpush.msra.mxu0 %v3028
      %3055 = vmatpush.msra.mxu0 %v3026
      %3056 = vmatpush.msra.mxu0 %v3024
      %3057 = vmatpush.msra.mxu0 %v3022
      %3058 = vmatpush.msra.mxu0 %v3020
      %3059 = vmatpush.msra.mxu0 %v3018
      %3060 = vmatpush.msra.mxu0 %v3016
      %3061 = vmatpush.msra.mxu0 %v3014
      %3062 = vmatmul.f32.gmra.mxu0 %v3006
      %v3063 = vpop.f32.mrf.mxu0
      %v3064 = vadd.f32 0.0, %v3063
      %3065 = vmatmul.f32.gmra.mxu0 %v3007
      %v3066 = vpop.f32.mrf.mxu0
      %v3067 = vadd.f32 0.0, %v3066
      %3068 = vmatmul.f32.gmra.mxu0 %v3008
      %v3069 = vpop.f32.mrf.mxu0
      %v3070 = vadd.f32 0.0, %v3069
      %3071 = vmatmul.f32.gmra.mxu0 %v3009
      %v3072 = vpop.f32.mrf.mxu0
      %v3073 = vadd.f32 0.0, %v3072
      %3074 = vmatmul.f32.gmra.mxu0 %v3010
      %v3075 = vpop.f32.mrf.mxu0
      %v3076 = vadd.f32 0.0, %v3075
      %3077 = vmatmul.f32.gmra.mxu0 %v3011
      %v3078 = vpop.f32.mrf.mxu0
      %v3079 = vadd.f32 0.0, %v3078
      %3080 = vmatmul.f32.gmra.mxu0 %v3012
      %v3081 = vpop.f32.mrf.mxu0
      %v3082 = vadd.f32 0.0, %v3081
      %3083 = vdwg.mxu0
      %3084 = vmatpush.msra.mxu0 %v3045
      %3085 = vmatpush.msra.mxu0 %v3043
      %3086 = vmatpush.msra.mxu0 %v3041
      %3087 = vmatpush.msra.mxu0 %v3039
      %3088 = vmatpush.msra.mxu0 %v3037
      %3089 = vmatpush.msra.mxu0 %v3035
      %3090 = vmatpush.msra.mxu0 %v3033
      %3091 = vmatpush.msra.mxu0 %v3031
      %3092 = vmatpush.msra.mxu0 %v3029
      %3093 = vmatpush.msra.mxu0 %v3027
      %3094 = vmatpush.msra.mxu0 %v3025
      %3095 = vmatpush.msra.mxu0 %v3023
      %3096 = vmatpush.msra.mxu0 %v3021
      %3097 = vmatpush.msra.mxu0 %v3019
      %3098 = vmatpush.msra.mxu0 %v3017
      %3099 = vmatpush.msra.mxu0 %v3015
      %3100 = vmatmul.f32.gmra.mxu0 %v3006
      %v3101 = vpop.f32.mrf.mxu0
      %v3102 = vadd.f32 0.0, %v3101
      %3103 = vmatmul.f32.gmra.mxu0 %v3007
      %v3104 = vpop.f32.mrf.mxu0
      %v3105 = vadd.f32 0.0, %v3104
      %3106 = vmatmul.f32.gmra.mxu0 %v3008
      %v3107 = vpop.f32.mrf.mxu0
      %v3108 = vadd.f32 0.0, %v3107
      %3109 = vmatmul.f32.gmra.mxu0 %v3009
      %v3110 = vpop.f32.mrf.mxu0
      %v3111 = vadd.f32 0.0, %v3110
      %3112 = vmatmul.f32.gmra.mxu0 %v3010
      %v3113 = vpop.f32.mrf.mxu0
      %v3114 = vadd.f32 0.0, %v3113
      %3115 = vmatmul.f32.gmra.mxu0 %v3011
      %v3116 = vpop.f32.mrf.mxu0
      %v3117 = vadd.f32 0.0, %v3116
      %3118 = vmatmul.f32.gmra.mxu0 %v3012
      %v3119 = vpop.f32.mrf.mxu0
      %v3120 = vadd.f32 0.0, %v3119
      %3121 = vdwg.mxu0
      %v3122 = vadd.f32 %v2992, %v3064
      %v3123 = vadd.f32 %v2993, %v3102
      %v3124 = vadd.f32 %v2994, %v3067
      %v3125 = vadd.f32 %v2995, %v3105
      %v3126 = vadd.f32 %v2996, %v3070
      %v3127 = vadd.f32 %v2997, %v3108
      %v3128 = vadd.f32 %v2998, %v3073
      %v3129 = vadd.f32 %v2999, %v3111
      %v3130 = vadd.f32 %v3000, %v3076
      %v3131 = vadd.f32 %v3001, %v3114
      %v3132 = vadd.f32 %v3002, %v3079
      %v3133 = vadd.f32 %v3003, %v3117
      %v3134 = vadd.f32 %v3004, %v3082
      %v3135 = vadd.f32 %v3005, %v3120
      %v3136 = vld [vmem:[#allocation2 + $0x2] sm:$0xff]
      %v3137 = vld [vmem:[#allocation2 + $0xa] sm:$0xff]
      %v3138 = vld [vmem:[#allocation2 + $0x12] sm:$0xff]
      %v3139 = vld [vmem:[#allocation2 + $0x1a] sm:$0xff]
      %v3140 = vld [vmem:[#allocation2 + $0x22] sm:$0xff]
      %v3141 = vld [vmem:[#allocation2 + $0x2a] sm:$0xff]
      %v3142 = vld [vmem:[#allocation2 + $0x32] sm:$0xff]
      %s3143 = scalar_lea.vmem %s2, 1024
      %v3144 = vld [vmem:[%s3143] sm:$0xff]
      %v3145 = vld [vmem:[%s3143 + $0x8] sm:$0xff]
      %v3146 = vld [vmem:[%s3143 + $0x10] sm:$0xff]
      %v3147 = vld [vmem:[%s3143 + $0x18] sm:$0xff]
      %v3148 = vld [vmem:[%s3143 + $0x20] sm:$0xff]
      %v3149 = vld [vmem:[%s3143 + $0x28] sm:$0xff]
      %v3150 = vld [vmem:[%s3143 + $0x30] sm:$0xff]
      %v3151 = vld [vmem:[%s3143 + $0x38] sm:$0xff]
      %v3152 = vld [vmem:[%s3143 + $0x40] sm:$0xff]
      %v3153 = vld [vmem:[%s3143 + $0x48] sm:$0xff]
      %v3154 = vld [vmem:[%s3143 + $0x50] sm:$0xff]
      %v3155 = vld [vmem:[%s3143 + $0x58] sm:$0xff]
      %v3156 = vld [vmem:[%s3143 + $0x60] sm:$0xff]
      %v3157 = vld [vmem:[%s3143 + $0x68] sm:$0xff]
      %v3158 = vld [vmem:[%s3143 + $0x70] sm:$0xff]
      %v3159 = vld [vmem:[%s3143 + $0x78] sm:$0xff]
      %v3160 = vld [vmem:[%s3143 + $0x80] sm:$0xff]
      %v3161 = vld [vmem:[%s3143 + $0x88] sm:$0xff]
      %v3162 = vld [vmem:[%s3143 + $0x90] sm:$0xff]
      %v3163 = vld [vmem:[%s3143 + $0x98] sm:$0xff]
      %v3164 = vld [vmem:[%s3143 + $0xa0] sm:$0xff]
      %v3165 = vld [vmem:[%s3143 + $0xa8] sm:$0xff]
      %v3166 = vld [vmem:[%s3143 + $0xb0] sm:$0xff]
      %v3167 = vld [vmem:[%s3143 + $0xb8] sm:$0xff]
      %v3168 = vld [vmem:[%s3143 + $0xc0] sm:$0xff]
      %v3169 = vld [vmem:[%s3143 + $0xc8] sm:$0xff]
      %v3170 = vld [vmem:[%s3143 + $0xd0] sm:$0xff]
      %v3171 = vld [vmem:[%s3143 + $0xd8] sm:$0xff]
      %v3172 = vld [vmem:[%s3143 + $0xe0] sm:$0xff]
      %v3173 = vld [vmem:[%s3143 + $0xe8] sm:$0xff]
      %v3174 = vld [vmem:[%s3143 + $0xf0] sm:$0xff]
      %v3175 = vld [vmem:[%s3143 + $0xf8] sm:$0xff]
      %3176 = vmatpush.msra.mxu0 %v3174
      %3177 = vmatpush.msra.mxu0 %v3172
      %3178 = vmatpush.msra.mxu0 %v3170
      %3179 = vmatpush.msra.mxu0 %v3168
      %3180 = vmatpush.msra.mxu0 %v3166
      %3181 = vmatpush.msra.mxu0 %v3164
      %3182 = vmatpush.msra.mxu0 %v3162
      %3183 = vmatpush.msra.mxu0 %v3160
      %3184 = vmatpush.msra.mxu0 %v3158
      %3185 = vmatpush.msra.mxu0 %v3156
      %3186 = vmatpush.msra.mxu0 %v3154
      %3187 = vmatpush.msra.mxu0 %v3152
      %3188 = vmatpush.msra.mxu0 %v3150
      %3189 = vmatpush.msra.mxu0 %v3148
      %3190 = vmatpush.msra.mxu0 %v3146
      %3191 = vmatpush.msra.mxu0 %v3144
      %3192 = vmatmul.f32.gmra.mxu0 %v3136
      %v3193 = vpop.f32.mrf.mxu0
      %v3194 = vadd.f32 0.0, %v3193
      %3195 = vmatmul.f32.gmra.mxu0 %v3137
      %v3196 = vpop.f32.mrf.mxu0
      %v3197 = vadd.f32 0.0, %v3196
      %3198 = vmatmul.f32.gmra.mxu0 %v3138
      %v3199 = vpop.f32.mrf.mxu0
      %v3200 = vadd.f32 0.0, %v3199
      %3201 = vmatmul.f32.gmra.mxu0 %v3139
      %v3202 = vpop.f32.mrf.mxu0
      %v3203 = vadd.f32 0.0, %v3202
      %3204 = vmatmul.f32.gmra.mxu0 %v3140
      %v3205 = vpop.f32.mrf.mxu0
      %v3206 = vadd.f32 0.0, %v3205
      %3207 = vmatmul.f32.gmra.mxu0 %v3141
      %v3208 = vpop.f32.mrf.mxu0
      %v3209 = vadd.f32 0.0, %v3208
      %3210 = vmatmul.f32.gmra.mxu0 %v3142
      %v3211 = vpop.f32.mrf.mxu0
      %v3212 = vadd.f32 0.0, %v3211
      %3213 = vdwg.mxu0
      %3214 = vmatpush.msra.mxu0 %v3175
      %3215 = vmatpush.msra.mxu0 %v3173
      %3216 = vmatpush.msra.mxu0 %v3171
      %3217 = vmatpush.msra.mxu0 %v3169
      %3218 = vmatpush.msra.mxu0 %v3167
      %3219 = vmatpush.msra.mxu0 %v3165
      %3220 = vmatpush.msra.mxu0 %v3163
      %3221 = vmatpush.msra.mxu0 %v3161
      %3222 = vmatpush.msra.mxu0 %v3159
      %3223 = vmatpush.msra.mxu0 %v3157
      %3224 = vmatpush.msra.mxu0 %v3155
      %3225 = vmatpush.msra.mxu0 %v3153
      %3226 = vmatpush.msra.mxu0 %v3151
      %3227 = vmatpush.msra.mxu0 %v3149
      %3228 = vmatpush.msra.mxu0 %v3147
      %3229 = vmatpush.msra.mxu0 %v3145
      %3230 = vmatmul.f32.gmra.mxu0 %v3136
      %v3231 = vpop.f32.mrf.mxu0
      %v3232 = vadd.f32 0.0, %v3231
      %3233 = vmatmul.f32.gmra.mxu0 %v3137
      %v3234 = vpop.f32.mrf.mxu0
      %v3235 = vadd.f32 0.0, %v3234
      %3236 = vmatmul.f32.gmra.mxu0 %v3138
      %v3237 = vpop.f32.mrf.mxu0
      %v3238 = vadd.f32 0.0, %v3237
      %3239 = vmatmul.f32.gmra.mxu0 %v3139
      %v3240 = vpop.f32.mrf.mxu0
      %v3241 = vadd.f32 0.0, %v3240
      %3242 = vmatmul.f32.gmra.mxu0 %v3140
      %v3243 = vpop.f32.mrf.mxu0
      %v3244 = vadd.f32 0.0, %v3243
      %3245 = vmatmul.f32.gmra.mxu0 %v3141
      %v3246 = vpop.f32.mrf.mxu0
      %v3247 = vadd.f32 0.0, %v3246
      %3248 = vmatmul.f32.gmra.mxu0 %v3142
      %v3249 = vpop.f32.mrf.mxu0
      %v3250 = vadd.f32 0.0, %v3249
      %3251 = vdwg.mxu0
      %v3252 = vadd.f32 %v3122, %v3194
      %v3253 = vadd.f32 %v3123, %v3232
      %v3254 = vadd.f32 %v3124, %v3197
      %v3255 = vadd.f32 %v3125, %v3235
      %v3256 = vadd.f32 %v3126, %v3200
      %v3257 = vadd.f32 %v3127, %v3238
      %v3258 = vadd.f32 %v3128, %v3203
      %v3259 = vadd.f32 %v3129, %v3241
      %v3260 = vadd.f32 %v3130, %v3206
      %v3261 = vadd.f32 %v3131, %v3244
      %v3262 = vadd.f32 %v3132, %v3209
      %v3263 = vadd.f32 %v3133, %v3247
      %v3264 = vadd.f32 %v3134, %v3212
      %v3265 = vadd.f32 %v3135, %v3250
      %v3266 = vmax.f32 %v3252, %v3253
      %v3267 = vmax.f32 %v3254, %v3255
      %v3268 = vmax.f32 %v3256, %v3257
      %v3269 = vmax.f32 %v3258, %v3259
      %v3270 = vmax.f32 %v3260, %v3261
      %v3271 = vmax.f32 %v3262, %v3263
      %v3272 = vmax.f32 %v3264, %v3265
      %3273 = vmatpush.msra.mxu0 %v2722
      %3274 = vmatpush.msra.mxu0 %v2720
      %3275 = vmatpush.msra.mxu0 %v2718
      %3276 = vmatpush.msra.mxu0 %v2716
      %3277 = vmatpush.msra.mxu0 %v2714
      %3278 = vmatpush.msra.mxu0 %v2712
      %3279 = vmatpush.msra.mxu0 %v2710
      %3280 = vmatpush.msra.mxu0 %v2708
      %3281 = vmatpush.msra.mxu0 %v2706
      %3282 = vmatpush.msra.mxu0 %v2704
      %3283 = vmatpush.msra.mxu0 %v2702
      %3284 = vmatpush.msra.mxu0 %v2700
      %3285 = vmatpush.msra.mxu0 %v2698
      %3286 = vmatpush.msra.mxu0 %v2696
      %3287 = vmatpush.msra.mxu0 %v2694
      %3288 = vmatpush.msra.mxu0 %v2692
      %3289 = vmatmul.f32.gmra.mxu0 %v2876
      %v3290 = vpop.f32.mrf.mxu0
      %v3291 = vadd.f32 0.0, %v3290
      %3292 = vmatmul.f32.gmra.mxu0 %v2877
      %v3293 = vpop.f32.mrf.mxu0
      %v3294 = vadd.f32 0.0, %v3293
      %3295 = vmatmul.f32.gmra.mxu0 %v2878
      %v3296 = vpop.f32.mrf.mxu0
      %v3297 = vadd.f32 0.0, %v3296
      %3298 = vmatmul.f32.gmra.mxu0 %v2879
      %v3299 = vpop.f32.mrf.mxu0
      %v3300 = vadd.f32 0.0, %v3299
      %3301 = vmatmul.f32.gmra.mxu0 %v2880
      %v3302 = vpop.f32.mrf.mxu0
      %v3303 = vadd.f32 0.0, %v3302
      %3304 = vmatmul.f32.gmra.mxu0 %v2881
      %v3305 = vpop.f32.mrf.mxu0
      %v3306 = vadd.f32 0.0, %v3305
      %3307 = vmatmul.f32.gmra.mxu0 %v2882
      %v3308 = vpop.f32.mrf.mxu0
      %v3309 = vadd.f32 0.0, %v3308
      %3310 = vdwg.mxu0
      %3311 = vmatpush.msra.mxu0 %v2723
      %3312 = vmatpush.msra.mxu0 %v2721
      %3313 = vmatpush.msra.mxu0 %v2719
      %3314 = vmatpush.msra.mxu0 %v2717
      %3315 = vmatpush.msra.mxu0 %v2715
      %3316 = vmatpush.msra.mxu0 %v2713
      %3317 = vmatpush.msra.mxu0 %v2711
      %3318 = vmatpush.msra.mxu0 %v2709
      %3319 = vmatpush.msra.mxu0 %v2707
      %3320 = vmatpush.msra.mxu0 %v2705
      %3321 = vmatpush.msra.mxu0 %v2703
      %3322 = vmatpush.msra.mxu0 %v2701
      %3323 = vmatpush.msra.mxu0 %v2699
      %3324 = vmatpush.msra.mxu0 %v2697
      %3325 = vmatpush.msra.mxu0 %v2695
      %3326 = vmatpush.msra.mxu0 %v2693
      %3327 = vmatmul.f32.gmra.mxu0 %v2876
      %v3328 = vpop.f32.mrf.mxu0
      %v3329 = vadd.f32 0.0, %v3328
      %3330 = vmatmul.f32.gmra.mxu0 %v2877
      %v3331 = vpop.f32.mrf.mxu0
      %v3332 = vadd.f32 0.0, %v3331
      %3333 = vmatmul.f32.gmra.mxu0 %v2878
      %v3334 = vpop.f32.mrf.mxu0
      %v3335 = vadd.f32 0.0, %v3334
      %3336 = vmatmul.f32.gmra.mxu0 %v2879
      %v3337 = vpop.f32.mrf.mxu0
      %v3338 = vadd.f32 0.0, %v3337
      %3339 = vmatmul.f32.gmra.mxu0 %v2880
      %v3340 = vpop.f32.mrf.mxu0
      %v3341 = vadd.f32 0.0, %v3340
      %3342 = vmatmul.f32.gmra.mxu0 %v2881
      %v3343 = vpop.f32.mrf.mxu0
      %v3344 = vadd.f32 0.0, %v3343
      %3345 = vmatmul.f32.gmra.mxu0 %v2882
      %v3346 = vpop.f32.mrf.mxu0
      %v3347 = vadd.f32 0.0, %v3346
      %3348 = vdwg.mxu0
      %3349 = vmatpush.msra.mxu0 %v2682
      %3350 = vmatpush.msra.mxu0 %v2680
      %3351 = vmatpush.msra.mxu0 %v2678
      %3352 = vmatpush.msra.mxu0 %v2676
      %3353 = vmatpush.msra.mxu0 %v2674
      %3354 = vmatpush.msra.mxu0 %v2672
      %3355 = vmatpush.msra.mxu0 %v2670
      %3356 = vmatpush.msra.mxu0 %v2668
      %3357 = vmatpush.msra.mxu0 %v2666
      %3358 = vmatpush.msra.mxu0 %v2664
      %3359 = vmatpush.msra.mxu0 %v2662
      %3360 = vmatpush.msra.mxu0 %v2660
      %3361 = vmatpush.msra.mxu0 %v2658
      %3362 = vmatpush.msra.mxu0 %v2656
      %3363 = vmatpush.msra.mxu0 %v2654
      %3364 = vmatpush.msra.mxu0 %v2652
      %3365 = vmatmul.f32.gmra.mxu0 %v2684
      %v3366 = vpop.f32.mrf.mxu0
      %v3367 = vadd.f32 %v3291, %v3366
      %3368 = vmatmul.f32.gmra.mxu0 %v2685
      %v3369 = vpop.f32.mrf.mxu0
      %v3370 = vadd.f32 %v3294, %v3369
      %3371 = vmatmul.f32.gmra.mxu0 %v2686
      %v3372 = vpop.f32.mrf.mxu0
      %v3373 = vadd.f32 %v3297, %v3372
      %3374 = vmatmul.f32.gmra.mxu0 %v2687
      %v3375 = vpop.f32.mrf.mxu0
      %v3376 = vadd.f32 %v3300, %v3375
      %3377 = vmatmul.f32.gmra.mxu0 %v2688
      %v3378 = vpop.f32.mrf.mxu0
      %v3379 = vadd.f32 %v3303, %v3378
      %3380 = vmatmul.f32.gmra.mxu0 %v2689
      %v3381 = vpop.f32.mrf.mxu0
      %v3382 = vadd.f32 %v3306, %v3381
      %3383 = vmatmul.f32.gmra.mxu0 %v2690
      %v3384 = vpop.f32.mrf.mxu0
      %v3385 = vadd.f32 %v3309, %v3384
      %3386 = vdwg.mxu0
      %3387 = vmatpush.msra.mxu0 %v2683
      %3388 = vmatpush.msra.mxu0 %v2681
      %3389 = vmatpush.msra.mxu0 %v2679
      %3390 = vmatpush.msra.mxu0 %v2677
      %3391 = vmatpush.msra.mxu0 %v2675
      %3392 = vmatpush.msra.mxu0 %v2673
      %3393 = vmatpush.msra.mxu0 %v2671
      %3394 = vmatpush.msra.mxu0 %v2669
      %3395 = vmatpush.msra.mxu0 %v2667
      %3396 = vmatpush.msra.mxu0 %v2665
      %3397 = vmatpush.msra.mxu0 %v2663
      %3398 = vmatpush.msra.mxu0 %v2661
      %3399 = vmatpush.msra.mxu0 %v2659
      %3400 = vmatpush.msra.mxu0 %v2657
      %3401 = vmatpush.msra.mxu0 %v2655
      %3402 = vmatpush.msra.mxu0 %v2653
      %3403 = vmatmul.f32.gmra.mxu0 %v2684
      %v3404 = vpop.f32.mrf.mxu0
      %v3405 = vadd.f32 %v3329, %v3404
      %3406 = vmatmul.f32.gmra.mxu0 %v2685
      %v3407 = vpop.f32.mrf.mxu0
      %v3408 = vadd.f32 %v3332, %v3407
      %3409 = vmatmul.f32.gmra.mxu0 %v2686
      %v3410 = vpop.f32.mrf.mxu0
      %v3411 = vadd.f32 %v3335, %v3410
      %3412 = vmatmul.f32.gmra.mxu0 %v2687
      %v3413 = vpop.f32.mrf.mxu0
      %v3414 = vadd.f32 %v3338, %v3413
      %3415 = vmatmul.f32.gmra.mxu0 %v2688
      %v3416 = vpop.f32.mrf.mxu0
      %v3417 = vadd.f32 %v3341, %v3416
      %3418 = vmatmul.f32.gmra.mxu0 %v2689
      %v3419 = vpop.f32.mrf.mxu0
      %v3420 = vadd.f32 %v3344, %v3419
      %3421 = vmatmul.f32.gmra.mxu0 %v2690
      %v3422 = vpop.f32.mrf.mxu0
      %v3423 = vadd.f32 %v3347, %v3422
      %3424 = vdwg.mxu0
      %3425 = vmatpush.msra.mxu0 %v2914
      %3426 = vmatpush.msra.mxu0 %v2912
      %3427 = vmatpush.msra.mxu0 %v2910
      %3428 = vmatpush.msra.mxu0 %v2908
      %3429 = vmatpush.msra.mxu0 %v2906
      %3430 = vmatpush.msra.mxu0 %v2904
      %3431 = vmatpush.msra.mxu0 %v2902
      %3432 = vmatpush.msra.mxu0 %v2900
      %3433 = vmatpush.msra.mxu0 %v2898
      %3434 = vmatpush.msra.mxu0 %v2896
      %3435 = vmatpush.msra.mxu0 %v2894
      %3436 = vmatpush.msra.mxu0 %v2892
      %3437 = vmatpush.msra.mxu0 %v2890
      %3438 = vmatpush.msra.mxu0 %v2888
      %3439 = vmatpush.msra.mxu0 %v2886
      %3440 = vmatpush.msra.mxu0 %v2884
      %3441 = vmatmul.f32.gmra.mxu0 %v3006
      %v3442 = vpop.f32.mrf.mxu0
      %v3443 = vadd.f32 0.0, %v3442
      %3444 = vmatmul.f32.gmra.mxu0 %v3007
      %v3445 = vpop.f32.mrf.mxu0
      %v3446 = vadd.f32 0.0, %v3445
      %3447 = vmatmul.f32.gmra.mxu0 %v3008
      %v3448 = vpop.f32.mrf.mxu0
      %v3449 = vadd.f32 0.0, %v3448
      %3450 = vmatmul.f32.gmra.mxu0 %v3009
      %v3451 = vpop.f32.mrf.mxu0
      %v3452 = vadd.f32 0.0, %v3451
      %3453 = vmatmul.f32.gmra.mxu0 %v3010
      %v3454 = vpop.f32.mrf.mxu0
      %v3455 = vadd.f32 0.0, %v3454
      %3456 = vmatmul.f32.gmra.mxu0 %v3011
      %v3457 = vpop.f32.mrf.mxu0
      %v3458 = vadd.f32 0.0, %v3457
      %3459 = vmatmul.f32.gmra.mxu0 %v3012
      %v3460 = vpop.f32.mrf.mxu0
      %v3461 = vadd.f32 0.0, %v3460
      %3462 = vdwg.mxu0
      %3463 = vmatpush.msra.mxu0 %v2915
      %3464 = vmatpush.msra.mxu0 %v2913
      %3465 = vmatpush.msra.mxu0 %v2911
      %3466 = vmatpush.msra.mxu0 %v2909
      %3467 = vmatpush.msra.mxu0 %v2907
      %3468 = vmatpush.msra.mxu0 %v2905
      %3469 = vmatpush.msra.mxu0 %v2903
      %3470 = vmatpush.msra.mxu0 %v2901
      %3471 = vmatpush.msra.mxu0 %v2899
      %3472 = vmatpush.msra.mxu0 %v2897
      %3473 = vmatpush.msra.mxu0 %v2895
      %3474 = vmatpush.msra.mxu0 %v2893
      %3475 = vmatpush.msra.mxu0 %v2891
      %3476 = vmatpush.msra.mxu0 %v2889
      %3477 = vmatpush.msra.mxu0 %v2887
      %3478 = vmatpush.msra.mxu0 %v2885
      %3479 = vmatmul.f32.gmra.mxu0 %v3006
      %v3480 = vpop.f32.mrf.mxu0
      %v3481 = vadd.f32 0.0, %v3480
      %3482 = vmatmul.f32.gmra.mxu0 %v3007
      %v3483 = vpop.f32.mrf.mxu0
      %v3484 = vadd.f32 0.0, %v3483
      %3485 = vmatmul.f32.gmra.mxu0 %v3008
      %v3486 = vpop.f32.mrf.mxu0
      %v3487 = vadd.f32 0.0, %v3486
      %3488 = vmatmul.f32.gmra.mxu0 %v3009
      %v3489 = vpop.f32.mrf.mxu0
      %v3490 = vadd.f32 0.0, %v3489
      %3491 = vmatmul.f32.gmra.mxu0 %v3010
      %v3492 = vpop.f32.mrf.mxu0
      %v3493 = vadd.f32 0.0, %v3492
      %3494 = vmatmul.f32.gmra.mxu0 %v3011
      %v3495 = vpop.f32.mrf.mxu0
      %v3496 = vadd.f32 0.0, %v3495
      %3497 = vmatmul.f32.gmra.mxu0 %v3012
      %v3498 = vpop.f32.mrf.mxu0
      %v3499 = vadd.f32 0.0, %v3498
      %3500 = vdwg.mxu0
      %v3501 = vadd.f32 %v3367, %v3443
      %v3502 = vadd.f32 %v3405, %v3481
      %v3503 = vadd.f32 %v3370, %v3446
      %v3504 = vadd.f32 %v3408, %v3484
      %v3505 = vadd.f32 %v3373, %v3449
      %v3506 = vadd.f32 %v3411, %v3487
      %v3507 = vadd.f32 %v3376, %v3452
      %v3508 = vadd.f32 %v3414, %v3490
      %v3509 = vadd.f32 %v3379, %v3455
      %v3510 = vadd.f32 %v3417, %v3493
      %v3511 = vadd.f32 %v3382, %v3458
      %v3512 = vadd.f32 %v3420, %v3496
      %v3513 = vadd.f32 %v3385, %v3461
      %v3514 = vadd.f32 %v3423, %v3499
      %3515 = vmatpush.msra.mxu0 %v3044
      %3516 = vmatpush.msra.mxu0 %v3042
      %3517 = vmatpush.msra.mxu0 %v3040
      %3518 = vmatpush.msra.mxu0 %v3038
      %3519 = vmatpush.msra.mxu0 %v3036
      %3520 = vmatpush.msra.mxu0 %v3034
      %3521 = vmatpush.msra.mxu0 %v3032
      %3522 = vmatpush.msra.mxu0 %v3030
      %3523 = vmatpush.msra.mxu0 %v3028
      %3524 = vmatpush.msra.mxu0 %v3026
      %3525 = vmatpush.msra.mxu0 %v3024
      %3526 = vmatpush.msra.mxu0 %v3022
      %3527 = vmatpush.msra.mxu0 %v3020
      %3528 = vmatpush.msra.mxu0 %v3018
      %3529 = vmatpush.msra.mxu0 %v3016
      %3530 = vmatpush.msra.mxu0 %v3014
      %3531 = vmatmul.f32.gmra.mxu0 %v3136
      %v3532 = vpop.f32.mrf.mxu0
      %v3533 = vadd.f32 0.0, %v3532
      %3534 = vmatmul.f32.gmra.mxu0 %v3137
      %v3535 = vpop.f32.mrf.mxu0
      %v3536 = vadd.f32 0.0, %v3535
      %3537 = vmatmul.f32.gmra.mxu0 %v3138
      %v3538 = vpop.f32.mrf.mxu0
      %v3539 = vadd.f32 0.0, %v3538
      %3540 = vmatmul.f32.gmra.mxu0 %v3139
      %v3541 = vpop.f32.mrf.mxu0
      %v3542 = vadd.f32 0.0, %v3541
      %3543 = vmatmul.f32.gmra.mxu0 %v3140
      %v3544 = vpop.f32.mrf.mxu0
      %v3545 = vadd.f32 0.0, %v3544
      %3546 = vmatmul.f32.gmra.mxu0 %v3141
      %v3547 = vpop.f32.mrf.mxu0
      %v3548 = vadd.f32 0.0, %v3547
      %3549 = vmatmul.f32.gmra.mxu0 %v3142
      %v3550 = vpop.f32.mrf.mxu0
      %v3551 = vadd.f32 0.0, %v3550
      %3552 = vdwg.mxu0
      %3553 = vmatpush.msra.mxu0 %v3045
      %3554 = vmatpush.msra.mxu0 %v3043
      %3555 = vmatpush.msra.mxu0 %v3041
      %3556 = vmatpush.msra.mxu0 %v3039
      %3557 = vmatpush.msra.mxu0 %v3037
      %3558 = vmatpush.msra.mxu0 %v3035
      %3559 = vmatpush.msra.mxu0 %v3033
      %3560 = vmatpush.msra.mxu0 %v3031
      %3561 = vmatpush.msra.mxu0 %v3029
      %3562 = vmatpush.msra.mxu0 %v3027
      %3563 = vmatpush.msra.mxu0 %v3025
      %3564 = vmatpush.msra.mxu0 %v3023
      %3565 = vmatpush.msra.mxu0 %v3021
      %3566 = vmatpush.msra.mxu0 %v3019
      %3567 = vmatpush.msra.mxu0 %v3017
      %3568 = vmatpush.msra.mxu0 %v3015
      %3569 = vmatmul.f32.gmra.mxu0 %v3136
      %v3570 = vpop.f32.mrf.mxu0
      %v3571 = vadd.f32 0.0, %v3570
      %3572 = vmatmul.f32.gmra.mxu0 %v3137
      %v3573 = vpop.f32.mrf.mxu0
      %v3574 = vadd.f32 0.0, %v3573
      %3575 = vmatmul.f32.gmra.mxu0 %v3138
      %v3576 = vpop.f32.mrf.mxu0
      %v3577 = vadd.f32 0.0, %v3576
      %3578 = vmatmul.f32.gmra.mxu0 %v3139
      %v3579 = vpop.f32.mrf.mxu0
      %v3580 = vadd.f32 0.0, %v3579
      %3581 = vmatmul.f32.gmra.mxu0 %v3140
      %v3582 = vpop.f32.mrf.mxu0
      %v3583 = vadd.f32 0.0, %v3582
      %3584 = vmatmul.f32.gmra.mxu0 %v3141
      %v3585 = vpop.f32.mrf.mxu0
      %v3586 = vadd.f32 0.0, %v3585
      %3587 = vmatmul.f32.gmra.mxu0 %v3142
      %v3588 = vpop.f32.mrf.mxu0
      %v3589 = vadd.f32 0.0, %v3588
      %3590 = vdwg.mxu0
      %v3591 = vadd.f32 %v3501, %v3533
      %v3592 = vadd.f32 %v3502, %v3571
      %v3593 = vadd.f32 %v3503, %v3536
      %v3594 = vadd.f32 %v3504, %v3574
      %v3595 = vadd.f32 %v3505, %v3539
      %v3596 = vadd.f32 %v3506, %v3577
      %v3597 = vadd.f32 %v3507, %v3542
      %v3598 = vadd.f32 %v3508, %v3580
      %v3599 = vadd.f32 %v3509, %v3545
      %v3600 = vadd.f32 %v3510, %v3583
      %v3601 = vadd.f32 %v3511, %v3548
      %v3602 = vadd.f32 %v3512, %v3586
      %v3603 = vadd.f32 %v3513, %v3551
      %v3604 = vadd.f32 %v3514, %v3589
      %v3605 = vld [vmem:[%s2635 + $0x2] sm:$0xff]
      %v3606 = vld [vmem:[%s2635 + $0xa] sm:$0xff]
      %v3607 = vld [vmem:[%s2635 + $0x12] sm:$0xff]
      %v3608 = vld [vmem:[%s2635 + $0x1a] sm:$0xff]
      %v3609 = vld [vmem:[%s2635 + $0x22] sm:$0xff]
      %v3610 = vld [vmem:[%s2635 + $0x2a] sm:$0xff]
      %v3611 = vld [vmem:[%s2635 + $0x32] sm:$0xff]
      %3612 = vmatpush.msra.mxu0 %v3174
      %3613 = vmatpush.msra.mxu0 %v3172
      %3614 = vmatpush.msra.mxu0 %v3170
      %3615 = vmatpush.msra.mxu0 %v3168
      %3616 = vmatpush.msra.mxu0 %v3166
      %3617 = vmatpush.msra.mxu0 %v3164
      %3618 = vmatpush.msra.mxu0 %v3162
      %3619 = vmatpush.msra.mxu0 %v3160
      %3620 = vmatpush.msra.mxu0 %v3158
      %3621 = vmatpush.msra.mxu0 %v3156
      %3622 = vmatpush.msra.mxu0 %v3154
      %3623 = vmatpush.msra.mxu0 %v3152
      %3624 = vmatpush.msra.mxu0 %v3150
      %3625 = vmatpush.msra.mxu0 %v3148
      %3626 = vmatpush.msra.mxu0 %v3146
      %3627 = vmatpush.msra.mxu0 %v3144
      %3628 = vmatmul.f32.gmra.mxu0 %v3605
      %v3629 = vpop.f32.mrf.mxu0
      %v3630 = vadd.f32 0.0, %v3629
      %3631 = vmatmul.f32.gmra.mxu0 %v3606
      %v3632 = vpop.f32.mrf.mxu0
      %v3633 = vadd.f32 0.0, %v3632
      %3634 = vmatmul.f32.gmra.mxu0 %v3607
      %v3635 = vpop.f32.mrf.mxu0
      %v3636 = vadd.f32 0.0, %v3635
      %3637 = vmatmul.f32.gmra.mxu0 %v3608
      %v3638 = vpop.f32.mrf.mxu0
      %v3639 = vadd.f32 0.0, %v3638
      %3640 = vmatmul.f32.gmra.mxu0 %v3609
      %v3641 = vpop.f32.mrf.mxu0
      %v3642 = vadd.f32 0.0, %v3641
      %3643 = vmatmul.f32.gmra.mxu0 %v3610
      %v3644 = vpop.f32.mrf.mxu0
      %v3645 = vadd.f32 0.0, %v3644
      %3646 = vmatmul.f32.gmra.mxu0 %v3611
      %v3647 = vpop.f32.mrf.mxu0
      %v3648 = vadd.f32 0.0, %v3647
      %3649 = vdwg.mxu0
      %3650 = vmatpush.msra.mxu0 %v3175
      %3651 = vmatpush.msra.mxu0 %v3173
      %3652 = vmatpush.msra.mxu0 %v3171
      %3653 = vmatpush.msra.mxu0 %v3169
      %3654 = vmatpush.msra.mxu0 %v3167
      %3655 = vmatpush.msra.mxu0 %v3165
      %3656 = vmatpush.msra.mxu0 %v3163
      %3657 = vmatpush.msra.mxu0 %v3161
      %3658 = vmatpush.msra.mxu0 %v3159
      %3659 = vmatpush.msra.mxu0 %v3157
      %3660 = vmatpush.msra.mxu0 %v3155
      %3661 = vmatpush.msra.mxu0 %v3153
      %3662 = vmatpush.msra.mxu0 %v3151
      %3663 = vmatpush.msra.mxu0 %v3149
      %3664 = vmatpush.msra.mxu0 %v3147
      %3665 = vmatpush.msra.mxu0 %v3145
      %3666 = vmatmul.f32.gmra.mxu0 %v3605
      %v3667 = vpop.f32.mrf.mxu0
      %v3668 = vadd.f32 0.0, %v3667
      %3669 = vmatmul.f32.gmra.mxu0 %v3606
      %v3670 = vpop.f32.mrf.mxu0
      %v3671 = vadd.f32 0.0, %v3670
      %3672 = vmatmul.f32.gmra.mxu0 %v3607
      %v3673 = vpop.f32.mrf.mxu0
      %v3674 = vadd.f32 0.0, %v3673
      %3675 = vmatmul.f32.gmra.mxu0 %v3608
      %v3676 = vpop.f32.mrf.mxu0
      %v3677 = vadd.f32 0.0, %v3676
      %3678 = vmatmul.f32.gmra.mxu0 %v3609
      %v3679 = vpop.f32.mrf.mxu0
      %v3680 = vadd.f32 0.0, %v3679
      %3681 = vmatmul.f32.gmra.mxu0 %v3610
      %v3682 = vpop.f32.mrf.mxu0
      %v3683 = vadd.f32 0.0, %v3682
      %3684 = vmatmul.f32.gmra.mxu0 %v3611
      %v3685 = vpop.f32.mrf.mxu0
      %v3686 = vadd.f32 0.0, %v3685
      %3687 = vdwg.mxu0
      %v3688 = vadd.f32 %v3591, %v3630
      %v3689 = vadd.f32 %v3592, %v3668
      %v3690 = vadd.f32 %v3593, %v3633
      %v3691 = vadd.f32 %v3594, %v3671
      %v3692 = vadd.f32 %v3595, %v3636
      %v3693 = vadd.f32 %v3596, %v3674
      %v3694 = vadd.f32 %v3597, %v3639
      %v3695 = vadd.f32 %v3598, %v3677
      %v3696 = vadd.f32 %v3599, %v3642
      %v3697 = vadd.f32 %v3600, %v3680
      %v3698 = vadd.f32 %v3601, %v3645
      %v3699 = vadd.f32 %v3602, %v3683
      %v3700 = vadd.f32 %v3603, %v3648
      %v3701 = vadd.f32 %v3604, %v3686
      %v3702 = vmax.f32 %v3688, %v3689
      %v3703 = vmax.f32 %v3690, %v3691
      %v3704 = vmax.f32 %v3692, %v3693
      %v3705 = vmax.f32 %v3694, %v3695
      %v3706 = vmax.f32 %v3696, %v3697
      %v3707 = vmax.f32 %v3698, %v3699
      %v3708 = vmax.f32 %v3700, %v3701
      %v3709 = vmax.f32 %v3266, %v3702
      %v3710 = vmax.f32 %v3267, %v3703
      %v3711 = vmax.f32 %v3268, %v3704
      %v3712 = vmax.f32 %v3269, %v3705
      %v3713 = vmax.f32 %v3270, %v3706
      %v3714 = vmax.f32 %v3271, %v3707
      %v3715 = vmax.f32 %v3272, %v3708
      %v3716 = vperm.slane %v2644, 0
      %v3717 = vadd.f32 %v3709, %v3716
      %v3718 = vadd.f32 %v3710, %v3716
      %v3719 = vadd.f32 %v3711, %v3716
      %v3720 = vadd.f32 %v3712, %v3716
      %v3721 = vadd.f32 %v3713, %v3716
      %v3722 = vadd.f32 %v3714, %v3716
      %v3723 = vadd.f32 %v3715, %v3716
      %v3724 = vmax.f32 %v3717, 0.0
      %v3725 = vmax.f32 %v3718, 0.0
      %v3726 = vmax.f32 %v3719, 0.0
      %v3727 = vmax.f32 %v3720, 0.0
      %v3728 = vmax.f32 %v3721, 0.0
      %v3729 = vmax.f32 %v3722, 0.0
      %v3730 = vmax.f32 %v3723, 0.0
      %3731 = vst [vmem:[#allocation3] sm:$0xff] %v3724
      %3732 = vst [vmem:[#allocation3 + $0x8] sm:$0xff] %v3725
      %3733 = vst [vmem:[#allocation3 + $0x10] sm:$0xff] %v3726
      %3734 = vst [vmem:[#allocation3 + $0x18] sm:$0xff] %v3727
      %3735 = vst [vmem:[#allocation3 + $0x20] sm:$0xff] %v3728
      %3736 = vst [vmem:[#allocation3 + $0x28] sm:$0xff] %v3729
      %3737 = vst [vmem:[#allocation3 + $0x30] sm:$0xff] %v3730
      %3738 = vst [vmem:[#allocation3 + $0x38] sm:$0xff] 0.0
      %v3739 = vld [vmem:[#allocation3] sm:$0xff]
      %v3740 = vld [vmem:[#allocation3 + $0x8] sm:$0xff]
      %v3741 = vld [vmem:[#allocation3 + $0x10] sm:$0xff]
      %v3742 = vld [vmem:[#allocation3 + $0x18] sm:$0xff]
      %v3743 = vld [vmem:[#allocation3 + $0x20] sm:$0xff]
      %v3744 = vld [vmem:[#allocation3 + $0x28] sm:$0xff]
      %v3745 = vld [vmem:[#allocation3 + $0x30] sm:$0xff]
      %v3746 = vld [vmem:[%s3] sm:$0xff]
      %v3747 = vld [vmem:[%s3 + $0x8] sm:$0xff]
      %v3748 = vld [vmem:[%s3 + $0x10] sm:$0xff]
      %v3749 = vld [vmem:[%s3 + $0x18] sm:$0xff]
      %v3750 = vld [vmem:[%s3 + $0x20] sm:$0xff]
      %v3751 = vld [vmem:[%s3 + $0x28] sm:$0xff]
      %v3752 = vld [vmem:[%s3 + $0x30] sm:$0xff]
      %v3753 = vld [vmem:[%s3 + $0x38] sm:$0xff]
      %v3754 = vld [vmem:[%s3 + $0x40] sm:$0xff]
      %v3755 = vld [vmem:[%s3 + $0x48] sm:$0xff]
      %v3756 = vld [vmem:[%s3 + $0x50] sm:$0xff]
      %v3757 = vld [vmem:[%s3 + $0x58] sm:$0xff]
      %v3758 = vld [vmem:[%s3 + $0x60] sm:$0xff]
      %v3759 = vld [vmem:[%s3 + $0x68] sm:$0xff]
      %v3760 = vld [vmem:[%s3 + $0x70] sm:$0xff]
      %v3761 = vld [vmem:[%s3 + $0x78] sm:$0xff]
      %v3762 = vld [vmem:[#allocation3 + $0x1] sm:$0xff]
      %v3763 = vld [vmem:[#allocation3 + $0x9] sm:$0xff]
      %v3764 = vld [vmem:[#allocation3 + $0x11] sm:$0xff]
      %v3765 = vld [vmem:[#allocation3 + $0x19] sm:$0xff]
      %v3766 = vld [vmem:[#allocation3 + $0x21] sm:$0xff]
      %v3767 = vld [vmem:[#allocation3 + $0x29] sm:$0xff]
      %v3768 = vld [vmem:[#allocation3 + $0x31] sm:$0xff]
      %s3769 = scalar_lea.vmem %s3, 128
      %v3770 = vld [vmem:[%s3769] sm:$0xff]
      %v3771 = vld [vmem:[%s3769 + $0x8] sm:$0xff]
      %v3772 = vld [vmem:[%s3769 + $0x10] sm:$0xff]
      %v3773 = vld [vmem:[%s3769 + $0x18] sm:$0xff]
      %v3774 = vld [vmem:[%s3769 + $0x20] sm:$0xff]
      %v3775 = vld [vmem:[%s3769 + $0x28] sm:$0xff]
      %v3776 = vld [vmem:[%s3769 + $0x30] sm:$0xff]
      %v3777 = vld [vmem:[%s3769 + $0x38] sm:$0xff]
      %v3778 = vld [vmem:[%s3769 + $0x40] sm:$0xff]
      %v3779 = vld [vmem:[%s3769 + $0x48] sm:$0xff]
      %v3780 = vld [vmem:[%s3769 + $0x50] sm:$0xff]
      %v3781 = vld [vmem:[%s3769 + $0x58] sm:$0xff]
      %v3782 = vld [vmem:[%s3769 + $0x60] sm:$0xff]
      %v3783 = vld [vmem:[%s3769 + $0x68] sm:$0xff]
      %v3784 = vld [vmem:[%s3769 + $0x70] sm:$0xff]
      %v3785 = vld [vmem:[%s3769 + $0x78] sm:$0xff]
      %3786 = vmatpush.msra.mxu0 %v3785
      %3787 = vmatpush.msra.mxu0 %v3784
      %3788 = vmatpush.msra.mxu0 %v3783
      %3789 = vmatpush.msra.mxu0 %v3782
      %3790 = vmatpush.msra.mxu0 %v3781
      %3791 = vmatpush.msra.mxu0 %v3780
      %3792 = vmatpush.msra.mxu0 %v3779
      %3793 = vmatpush.msra.mxu0 %v3778
      %3794 = vmatpush.msra.mxu0 %v3777
      %3795 = vmatpush.msra.mxu0 %v3776
      %3796 = vmatpush.msra.mxu0 %v3775
      %3797 = vmatpush.msra.mxu0 %v3774
      %3798 = vmatpush.msra.mxu0 %v3773
      %3799 = vmatpush.msra.mxu0 %v3772
      %3800 = vmatpush.msra.mxu0 %v3771
      %3801 = vmatpush.msra.mxu0 %v3770
      %3802 = vmatmul.f32.gmra.mxu0 %v3762
      %v3803 = vpop.f32.mrf.mxu0
      %v3804 = vadd.f32 0.0, %v3803
      %3805 = vmatmul.f32.gmra.mxu0 %v3763
      %v3806 = vpop.f32.mrf.mxu0
      %v3807 = vadd.f32 0.0, %v3806
      %3808 = vmatmul.f32.gmra.mxu0 %v3764
      %v3809 = vpop.f32.mrf.mxu0
      %v3810 = vadd.f32 0.0, %v3809
      %3811 = vmatmul.f32.gmra.mxu0 %v3765
      %v3812 = vpop.f32.mrf.mxu0
      %v3813 = vadd.f32 0.0, %v3812
      %3814 = vmatmul.f32.gmra.mxu0 %v3766
      %v3815 = vpop.f32.mrf.mxu0
      %v3816 = vadd.f32 0.0, %v3815
      %3817 = vmatmul.f32.gmra.mxu0 %v3767
      %v3818 = vpop.f32.mrf.mxu0
      %v3819 = vadd.f32 0.0, %v3818
      %3820 = vmatmul.f32.gmra.mxu0 %v3768
      %v3821 = vpop.f32.mrf.mxu0
      %v3822 = vadd.f32 0.0, %v3821
      %3823 = vdwg.mxu0
      %3824 = vmatpush.msra.mxu0 %v3761
      %3825 = vmatpush.msra.mxu0 %v3760
      %3826 = vmatpush.msra.mxu0 %v3759
      %3827 = vmatpush.msra.mxu0 %v3758
      %3828 = vmatpush.msra.mxu0 %v3757
      %3829 = vmatpush.msra.mxu0 %v3756
      %3830 = vmatpush.msra.mxu0 %v3755
      %3831 = vmatpush.msra.mxu0 %v3754
      %3832 = vmatpush.msra.mxu0 %v3753
      %3833 = vmatpush.msra.mxu0 %v3752
      %3834 = vmatpush.msra.mxu0 %v3751
      %3835 = vmatpush.msra.mxu0 %v3750
      %3836 = vmatpush.msra.mxu0 %v3749
      %3837 = vmatpush.msra.mxu0 %v3748
      %3838 = vmatpush.msra.mxu0 %v3747
      %3839 = vmatpush.msra.mxu0 %v3746
      %3840 = vmatmul.f32.gmra.mxu0 %v3739
      %v3841 = vpop.f32.mrf.mxu0
      %v3842 = vadd.f32 %v3804, %v3841
      %3843 = vmatmul.f32.gmra.mxu0 %v3740
      %v3844 = vpop.f32.mrf.mxu0
      %v3845 = vadd.f32 %v3807, %v3844
      %3846 = vmatmul.f32.gmra.mxu0 %v3741
      %v3847 = vpop.f32.mrf.mxu0
      %v3848 = vadd.f32 %v3810, %v3847
      %3849 = vmatmul.f32.gmra.mxu0 %v3742
      %v3850 = vpop.f32.mrf.mxu0
      %v3851 = vadd.f32 %v3813, %v3850
      %3852 = vmatmul.f32.gmra.mxu0 %v3743
      %v3853 = vpop.f32.mrf.mxu0
      %v3854 = vadd.f32 %v3816, %v3853
      %3855 = vmatmul.f32.gmra.mxu0 %v3744
      %v3856 = vpop.f32.mrf.mxu0
      %v3857 = vadd.f32 %v3819, %v3856
      %3858 = vmatmul.f32.gmra.mxu0 %v3745
      %v3859 = vpop.f32.mrf.mxu0
      %v3860 = vadd.f32 %v3822, %v3859
      %3861 = vdwg.mxu0
      %v3862 = vld [vmem:[#allocation3 + $0x2] sm:$0xff]
      %v3863 = vld [vmem:[#allocation3 + $0xa] sm:$0xff]
      %v3864 = vld [vmem:[#allocation3 + $0x12] sm:$0xff]
      %v3865 = vld [vmem:[#allocation3 + $0x1a] sm:$0xff]
      %v3866 = vld [vmem:[#allocation3 + $0x22] sm:$0xff]
      %v3867 = vld [vmem:[#allocation3 + $0x2a] sm:$0xff]
      %v3868 = vld [vmem:[#allocation3 + $0x32] sm:$0xff]
      %s3869 = scalar_lea.vmem %s3, 256
      %v3870 = vld [vmem:[%s3869] sm:$0xff]
      %v3871 = vld [vmem:[%s3869 + $0x8] sm:$0xff]
      %v3872 = vld [vmem:[%s3869 + $0x10] sm:$0xff]
      %v3873 = vld [vmem:[%s3869 + $0x18] sm:$0xff]
      %v3874 = vld [vmem:[%s3869 + $0x20] sm:$0xff]
      %v3875 = vld [vmem:[%s3869 + $0x28] sm:$0xff]
      %v3876 = vld [vmem:[%s3869 + $0x30] sm:$0xff]
      %v3877 = vld [vmem:[%s3869 + $0x38] sm:$0xff]
      %v3878 = vld [vmem:[%s3869 + $0x40] sm:$0xff]
      %v3879 = vld [vmem:[%s3869 + $0x48] sm:$0xff]
      %v3880 = vld [vmem:[%s3869 + $0x50] sm:$0xff]
      %v3881 = vld [vmem:[%s3869 + $0x58] sm:$0xff]
      %v3882 = vld [vmem:[%s3869 + $0x60] sm:$0xff]
      %v3883 = vld [vmem:[%s3869 + $0x68] sm:$0xff]
      %v3884 = vld [vmem:[%s3869 + $0x70] sm:$0xff]
      %v3885 = vld [vmem:[%s3869 + $0x78] sm:$0xff]
      %3886 = vmatpush.msra.mxu0 %v3885
      %3887 = vmatpush.msra.mxu0 %v3884
      %3888 = vmatpush.msra.mxu0 %v3883
      %3889 = vmatpush.msra.mxu0 %v3882
      %3890 = vmatpush.msra.mxu0 %v3881
      %3891 = vmatpush.msra.mxu0 %v3880
      %3892 = vmatpush.msra.mxu0 %v3879
      %3893 = vmatpush.msra.mxu0 %v3878
      %3894 = vmatpush.msra.mxu0 %v3877
      %3895 = vmatpush.msra.mxu0 %v3876
      %3896 = vmatpush.msra.mxu0 %v3875
      %3897 = vmatpush.msra.mxu0 %v3874
      %3898 = vmatpush.msra.mxu0 %v3873
      %3899 = vmatpush.msra.mxu0 %v3872
      %3900 = vmatpush.msra.mxu0 %v3871
      %3901 = vmatpush.msra.mxu0 %v3870
      %3902 = vmatmul.f32.gmra.mxu0 %v3862
      %v3903 = vpop.f32.mrf.mxu0
      %v3904 = vadd.f32 0.0, %v3903
      %3905 = vmatmul.f32.gmra.mxu0 %v3863
      %v3906 = vpop.f32.mrf.mxu0
      %v3907 = vadd.f32 0.0, %v3906
      %3908 = vmatmul.f32.gmra.mxu0 %v3864
      %v3909 = vpop.f32.mrf.mxu0
      %v3910 = vadd.f32 0.0, %v3909
      %3911 = vmatmul.f32.gmra.mxu0 %v3865
      %v3912 = vpop.f32.mrf.mxu0
      %v3913 = vadd.f32 0.0, %v3912
      %3914 = vmatmul.f32.gmra.mxu0 %v3866
      %v3915 = vpop.f32.mrf.mxu0
      %v3916 = vadd.f32 0.0, %v3915
      %3917 = vmatmul.f32.gmra.mxu0 %v3867
      %v3918 = vpop.f32.mrf.mxu0
      %v3919 = vadd.f32 0.0, %v3918
      %3920 = vmatmul.f32.gmra.mxu0 %v3868
      %v3921 = vpop.f32.mrf.mxu0
      %v3922 = vadd.f32 0.0, %v3921
      %3923 = vdwg.mxu0
      %v3924 = vadd.f32 %v3842, %v3904
      %v3925 = vadd.f32 %v3845, %v3907
      %v3926 = vadd.f32 %v3848, %v3910
      %v3927 = vadd.f32 %v3851, %v3913
      %v3928 = vadd.f32 %v3854, %v3916
      %v3929 = vadd.f32 %v3857, %v3919
      %v3930 = vadd.f32 %v3860, %v3922
      %v3931 = vld [vmem:[#allocation3 + $0x3] sm:$0xff]
      %v3932 = vld [vmem:[#allocation3 + $0xb] sm:$0xff]
      %v3933 = vld [vmem:[#allocation3 + $0x13] sm:$0xff]
      %v3934 = vld [vmem:[#allocation3 + $0x1b] sm:$0xff]
      %v3935 = vld [vmem:[#allocation3 + $0x23] sm:$0xff]
      %v3936 = vld [vmem:[#allocation3 + $0x2b] sm:$0xff]
      %v3937 = vld [vmem:[#allocation3 + $0x33] sm:$0xff]
      %s3938 = scalar_lea.vmem %s3, 384
      %v3939 = vld [vmem:[%s3938] sm:$0xff]
      %v3940 = vld [vmem:[%s3938 + $0x8] sm:$0xff]
      %v3941 = vld [vmem:[%s3938 + $0x10] sm:$0xff]
      %v3942 = vld [vmem:[%s3938 + $0x18] sm:$0xff]
      %v3943 = vld [vmem:[%s3938 + $0x20] sm:$0xff]
      %v3944 = vld [vmem:[%s3938 + $0x28] sm:$0xff]
      %v3945 = vld [vmem:[%s3938 + $0x30] sm:$0xff]
      %v3946 = vld [vmem:[%s3938 + $0x38] sm:$0xff]
      %v3947 = vld [vmem:[%s3938 + $0x40] sm:$0xff]
      %v3948 = vld [vmem:[%s3938 + $0x48] sm:$0xff]
      %v3949 = vld [vmem:[%s3938 + $0x50] sm:$0xff]
      %v3950 = vld [vmem:[%s3938 + $0x58] sm:$0xff]
      %v3951 = vld [vmem:[%s3938 + $0x60] sm:$0xff]
      %v3952 = vld [vmem:[%s3938 + $0x68] sm:$0xff]
      %v3953 = vld [vmem:[%s3938 + $0x70] sm:$0xff]
      %v3954 = vld [vmem:[%s3938 + $0x78] sm:$0xff]
      %3955 = vmatpush.msra.mxu0 %v3954
      %3956 = vmatpush.msra.mxu0 %v3953
      %3957 = vmatpush.msra.mxu0 %v3952
      %3958 = vmatpush.msra.mxu0 %v3951
      %3959 = vmatpush.msra.mxu0 %v3950
      %3960 = vmatpush.msra.mxu0 %v3949
      %3961 = vmatpush.msra.mxu0 %v3948
      %3962 = vmatpush.msra.mxu0 %v3947
      %3963 = vmatpush.msra.mxu0 %v3946
      %3964 = vmatpush.msra.mxu0 %v3945
      %3965 = vmatpush.msra.mxu0 %v3944
      %3966 = vmatpush.msra.mxu0 %v3943
      %3967 = vmatpush.msra.mxu0 %v3942
      %3968 = vmatpush.msra.mxu0 %v3941
      %3969 = vmatpush.msra.mxu0 %v3940
      %3970 = vmatpush.msra.mxu0 %v3939
      %3971 = vmatmul.f32.gmra.mxu0 %v3931
      %v3972 = vpop.f32.mrf.mxu0
      %v3973 = vadd.f32 0.0, %v3972
      %3974 = vmatmul.f32.gmra.mxu0 %v3932
      %v3975 = vpop.f32.mrf.mxu0
      %v3976 = vadd.f32 0.0, %v3975
      %3977 = vmatmul.f32.gmra.mxu0 %v3933
      %v3978 = vpop.f32.mrf.mxu0
      %v3979 = vadd.f32 0.0, %v3978
      %3980 = vmatmul.f32.gmra.mxu0 %v3934
      %v3981 = vpop.f32.mrf.mxu0
      %v3982 = vadd.f32 0.0, %v3981
      %3983 = vmatmul.f32.gmra.mxu0 %v3935
      %v3984 = vpop.f32.mrf.mxu0
      %v3985 = vadd.f32 0.0, %v3984
      %3986 = vmatmul.f32.gmra.mxu0 %v3936
      %v3987 = vpop.f32.mrf.mxu0
      %v3988 = vadd.f32 0.0, %v3987
      %3989 = vmatmul.f32.gmra.mxu0 %v3937
      %v3990 = vpop.f32.mrf.mxu0
      %v3991 = vadd.f32 0.0, %v3990
      %3992 = vdwg.mxu0
      %v3993 = vadd.f32 %v3924, %v3973
      %v3994 = vadd.f32 %v3925, %v3976
      %v3995 = vadd.f32 %v3926, %v3979
      %v3996 = vadd.f32 %v3927, %v3982
      %v3997 = vadd.f32 %v3928, %v3985
      %v3998 = vadd.f32 %v3929, %v3988
      %v3999 = vadd.f32 %v3930, %v3991
      %v4000 = vld [vmem:[#allocation3 + $0x4] sm:$0xff]
      %v4001 = vld [vmem:[#allocation3 + $0xc] sm:$0xff]
      %v4002 = vld [vmem:[#allocation3 + $0x14] sm:$0xff]
      %v4003 = vld [vmem:[#allocation3 + $0x1c] sm:$0xff]
      %v4004 = vld [vmem:[#allocation3 + $0x24] sm:$0xff]
      %v4005 = vld [vmem:[#allocation3 + $0x2c] sm:$0xff]
      %v4006 = vld [vmem:[#allocation3 + $0x34] sm:$0xff]
      %s4007 = scalar_lea.vmem %s3, 512
      %v4008 = vld [vmem:[%s4007] sm:$0xff]
      %v4009 = vld [vmem:[%s4007 + $0x8] sm:$0xff]
      %v4010 = vld [vmem:[%s4007 + $0x10] sm:$0xff]
      %v4011 = vld [vmem:[%s4007 + $0x18] sm:$0xff]
      %v4012 = vld [vmem:[%s4007 + $0x20] sm:$0xff]
      %v4013 = vld [vmem:[%s4007 + $0x28] sm:$0xff]
      %v4014 = vld [vmem:[%s4007 + $0x30] sm:$0xff]
      %v4015 = vld [vmem:[%s4007 + $0x38] sm:$0xff]
      %v4016 = vld [vmem:[%s4007 + $0x40] sm:$0xff]
      %v4017 = vld [vmem:[%s4007 + $0x48] sm:$0xff]
      %v4018 = vld [vmem:[%s4007 + $0x50] sm:$0xff]
      %v4019 = vld [vmem:[%s4007 + $0x58] sm:$0xff]
      %v4020 = vld [vmem:[%s4007 + $0x60] sm:$0xff]
      %v4021 = vld [vmem:[%s4007 + $0x68] sm:$0xff]
      %v4022 = vld [vmem:[%s4007 + $0x70] sm:$0xff]
      %v4023 = vld [vmem:[%s4007 + $0x78] sm:$0xff]
      %4024 = vmatpush.msra.mxu0 %v4023
      %4025 = vmatpush.msra.mxu0 %v4022
      %4026 = vmatpush.msra.mxu0 %v4021
      %4027 = vmatpush.msra.mxu0 %v4020
      %4028 = vmatpush.msra.mxu0 %v4019
      %4029 = vmatpush.msra.mxu0 %v4018
      %4030 = vmatpush.msra.mxu0 %v4017
      %4031 = vmatpush.msra.mxu0 %v4016
      %4032 = vmatpush.msra.mxu0 %v4015
      %4033 = vmatpush.msra.mxu0 %v4014
      %4034 = vmatpush.msra.mxu0 %v4013
      %4035 = vmatpush.msra.mxu0 %v4012
      %4036 = vmatpush.msra.mxu0 %v4011
      %4037 = vmatpush.msra.mxu0 %v4010
      %4038 = vmatpush.msra.mxu0 %v4009
      %4039 = vmatpush.msra.mxu0 %v4008
      %4040 = vmatmul.f32.gmra.mxu0 %v4000
      %v4041 = vpop.f32.mrf.mxu0
      %v4042 = vadd.f32 0.0, %v4041
      %4043 = vmatmul.f32.gmra.mxu0 %v4001
      %v4044 = vpop.f32.mrf.mxu0
      %v4045 = vadd.f32 0.0, %v4044
      %4046 = vmatmul.f32.gmra.mxu0 %v4002
      %v4047 = vpop.f32.mrf.mxu0
      %v4048 = vadd.f32 0.0, %v4047
      %4049 = vmatmul.f32.gmra.mxu0 %v4003
      %v4050 = vpop.f32.mrf.mxu0
      %v4051 = vadd.f32 0.0, %v4050
      %4052 = vmatmul.f32.gmra.mxu0 %v4004
      %v4053 = vpop.f32.mrf.mxu0
      %v4054 = vadd.f32 0.0, %v4053
      %4055 = vmatmul.f32.gmra.mxu0 %v4005
      %v4056 = vpop.f32.mrf.mxu0
      %v4057 = vadd.f32 0.0, %v4056
      %4058 = vmatmul.f32.gmra.mxu0 %v4006
      %v4059 = vpop.f32.mrf.mxu0
      %v4060 = vadd.f32 0.0, %v4059
      %4061 = vdwg.mxu0
      %v4062 = vadd.f32 %v3993, %v4042
      %v4063 = vadd.f32 %v3994, %v4045
      %v4064 = vadd.f32 %v3995, %v4048
      %v4065 = vadd.f32 %v3996, %v4051
      %v4066 = vadd.f32 %v3997, %v4054
      %v4067 = vadd.f32 %v3998, %v4057
      %v4068 = vadd.f32 %v3999, %v4060
      %v4069 = vld [vmem:[%s6 + $0x2] sm:$0x1]
      %v4070 = vperm.slane %v4069, 0
      %v4071 = vadd.f32 %v4062, %v4070
      %v4072 = vadd.f32 %v4063, %v4070
      %v4073 = vadd.f32 %v4064, %v4070
      %v4074 = vadd.f32 %v4065, %v4070
      %v4075 = vadd.f32 %v4066, %v4070
      %v4076 = vadd.f32 %v4067, %v4070
      %v4077 = vadd.f32 %v4068, %v4070
      %v4078 = vmax.f32 %v4071, 0.0
      %v4079 = vmax.f32 %v4072, 0.0
      %v4080 = vmax.f32 %v4073, 0.0
      %v4081 = vmax.f32 %v4074, 0.0
      %v4082 = vmax.f32 %v4075, 0.0
      %v4083 = vmax.f32 %v4076, 0.0
      %v4084 = vmax.f32 %v4077, 0.0
      %v4085 = vld [vmem:[%s4] sm:$0xff]
      %v4086 = vld [vmem:[%s4 + $0x8] sm:$0xff]
      %v4087 = vld [vmem:[%s4 + $0x10] sm:$0xff]
      %v4088 = vld [vmem:[%s4 + $0x18] sm:$0xff]
      %v4089 = vld [vmem:[%s4 + $0x20] sm:$0xff]
      %v4090 = vld [vmem:[%s4 + $0x28] sm:$0xff]
      %v4091 = vld [vmem:[%s4 + $0x30] sm:$0xff]
      %v4092 = vld [vmem:[%s4 + $0x38] sm:$0xff]
      %v4093 = vld [vmem:[%s4 + $0x40] sm:$0xff]
      %v4094 = vld [vmem:[%s4 + $0x48] sm:$0xff]
      %v4095 = vld [vmem:[%s4 + $0x50] sm:$0xff]
      %v4096 = vld [vmem:[%s4 + $0x58] sm:$0xff]
      %v4097 = vld [vmem:[%s4 + $0x60] sm:$0xff]
      %v4098 = vld [vmem:[%s4 + $0x68] sm:$0xff]
      %v4099 = vld [vmem:[%s4 + $0x70] sm:$0xff]
      %v4100 = vld [vmem:[%s4 + $0x78] sm:$0xff]
      %v4101 = vld [vmem:[%s6 + $0x3] sm:$0x1]
      %v4102 = vperm.slane %v4101, 0
      %4103 = vmatpush.msra.mxu0 %v4100
      %4104 = vmatpush.msra.mxu0 %v4099
      %4105 = vmatpush.msra.mxu0 %v4098
      %4106 = vmatpush.msra.mxu0 %v4097
      %4107 = vmatpush.msra.mxu0 %v4096
      %4108 = vmatpush.msra.mxu0 %v4095
      %4109 = vmatpush.msra.mxu0 %v4094
      %4110 = vmatpush.msra.mxu0 %v4093
      %4111 = vmatpush.msra.mxu0 %v4092
      %4112 = vmatpush.msra.mxu0 %v4091
      %4113 = vmatpush.msra.mxu0 %v4090
      %4114 = vmatpush.msra.mxu0 %v4089
      %4115 = vmatpush.msra.mxu0 %v4088
      %4116 = vmatpush.msra.mxu0 %v4087
      %4117 = vmatpush.msra.mxu0 %v4086
      %4118 = vmatpush.msra.mxu0 %v4085
      %4119 = vmatmul.f32.gmra.mxu0 %v4078
      %v4120 = vpop.f32.mrf.mxu0
      %v4121 = vadd.f32 %v4102, %v4120
      %4122 = vmatmul.f32.gmra.mxu0 %v4079
      %v4123 = vpop.f32.mrf.mxu0
      %v4124 = vadd.f32 %v4102, %v4123
      %4125 = vmatmul.f32.gmra.mxu0 %v4080
      %v4126 = vpop.f32.mrf.mxu0
      %v4127 = vadd.f32 %v4102, %v4126
      %4128 = vmatmul.f32.gmra.mxu0 %v4081
      %v4129 = vpop.f32.mrf.mxu0
      %v4130 = vadd.f32 %v4102, %v4129
      %4131 = vmatmul.f32.gmra.mxu0 %v4082
      %v4132 = vpop.f32.mrf.mxu0
      %v4133 = vadd.f32 %v4102, %v4132
      %4134 = vmatmul.f32.gmra.mxu0 %v4083
      %v4135 = vpop.f32.mrf.mxu0
      %v4136 = vadd.f32 %v4102, %v4135
      %4137 = vmatmul.f32.gmra.mxu0 %v4084
      %v4138 = vpop.f32.mrf.mxu0
      %v4139 = vadd.f32 %v4102, %v4138
      %4140 = vdwg.mxu0
      %v4141 = vmax.f32 %v4121, 0.0
      %v4142 = vmax.f32 %v4124, 0.0
      %v4143 = vmax.f32 %v4127, 0.0
      %v4144 = vmax.f32 %v4130, 0.0
      %v4145 = vmax.f32 %v4133, 0.0
      %v4146 = vmax.f32 %v4136, 0.0
      %v4147 = vmax.f32 %v4139, 0.0
      %v4148 = vld [vmem:[%s5] sm:$0xff]
      %v4149 = vld [vmem:[%s5 + $0x8] sm:$0xff]
      %v4150 = vld [vmem:[%s5 + $0x10] sm:$0xff]
      %v4151 = vld [vmem:[%s5 + $0x18] sm:$0xff]
      %v4152 = vld [vmem:[%s5 + $0x20] sm:$0xff]
      %v4153 = vld [vmem:[%s5 + $0x28] sm:$0xff]
      %v4154 = vld [vmem:[%s5 + $0x30] sm:$0xff]
      %v4155 = vld [vmem:[%s5 + $0x38] sm:$0xff]
      %v4156 = vld [vmem:[%s5 + $0x40] sm:$0xff]
      %v4157 = vld [vmem:[%s5 + $0x48] sm:$0xff]
      %v4158 = vld [vmem:[%s5 + $0x50] sm:$0xff]
      %v4159 = vld [vmem:[%s5 + $0x58] sm:$0xff]
      %v4160 = vld [vmem:[%s5 + $0x60] sm:$0xff]
      %v4161 = vld [vmem:[%s5 + $0x68] sm:$0xff]
      %v4162 = vld [vmem:[%s5 + $0x70] sm:$0xff]
      %v4163 = vld [vmem:[%s5 + $0x78] sm:$0xff]
      %v4164 = vld [vmem:[%s6 + $0x4] sm:$0x1]
      %v4165 = vperm.slane %v4164, 0
      %4166 = vmatpush.msra.mxu0 %v4163
      %4167 = vmatpush.msra.mxu0 %v4162
      %4168 = vmatpush.msra.mxu0 %v4161
      %4169 = vmatpush.msra.mxu0 %v4160
      %4170 = vmatpush.msra.mxu0 %v4159
      %4171 = vmatpush.msra.mxu0 %v4158
      %4172 = vmatpush.msra.mxu0 %v4157
      %4173 = vmatpush.msra.mxu0 %v4156
      %4174 = vmatpush.msra.mxu0 %v4155
      %4175 = vmatpush.msra.mxu0 %v4154
      %4176 = vmatpush.msra.mxu0 %v4153
      %4177 = vmatpush.msra.mxu0 %v4152
      %4178 = vmatpush.msra.mxu0 %v4151
      %4179 = vmatpush.msra.mxu0 %v4150
      %4180 = vmatpush.msra.mxu0 %v4149
      %4181 = vmatpush.msra.mxu0 %v4148
      %4182 = vmatmul.f32.gmra.mxu0 %v4141
      %v4183 = vpop.f32.mrf.mxu0
      %v4184 = vadd.f32 %v4165, %v4183
      %4185 = vmatmul.f32.gmra.mxu0 %v4142
      %v4186 = vpop.f32.mrf.mxu0
      %v4187 = vadd.f32 %v4165, %v4186
      %4188 = vmatmul.f32.gmra.mxu0 %v4143
      %v4189 = vpop.f32.mrf.mxu0
      %v4190 = vadd.f32 %v4165, %v4189
      %4191 = vmatmul.f32.gmra.mxu0 %v4144
      %v4192 = vpop.f32.mrf.mxu0
      %v4193 = vadd.f32 %v4165, %v4192
      %4194 = vmatmul.f32.gmra.mxu0 %v4145
      %v4195 = vpop.f32.mrf.mxu0
      %v4196 = vadd.f32 %v4165, %v4195
      %4197 = vmatmul.f32.gmra.mxu0 %v4146
      %v4198 = vpop.f32.mrf.mxu0
      %v4199 = vadd.f32 %v4165, %v4198
      %4200 = vmatmul.f32.gmra.mxu0 %v4147
      %v4201 = vpop.f32.mrf.mxu0
      %v4202 = vadd.f32 %v4165, %v4201
      %4203 = vdwg.mxu0
      %v4204 = vmax.f32 %v4184, 0.0
      %v4205 = vmax.f32 %v4187, 0.0
      %v4206 = vmax.f32 %v4190, 0.0
      %v4207 = vmax.f32 %v4193, 0.0
      %v4208 = vmax.f32 %v4196, 0.0
      %v4209 = vmax.f32 %v4199, 0.0
      %v4210 = vmax.f32 %v4202, 0.0
      %4211 = vst [vmem:[%s278] sm:$0xff] %v4204
      %4212 = vst [vmem:[%s278 + $0x8] sm:$0xff] %v4205
      %4213 = vst [vmem:[%s278 + $0x10] sm:$0xff] %v4206
      %4214 = vst [vmem:[%s278 + $0x18] sm:$0xff] %v4207
      %4215 = vst [vmem:[%s278 + $0x20] sm:$0xff] %v4208
      %4216 = vst [vmem:[%s278 + $0x28] sm:$0xff] %v4209
      %4217 = vst [vmem:[%s278 + $0x30] sm:$0xff] %v4210
      %p4218 = scmp.lt.s32.totalorder %s18, 1
      %s4219 = scalar_select %p4218, %s18, 1
      %s4220 = smul.addr %s4219, 7
      %s4221 = smul.addr %s4220, 8
      %s4222 = scalar_lea.vmem %s7, %s4221
      // Predicated region
      $region49: #{mynet_forward.1} parent=47 // pred_check
        %p4223 = pneg %p188
      $region50: #{mynet_forward.1} parent=47 // pred_check_branch
        %4225 = sbr.rel (%p4223) target = $region52
      $region51: #{mynet_forward.1} parent=47 // pred_region
        _
      $region52: #{mynet_forward.1} parent=47 // pred_fallthru
        _
    $region48: #{mynet_forward.1} parent=5 // pred_fallthru
      _
    %p4226 = scmp.le.s32.totalorder 2, %s13
    // Predicated region
    $region53: #{mynet_forward.1} parent=5 // pred_check
      %p4227 = pneg %p4226
    $region54: #{mynet_forward.1} parent=5 // pred_check_branch
      %4229 = sbr.rel (%p4227) target = $region56
    $region55: #{mynet_forward.1} parent=5 // pred_region
      %s4230 = ssub.s32 %s13, 2
      // Predicated region
      $region57: #{mynet_forward.1} parent=55 // pred_check
        %p4231 = pneg %p194
      $region58: #{mynet_forward.1} parent=55 // pred_check_branch
        %4233 = sbr.rel (%p4231) target = $region60
      $region59: #{mynet_forward.1} parent=55 // pred_region
        %p4234 = scmp.lt.s32.totalorder %s19, 1
        %s4235 = scalar_select %p4234, %s19, 1
        %s4236 = smul.addr %s4235, 7
        %s4237 = smul.addr %s4236, 8
        %s4238 = scalar_lea.vmem %s7, %s4237
      $region60: #{mynet_forward.1} parent=55 // pred_fallthru
        _
    $region56: #{mynet_forward.1} parent=5 // pred_fallthru
      _
  $region6: #{mynet_forward.1} parent=0 // loop_footer
    %s17 = sadd.s32 1, %s13
  $region7: #{mynet_forward.1} parent=0 // loop_footer_branch
    %12 = sbr.rel target = $region3
  $region8: #{mynet_forward.1} parent=0 // loop_exit
    _

</llo_original>
